<compile_context>
chip_gen: v7x
topology: tpu7x:2x2x1
jax: 0.10.0
libtpu: 0.0.40
codegen_flags: <defaults>
</compile_context>

<pallas_src>
import jax
import jax.numpy as jnp
from jax.experimental import pallas as pl
from jax.experimental.pallas import tpu as pltpu

# ----- synthetic config (matches what the module's __init__/forward imply) -----
DIM      = 32          # config.dim_emb
N_HEAD   = 4           # config.n_head
HEAD_DIM = DIM // N_HEAD
DIM_FFN  = 64          # config.dim_ffn
N_LAYER  = 2           # config.n_layer
S0, S1   = 8, 8        # slen0, slen1
SEQ      = S0 + S1
BATCH    = 2
NEG_INF  = -1e9
LN_EPS   = 1e-5
VW       = 3 * DIM     # width of the packed per-layer vector slab (>= DIM_FFN)


def _layernorm(x, gamma, beta, eps=LN_EPS):
    mean = jnp.mean(x, axis=-1, keepdims=True)
    var = jnp.mean((x - mean) ** 2, axis=-1, keepdims=True)
    return (x - mean) * jax.lax.rsqrt(var + eps) * gamma + beta


# ---------------------------------------------------------------------------
# Single fused kernel: type-emb add + concat -> N_LAYER pre-norm encoder layers -> final LayerNorm
# ---------------------------------------------------------------------------
def fused_forward_kernel(x0_ref, x1_ref, mask_ref, misc_ref,
                         wqkv_ref, wo_ref, w1_ref, w2_ref, vec_ref,
                         o_ref):
    B, s0, D = x0_ref.shape
    s1 = x1_ref.shape[1]
    S = s0 + s1
    BS = B * S

    # ----- type-embedding add + sequence concat; fold batch into matmul rows -----
    x0 = x0_ref[...].astype(jnp.float32) + misc_ref[0:1, :]      # te[0]
    x1 = x1_ref[...].astype(jnp.float32) + misc_ref[1:2, :]      # te[1]
    x = jnp.concatenate([x0, x1], axis=1)                        # (B, S, D)
    xf = x.reshape(BS, D)                                        # (B*S, D)

    bias = (mask_ref[...] * NEG_INF)[:, None, :]                 # (B, 1, S) additive key bias
    scale = 1.0 / (HEAD_DIM ** 0.5)

    for layer in range(N_LAYER):                                 # static unroll; weights resident
        vecs = vec_ref[layer]                                    # (8, VW)
        ln1_g, ln1_b = vecs[0:1, 0:D], vecs[1:2, 0:D]
        ln2_g, ln2_b = vecs[2:3, 0:D], vecs[3:4, 0:D]
        b_qkv = vecs[4:5, :]                                     # (1, 3D)
        b_o   = vecs[5:6, 0:D]
        b_1   = vecs[6:7, 0:DIM_FFN]
        b_2   = vecs[7:8, 0:D]

        # ----- multi-head self-attention (pre-norm) -----
        h = _layernorm(xf, ln1_g, ln1_b)
        qkv = jnp.dot(h, wqkv_ref[layer],
                      preferred_element_type=jnp.float32) + b_qkv      # (BS, 3D), one MXU push
        q = qkv[:, 0:D].reshape(B, S, D)
        k = qkv[:, D:2 * D].reshape(B, S, D)
        v = qkv[:, 2 * D:3 * D].reshape(B, S, D)

        attn = jnp.zeros((BS, D), jnp.float32)
        for hd in range(N_HEAD):                                 # static unroll over heads
            lo = hd * HEAD_DIM
            qh = q[:, :, lo:lo + HEAD_DIM]
            kh = k[:, :, lo:lo + HEAD_DIM]
            vh = v[:, :, lo:lo + HEAD_DIM]
            # batched QK^T without an explicit transpose (contract last dims)
            s = jnp.einsum('bqd,bkd->bqk', qh, kh,
                           preferred_element_type=jnp.float32) * scale + bias
            s = s - jnp.max(s, axis=-1, keepdims=True)
            p = jnp.exp(s)
            p = p * pl.reciprocal(jnp.sum(p, axis=-1, keepdims=True), approx=True)
            ctx = jnp.einsum('bqk,bkd->bqd', p, vh,
                             preferred_element_type=jnp.float32)       # (B, S, HEAD_DIM)
            # per-head output-projection accumulation (no lane-axis concat of heads)
            attn = attn + jnp.dot(ctx.reshape(BS, HEAD_DIM),
                                  wo_ref[layer, lo:lo + HEAD_DIM, :],
                                  preferred_element_type=jnp.float32)
        xf = xf + attn + b_o                                     # residual (dropout = 0)

        # ----- feed-forward (pre-norm) -----
        h2 = _layernorm(xf, ln2_g, ln2_b)
        f = jnp.dot(h2, w1_ref[layer], preferred_element_type=jnp.float32) + b_1
        # TODO(synk): PyTorch's exact-erf GELU; tanh approximation used for Mosaic-friendly lowering.
        f = jax.nn.gelu(f, approximate=True)
        f = jnp.dot(f, w2_ref[layer], preferred_element_type=jnp.float32) + b_2
        xf = xf + f

    # ----- final LayerNorm (norm_first=True => encoder applies a final norm) -----
    xf = _layernorm(xf, misc_ref[2:3, :], misc_ref[3:4, :])
    o_ref[...] = xf.reshape(B, S, D).astype(o_ref.dtype)


# ---------------------------------------------------------------------------
# Parameter init (deterministic, synthetic) and packing into a few slabs
# ---------------------------------------------------------------------------
def init_params(key):
    def dense(k, shape):
        return (0.02 * jax.random.normal(k, shape)).astype(jnp.float32)

    keys = jax.random.split(key, 1 + 6 * N_LAYER)
    params = {
        "type_emb": dense(keys[0], (2, DIM)),
        "final_g": jnp.ones((1, DIM), jnp.float32),
        "final_b": jnp.zeros((1, DIM), jnp.float32),
        "layers": [],
    }
    for l in range(N_LAYER):
        kq, kk, kv, ko, k1, k2 = keys[1 + 6 * l: 1 + 6 * (l + 1)]
        params["layers"].append({
            "ln1_g": jnp.ones((1, DIM), jnp.float32),
            "ln1_b": jnp.zeros((1, DIM), jnp.float32),
            "wq": dense(kq, (DIM, DIM)), "bq": jnp.zeros((1, DIM), jnp.float32),
            "wk": dense(kk, (DIM, DIM)), "bk": jnp.zeros((1, DIM), jnp.float32),
            "wv": dense(kv, (DIM, DIM)), "bv": jnp.zeros((1, DIM), jnp.float32),
            "wo": dense(ko, (DIM, DIM)), "bo": jnp.zeros((1, DIM), jnp.float32),
            "ln2_g": jnp.ones((1, DIM), jnp.float32),
            "ln2_b": jnp.zeros((1, DIM), jnp.float32),
            "w1": dense(k1, (DIM, DIM_FFN)), "b1": jnp.zeros((1, DIM_FFN), jnp.float32),
            "w2": dense(k2, (DIM_FFN, DIM)), "b2": jnp.zeros((1, DIM), jnp.float32),
        })
    return params


def pack_params(params):
    """Pack per-layer weights into stacked slabs so the kernel takes few operands."""
    layers = params["layers"]

    wqkv = jnp.stack([jnp.concatenate([L["wq"], L["wk"], L["wv"]], axis=1) for L in layers])
    wo   = jnp.stack([L["wo"] for L in layers])
    w1   = jnp.stack([L["w1"] for L in layers])
    w2   = jnp.stack([L["w2"] for L in layers])

    def row(v):
        v = v.reshape(1, -1)
        return jnp.pad(v, ((0, 0), (0, VW - v.shape[1])))

    vec = jnp.stack([
        jnp.concatenate([
            row(L["ln1_g"]), row(L["ln1_b"]),
            row(L["ln2_g"]), row(L["ln2_b"]),
            jnp.concatenate([L["bq"], L["bk"], L["bv"]], axis=1),   # (1, 3D)
            row(L["bo"]), row(L["b1"]), row(L["b2"]),
        ], axis=0)
        for L in layers
    ])                                                              # (N_LAYER, 8, VW)

    misc = jnp.concatenate(
        [params["type_emb"], params["final_g"], params["final_b"]], axis=0)  # (4, DIM)
    return wqkv, wo, w1, w2, vec, misc


# ---------------------------------------------------------------------------
# Full forward (mirrors TransformerFusion.forward: returns (x, fused_mask))
# ---------------------------------------------------------------------------
def transformer_fusion(x0, x1, params, key_padding_mask0=None, key_padding_mask1=None):
    bs, s0, d = x0.shape
    s1 = x1.shape[1]
    seq = s0 + s1

    # fused key-padding mask (pure glue, matches the PyTorch branch logic)
    if key_padding_mask0 is None and key_padding_mask1 is None:
        fused_mask = None
        mask_f = jnp.zeros((bs, seq), jnp.float32)
    else:
        if key_padding_mask0 is None:
            key_padding_mask0 = jnp.zeros((bs, s0), dtype=bool)
        if key_padding_mask1 is None:
            key_padding_mask1 = jnp.zeros((bs, s1), dtype=bool)
        fused_mask = jnp.concatenate([key_padding_mask0, key_padding_mask1], axis=1)
        mask_f = fused_mask.astype(jnp.float32)

    wqkv, wo, w1, w2, vec, misc = pack_params(params)
    inputs = (x0, x1, mask_f, misc, wqkv, wo, w1, w2, vec)

    def _full_spec(a):
        nd = a.ndim
        return pl.BlockSpec(a.shape, lambda i, _n=nd: (0,) * _n)

    out = pl.pallas_call(
        fused_forward_kernel,
        out_shape=jax.ShapeDtypeStruct((bs, seq, d), x0.dtype),
        grid=(1,),                                    # single step; whole problem resident in VMEM
        in_specs=[_full_spec(a) for a in inputs],
        out_specs=pl.BlockSpec((bs, seq, d), lambda i: (0, 0, 0)),
        compiler_params=pltpu.CompilerParams(
            dimension_semantics=("arbitrary",)),      # latency-bound: keep on one TensorCore
    )(*inputs)
    return out, fused_mask


if __name__ == "__main__":
    key = jax.random.PRNGKey(0)
    k0, k1, kp = jax.random.split(key, 3)
    x0 = jax.random.normal(k0, (BATCH, S0, DIM), dtype=jnp.float32)
    x1 = jax.random.normal(k1, (BATCH, S1, DIM), dtype=jnp.float32)
    # pad the last two positions of x1 (True = ignore), x0 unpadded
    mask0 = jnp.zeros((BATCH, S0), dtype=bool)
    mask1 = jnp.zeros((BATCH, S1), dtype=bool).at[:, -2:].set(True)

    params = init_params(kp)
    out, fused_mask = transformer_fusion(x0, x1, params, mask0, mask1)
    out = jax.block_until_ready(out)

    assert out.shape == (BATCH, SEQ, DIM)
    assert fused_mask.shape == (BATCH, SEQ)
    assert bool(jnp.all(jnp.isfinite(out)))
    print("KERNEL_OK")
</pallas_src>

<mosaic_0001>
module attributes {stable_mosaic.version = 11 : i64} {
  func.func @fused_forward_kernel(%arg0: i32, %arg1: memref<2x8x32xf32, #tpu.memory_space<vmem>>, %arg2: memref<2x8x32xf32, #tpu.memory_space<vmem>>, %arg3: memref<2x16xf32, #tpu.memory_space<vmem>>, %arg4: memref<4x32xf32, #tpu.memory_space<vmem>>, %arg5: memref<2x32x96xf32, #tpu.memory_space<vmem>>, %arg6: memref<2x32x32xf32, #tpu.memory_space<vmem>>, %arg7: memref<2x32x64xf32, #tpu.memory_space<vmem>>, %arg8: memref<2x64x32xf32, #tpu.memory_space<vmem>>, %arg9: memref<2x8x96xf32, #tpu.memory_space<vmem>>, %arg10: memref<2x16x32xf32, #tpu.memory_space<vmem>>) attributes {dimension_semantics = [#tpu.dimension_semantics<arbitrary>], iteration_bounds = array<i64: 1>, scalar_prefetch = 0 : i64, scratch_operands = 0 : i64, tpu.core_type = #tpu.core_type<tc>, window_params = [{pipeline_mode = #tpu.pipeline_mode<synchronous>, transform_indices = @transform_0, window_bounds = array<i64: 2, 8, 32>}, {pipeline_mode = #tpu.pipeline_mode<synchronous>, transform_indices = @transform_1, window_bounds = array<i64: 2, 8, 32>}, {pipeline_mode = #tpu.pipeline_mode<synchronous>, transform_indices = @transform_2, window_bounds = array<i64: 2, 16>}, {pipeline_mode = #tpu.pipeline_mode<synchronous>, transform_indices = @transform_3, window_bounds = array<i64: 4, 32>}, {pipeline_mode = #tpu.pipeline_mode<synchronous>, transform_indices = @transform_4, window_bounds = array<i64: 2, 32, 96>}, {pipeline_mode = #tpu.pipeline_mode<synchronous>, transform_indices = @transform_5, window_bounds = array<i64: 2, 32, 32>}, {pipeline_mode = #tpu.pipeline_mode<synchronous>, transform_indices = @transform_6, window_bounds = array<i64: 2, 32, 64>}, {pipeline_mode = #tpu.pipeline_mode<synchronous>, transform_indices = @transform_7, window_bounds = array<i64: 2, 64, 32>}, {pipeline_mode = #tpu.pipeline_mode<synchronous>, transform_indices = @transform_8, window_bounds = array<i64: 2, 8, 96>}, {pipeline_mode = #tpu.pipeline_mode<synchronous>, transform_indices = @transform_9, window_bounds = array<i64: 2, 16, 32>}]} {
    %c0 = arith.constant 0 : index
    %c0_0 = arith.constant 0 : index
    %c0_1 = arith.constant 0 : index
    %0 = vector.load %arg1[%c0, %c0_0, %c0_1] : memref<2x8x32xf32, #tpu.memory_space<vmem>>, vector<2x8x32xf32>
    %c0_2 = arith.constant 0 : index
    %c0_3 = arith.constant 0 : index
    %1 = vector.load %arg4[%c0_2, %c0_3] : memref<4x32xf32, #tpu.memory_space<vmem>>, vector<1x32xf32>
    %2 = vector.shape_cast %1 : vector<1x32xf32> to vector<1x1x32xf32>
    %3 = vector.broadcast %2 : vector<1x1x32xf32> to vector<2x8x32xf32>
    %4 = arith.addf %0, %3 : vector<2x8x32xf32>
    %c0_4 = arith.constant 0 : index
    %c0_5 = arith.constant 0 : index
    %c0_6 = arith.constant 0 : index
    %5 = vector.load %arg2[%c0_4, %c0_5, %c0_6] : memref<2x8x32xf32, #tpu.memory_space<vmem>>, vector<2x8x32xf32>
    %c1 = arith.constant 1 : index
    %c0_7 = arith.constant 0 : index
    %6 = vector.load %arg4[%c1, %c0_7] : memref<4x32xf32, #tpu.memory_space<vmem>>, vector<1x32xf32>
    %7 = vector.shape_cast %6 : vector<1x32xf32> to vector<1x1x32xf32>
    %8 = vector.broadcast %7 : vector<1x1x32xf32> to vector<2x8x32xf32>
    %9 = arith.addf %5, %8 : vector<2x8x32xf32>
    %10 = tpu.concatenate %4, %9 in 1 : vector<2x8x32xf32>, vector<2x8x32xf32> -> vector<2x16x32xf32>
    %11 = vector.shape_cast %10 : vector<2x16x32xf32> to vector<32x32xf32>
    %c0_8 = arith.constant 0 : index
    %c0_9 = arith.constant 0 : index
    %12 = vector.load %arg3[%c0_8, %c0_9] : memref<2x16xf32, #tpu.memory_space<vmem>>, vector<2x16xf32>
    %cst = arith.constant -1.000000e+09 : f32
    %13 = vector.broadcast %cst : f32 to vector<2x16xf32>
    %14 = arith.mulf %12, %13 : vector<2x16xf32>
    %15 = vector.shape_cast %14 : vector<2x16xf32> to vector<2x1x16xf32>
    %c0_10 = arith.constant 0 : index
    %c0_11 = arith.constant 0 : index
    %c0_12 = arith.constant 0 : index
    %16 = vector.load %arg9[%c0_10, %c0_11, %c0_12] : memref<2x8x96xf32, #tpu.memory_space<vmem>>, vector<1x8x96xf32>
    %17 = vector.shape_cast %16 : vector<1x8x96xf32> to vector<8x96xf32>
    %18 = vector.extract_strided_slice %17 {offsets = [0, 0], sizes = [1, 32], strides = [1, 1]} : vector<8x96xf32> to vector<1x32xf32>
    %19 = vector.extract_strided_slice %17 {offsets = [1, 0], sizes = [1, 32], strides = [1, 1]} : vector<8x96xf32> to vector<1x32xf32>
    %20 = vector.extract_strided_slice %17 {offsets = [2, 0], sizes = [1, 32], strides = [1, 1]} : vector<8x96xf32> to vector<1x32xf32>
    %21 = vector.extract_strided_slice %17 {offsets = [3, 0], sizes = [1, 32], strides = [1, 1]} : vector<8x96xf32> to vector<1x32xf32>
    %22 = vector.extract_strided_slice %17 {offsets = [4, 0], sizes = [1, 96], strides = [1, 1]} : vector<8x96xf32> to vector<1x96xf32>
    %23 = vector.extract_strided_slice %17 {offsets = [5, 0], sizes = [1, 32], strides = [1, 1]} : vector<8x96xf32> to vector<1x32xf32>
    %24 = vector.extract_strided_slice %17 {offsets = [6, 0], sizes = [1, 64], strides = [1, 1]} : vector<8x96xf32> to vector<1x64xf32>
    %25 = vector.extract_strided_slice %17 {offsets = [7, 0], sizes = [1, 32], strides = [1, 1]} : vector<8x96xf32> to vector<1x32xf32>
    %cst_13 = arith.constant dense<0.000000e+00> : vector<32xf32>
    %26 = vector.multi_reduction <add>, %11, %cst_13 [1] : vector<32x32xf32> to vector<32xf32>
    %27 = vector.shape_cast %26 : vector<32xf32> to vector<32x1xf32>
    %cst_14 = arith.constant 3.200000e+01 : f32
    %28 = vector.broadcast %cst_14 : f32 to vector<32x1xf32>
    %29 = arith.divf %27, %28 : vector<32x1xf32>
    %30 = vector.broadcast %29 : vector<32x1xf32> to vector<32x32xf32>
    %31 = arith.subf %11, %30 : vector<32x32xf32>
    %32 = arith.mulf %31, %31 : vector<32x32xf32>
    %cst_15 = arith.constant dense<0.000000e+00> : vector<32xf32>
    %33 = vector.multi_reduction <add>, %32, %cst_15 [1] : vector<32x32xf32> to vector<32xf32>
    %34 = vector.shape_cast %33 : vector<32xf32> to vector<32x1xf32>
    %cst_16 = arith.constant 3.200000e+01 : f32
    %35 = vector.broadcast %cst_16 : f32 to vector<32x1xf32>
    %36 = arith.divf %34, %35 : vector<32x1xf32>
    %37 = vector.broadcast %29 : vector<32x1xf32> to vector<32x32xf32>
    %38 = arith.subf %11, %37 : vector<32x32xf32>
    %cst_17 = arith.constant 9.99999974E-6 : f32
    %39 = vector.broadcast %cst_17 : f32 to vector<32x1xf32>
    %40 = arith.addf %36, %39 : vector<32x1xf32>
    %41 = math.rsqrt %40 : vector<32x1xf32>
    %42 = vector.broadcast %41 : vector<32x1xf32> to vector<32x32xf32>
    %43 = arith.mulf %38, %42 : vector<32x32xf32>
    %44 = vector.broadcast %18 : vector<1x32xf32> to vector<32x32xf32>
    %45 = arith.mulf %43, %44 : vector<32x32xf32>
    %46 = vector.broadcast %19 : vector<1x32xf32> to vector<32x32xf32>
    %47 = arith.addf %45, %46 : vector<32x32xf32>
    %c0_18 = arith.constant 0 : index
    %c0_19 = arith.constant 0 : index
    %c0_20 = arith.constant 0 : index
    %48 = vector.load %arg5[%c0_18, %c0_19, %c0_20] : memref<2x32x96xf32, #tpu.memory_space<vmem>>, vector<1x32x96xf32>
    %49 = vector.shape_cast %48 : vector<1x32x96xf32> to vector<32x96xf32>
    %cst_21 = arith.constant dense<0.000000e+00> : vector<32x96xf32>
    %50 = tpu.matmul %47, %49, %cst_21 {dimension_numbers = #tpu.dot_dimension_numbers<[1], [0], [0], [1], [0, 0, 1, 1], [], []>} : vector<32x32xf32>, vector<32x96xf32>, vector<32x96xf32> -> vector<32x96xf32>
    %51 = vector.broadcast %22 : vector<1x96xf32> to vector<32x96xf32>
    %52 = arith.addf %50, %51 : vector<32x96xf32>
    %53 = vector.extract_strided_slice %52 {offsets = [0, 0], sizes = [32, 32], strides = [1, 1]} : vector<32x96xf32> to vector<32x32xf32>
    %54 = vector.shape_cast %53 : vector<32x32xf32> to vector<2x16x32xf32>
    %55 = vector.extract_strided_slice %52 {offsets = [0, 32], sizes = [32, 32], strides = [1, 1]} : vector<32x96xf32> to vector<32x32xf32>
    %56 = vector.shape_cast %55 : vector<32x32xf32> to vector<2x16x32xf32>
    %57 = vector.extract_strided_slice %52 {offsets = [0, 64], sizes = [32, 32], strides = [1, 1]} : vector<32x96xf32> to vector<32x32xf32>
    %58 = vector.shape_cast %57 : vector<32x32xf32> to vector<2x16x32xf32>
    %cst_22 = arith.constant 0.000000e+00 : f32
    %59 = vector.broadcast %cst_22 : f32 to vector<32x32xf32>
    %60 = vector.extract_strided_slice %54 {offsets = [0, 0, 0], sizes = [2, 16, 8], strides = [1, 1, 1]} : vector<2x16x32xf32> to vector<2x16x8xf32>
    %61 = vector.extract_strided_slice %56 {offsets = [0, 0, 0], sizes = [2, 16, 8], strides = [1, 1, 1]} : vector<2x16x32xf32> to vector<2x16x8xf32>
    %62 = vector.extract_strided_slice %58 {offsets = [0, 0, 0], sizes = [2, 16, 8], strides = [1, 1, 1]} : vector<2x16x32xf32> to vector<2x16x8xf32>
    "tpu.trace_start"() <{level = 10 : i32, message = "bqd,bkd->bqk"}> : () -> ()
    %cst_23 = arith.constant dense<0.000000e+00> : vector<2x16x16xf32>
    %63 = tpu.matmul %60, %61, %cst_23 {dimension_numbers = #tpu.dot_dimension_numbers<[2], [2], [1], [1], [0, 0, 0, 1, 1, 1], [0], [0]>} : vector<2x16x8xf32>, vector<2x16x8xf32>, vector<2x16x16xf32> -> vector<2x16x16xf32>
    "tpu.trace_stop"() : () -> ()
    %cst_24 = arith.constant 0.353553385 : f32
    %64 = vector.broadcast %cst_24 : f32 to vector<2x16x16xf32>
    %65 = arith.mulf %63, %64 : vector<2x16x16xf32>
    %66 = vector.broadcast %15 : vector<2x1x16xf32> to vector<2x16x16xf32>
    %67 = arith.addf %65, %66 : vector<2x16x16xf32>
    %cst_25 = arith.constant dense<0xFF800000> : vector<2x16xf32>
    %68 = vector.multi_reduction <maximumf>, %67, %cst_25 [2] : vector<2x16x16xf32> to vector<2x16xf32>
    %69 = vector.shape_cast %68 : vector<2x16xf32> to vector<2x16x1xf32>
    %70 = vector.broadcast %69 : vector<2x16x1xf32> to vector<2x16x16xf32>
    %71 = arith.subf %67, %70 : vector<2x16x16xf32>
    %72 = math.exp %71 : vector<2x16x16xf32>
    %cst_26 = arith.constant dense<0.000000e+00> : vector<2x16xf32>
    %73 = vector.multi_reduction <add>, %72, %cst_26 [2] : vector<2x16x16xf32> to vector<2x16xf32>
    %74 = vector.shape_cast %73 : vector<2x16xf32> to vector<2x16x1xf32>
    %75 = tpu.reciprocal %74 {approx = true} : vector<2x16x1xf32> -> vector<2x16x1xf32>
    %76 = vector.broadcast %75 : vector<2x16x1xf32> to vector<2x16x16xf32>
    %77 = arith.mulf %72, %76 : vector<2x16x16xf32>
    "tpu.trace_start"() <{level = 10 : i32, message = "bqk,bkd->bqd"}> : () -> ()
    %cst_27 = arith.constant dense<0.000000e+00> : vector<2x16x8xf32>
    %78 = tpu.matmul %77, %62, %cst_27 {dimension_numbers = #tpu.dot_dimension_numbers<[2], [1], [1], [2], [0, 0, 0, 1, 1, 2], [0], [0]>} : vector<2x16x16xf32>, vector<2x16x8xf32>, vector<2x16x8xf32> -> vector<2x16x8xf32>
    "tpu.trace_stop"() : () -> ()
    %79 = vector.shape_cast %78 : vector<2x16x8xf32> to vector<32x8xf32>
    %c0_28 = arith.constant 0 : index
    %c0_29 = arith.constant 0 : index
    %c0_30 = arith.constant 0 : index
    %80 = vector.load %arg6[%c0_28, %c0_29, %c0_30] : memref<2x32x32xf32, #tpu.memory_space<vmem>>, vector<1x8x32xf32>
    %81 = vector.shape_cast %80 : vector<1x8x32xf32> to vector<8x32xf32>
    %cst_31 = arith.constant dense<0.000000e+00> : vector<32x32xf32>
    %82 = tpu.matmul %79, %81, %cst_31 {dimension_numbers = #tpu.dot_dimension_numbers<[1], [0], [0], [1], [0, 0, 1, 1], [], []>} : vector<32x8xf32>, vector<8x32xf32>, vector<32x32xf32> -> vector<32x32xf32>
    %83 = arith.addf %59, %82 : vector<32x32xf32>
    %84 = vector.extract_strided_slice %54 {offsets = [0, 0, 8], sizes = [2, 16, 8], strides = [1, 1, 1]} : vector<2x16x32xf32> to vector<2x16x8xf32>
    %85 = vector.extract_strided_slice %56 {offsets = [0, 0, 8], sizes = [2, 16, 8], strides = [1, 1, 1]} : vector<2x16x32xf32> to vector<2x16x8xf32>
    %86 = vector.extract_strided_slice %58 {offsets = [0, 0, 8], sizes = [2, 16, 8], strides = [1, 1, 1]} : vector<2x16x32xf32> to vector<2x16x8xf32>
    "tpu.trace_start"() <{level = 10 : i32, message = "bqd,bkd->bqk"}> : () -> ()
    %cst_32 = arith.constant dense<0.000000e+00> : vector<2x16x16xf32>
    %87 = tpu.matmul %84, %85, %cst_32 {dimension_numbers = #tpu.dot_dimension_numbers<[2], [2], [1], [1], [0, 0, 0, 1, 1, 1], [0], [0]>} : vector<2x16x8xf32>, vector<2x16x8xf32>, vector<2x16x16xf32> -> vector<2x16x16xf32>
    "tpu.trace_stop"() : () -> ()
    %cst_33 = arith.constant 0.353553385 : f32
    %88 = vector.broadcast %cst_33 : f32 to vector<2x16x16xf32>
    %89 = arith.mulf %87, %88 : vector<2x16x16xf32>
    %90 = vector.broadcast %15 : vector<2x1x16xf32> to vector<2x16x16xf32>
    %91 = arith.addf %89, %90 : vector<2x16x16xf32>
    %cst_34 = arith.constant dense<0xFF800000> : vector<2x16xf32>
    %92 = vector.multi_reduction <maximumf>, %91, %cst_34 [2] : vector<2x16x16xf32> to vector<2x16xf32>
    %93 = vector.shape_cast %92 : vector<2x16xf32> to vector<2x16x1xf32>
    %94 = vector.broadcast %93 : vector<2x16x1xf32> to vector<2x16x16xf32>
    %95 = arith.subf %91, %94 : vector<2x16x16xf32>
    %96 = math.exp %95 : vector<2x16x16xf32>
    %cst_35 = arith.constant dense<0.000000e+00> : vector<2x16xf32>
    %97 = vector.multi_reduction <add>, %96, %cst_35 [2] : vector<2x16x16xf32> to vector<2x16xf32>
    %98 = vector.shape_cast %97 : vector<2x16xf32> to vector<2x16x1xf32>
    %99 = tpu.reciprocal %98 {approx = true} : vector<2x16x1xf32> -> vector<2x16x1xf32>
    %100 = vector.broadcast %99 : vector<2x16x1xf32> to vector<2x16x16xf32>
    %101 = arith.mulf %96, %100 : vector<2x16x16xf32>
    "tpu.trace_start"() <{level = 10 : i32, message = "bqk,bkd->bqd"}> : () -> ()
    %cst_36 = arith.constant dense<0.000000e+00> : vector<2x16x8xf32>
    %102 = tpu.matmul %101, %86, %cst_36 {dimension_numbers = #tpu.dot_dimension_numbers<[2], [1], [1], [2], [0, 0, 0, 1, 1, 2], [0], [0]>} : vector<2x16x16xf32>, vector<2x16x8xf32>, vector<2x16x8xf32> -> vector<2x16x8xf32>
    "tpu.trace_stop"() : () -> ()
    %103 = vector.shape_cast %102 : vector<2x16x8xf32> to vector<32x8xf32>
    %c0_37 = arith.constant 0 : index
    %c8 = arith.constant 8 : index
    %c0_38 = arith.constant 0 : index
    %104 = vector.load %arg6[%c0_37, %c8, %c0_38] : memref<2x32x32xf32, #tpu.memory_space<vmem>>, vector<1x8x32xf32>
    %105 = vector.shape_cast %104 : vector<1x8x32xf32> to vector<8x32xf32>
    %cst_39 = arith.constant dense<0.000000e+00> : vector<32x32xf32>
    %106 = tpu.matmul %103, %105, %cst_39 {dimension_numbers = #tpu.dot_dimension_numbers<[1], [0], [0], [1], [0, 0, 1, 1], [], []>} : vector<32x8xf32>, vector<8x32xf32>, vector<32x32xf32> -> vector<32x32xf32>
    %107 = arith.addf %83, %106 : vector<32x32xf32>
    %108 = vector.extract_strided_slice %54 {offsets = [0, 0, 16], sizes = [2, 16, 8], strides = [1, 1, 1]} : vector<2x16x32xf32> to vector<2x16x8xf32>
    %109 = vector.extract_strided_slice %56 {offsets = [0, 0, 16], sizes = [2, 16, 8], strides = [1, 1, 1]} : vector<2x16x32xf32> to vector<2x16x8xf32>
    %110 = vector.extract_strided_slice %58 {offsets = [0, 0, 16], sizes = [2, 16, 8], strides = [1, 1, 1]} : vector<2x16x32xf32> to vector<2x16x8xf32>
    "tpu.trace_start"() <{level = 10 : i32, message = "bqd,bkd->bqk"}> : () -> ()
    %cst_40 = arith.constant dense<0.000000e+00> : vector<2x16x16xf32>
    %111 = tpu.matmul %108, %109, %cst_40 {dimension_numbers = #tpu.dot_dimension_numbers<[2], [2], [1], [1], [0, 0, 0, 1, 1, 1], [0], [0]>} : vector<2x16x8xf32>, vector<2x16x8xf32>, vector<2x16x16xf32> -> vector<2x16x16xf32>
    "tpu.trace_stop"() : () -> ()
    %cst_41 = arith.constant 0.353553385 : f32
    %112 = vector.broadcast %cst_41 : f32 to vector<2x16x16xf32>
    %113 = arith.mulf %111, %112 : vector<2x16x16xf32>
    %114 = vector.broadcast %15 : vector<2x1x16xf32> to vector<2x16x16xf32>
    %115 = arith.addf %113, %114 : vector<2x16x16xf32>
    %cst_42 = arith.constant dense<0xFF800000> : vector<2x16xf32>
    %116 = vector.multi_reduction <maximumf>, %115, %cst_42 [2] : vector<2x16x16xf32> to vector<2x16xf32>
    %117 = vector.shape_cast %116 : vector<2x16xf32> to vector<2x16x1xf32>
    %118 = vector.broadcast %117 : vector<2x16x1xf32> to vector<2x16x16xf32>
    %119 = arith.subf %115, %118 : vector<2x16x16xf32>
    %120 = math.exp %119 : vector<2x16x16xf32>
    %cst_43 = arith.constant dense<0.000000e+00> : vector<2x16xf32>
    %121 = vector.multi_reduction <add>, %120, %cst_43 [2] : vector<2x16x16xf32> to vector<2x16xf32>
    %122 = vector.shape_cast %121 : vector<2x16xf32> to vector<2x16x1xf32>
    %123 = tpu.reciprocal %122 {approx = true} : vector<2x16x1xf32> -> vector<2x16x1xf32>
    %124 = vector.broadcast %123 : vector<2x16x1xf32> to vector<2x16x16xf32>
    %125 = arith.mulf %120, %124 : vector<2x16x16xf32>
    "tpu.trace_start"() <{level = 10 : i32, message = "bqk,bkd->bqd"}> : () -> ()
    %cst_44 = arith.constant dense<0.000000e+00> : vector<2x16x8xf32>
    %126 = tpu.matmul %125, %110, %cst_44 {dimension_numbers = #tpu.dot_dimension_numbers<[2], [1], [1], [2], [0, 0, 0, 1, 1, 2], [0], [0]>} : vector<2x16x16xf32>, vector<2x16x8xf32>, vector<2x16x8xf32> -> vector<2x16x8xf32>
    "tpu.trace_stop"() : () -> ()
    %127 = vector.shape_cast %126 : vector<2x16x8xf32> to vector<32x8xf32>
    %c0_45 = arith.constant 0 : index
    %c16 = arith.constant 16 : index
    %c0_46 = arith.constant 0 : index
    %128 = vector.load %arg6[%c0_45, %c16, %c0_46] : memref<2x32x32xf32, #tpu.memory_space<vmem>>, vector<1x8x32xf32>
    %129 = vector.shape_cast %128 : vector<1x8x32xf32> to vector<8x32xf32>
    %cst_47 = arith.constant dense<0.000000e+00> : vector<32x32xf32>
    %130 = tpu.matmul %127, %129, %cst_47 {dimension_numbers = #tpu.dot_dimension_numbers<[1], [0], [0], [1], [0, 0, 1, 1], [], []>} : vector<32x8xf32>, vector<8x32xf32>, vector<32x32xf32> -> vector<32x32xf32>
    %131 = arith.addf %107, %130 : vector<32x32xf32>
    %132 = vector.extract_strided_slice %54 {offsets = [0, 0, 24], sizes = [2, 16, 8], strides = [1, 1, 1]} : vector<2x16x32xf32> to vector<2x16x8xf32>
    %133 = vector.extract_strided_slice %56 {offsets = [0, 0, 24], sizes = [2, 16, 8], strides = [1, 1, 1]} : vector<2x16x32xf32> to vector<2x16x8xf32>
    %134 = vector.extract_strided_slice %58 {offsets = [0, 0, 24], sizes = [2, 16, 8], strides = [1, 1, 1]} : vector<2x16x32xf32> to vector<2x16x8xf32>
    "tpu.trace_start"() <{level = 10 : i32, message = "bqd,bkd->bqk"}> : () -> ()
    %cst_48 = arith.constant dense<0.000000e+00> : vector<2x16x16xf32>
    %135 = tpu.matmul %132, %133, %cst_48 {dimension_numbers = #tpu.dot_dimension_numbers<[2], [2], [1], [1], [0, 0, 0, 1, 1, 1], [0], [0]>} : vector<2x16x8xf32>, vector<2x16x8xf32>, vector<2x16x16xf32> -> vector<2x16x16xf32>
    "tpu.trace_stop"() : () -> ()
    %cst_49 = arith.constant 0.353553385 : f32
    %136 = vector.broadcast %cst_49 : f32 to vector<2x16x16xf32>
    %137 = arith.mulf %135, %136 : vector<2x16x16xf32>
    %138 = vector.broadcast %15 : vector<2x1x16xf32> to vector<2x16x16xf32>
    %139 = arith.addf %137, %138 : vector<2x16x16xf32>
    %cst_50 = arith.constant dense<0xFF800000> : vector<2x16xf32>
    %140 = vector.multi_reduction <maximumf>, %139, %cst_50 [2] : vector<2x16x16xf32> to vector<2x16xf32>
    %141 = vector.shape_cast %140 : vector<2x16xf32> to vector<2x16x1xf32>
    %142 = vector.broadcast %141 : vector<2x16x1xf32> to vector<2x16x16xf32>
    %143 = arith.subf %139, %142 : vector<2x16x16xf32>
    %144 = math.exp %143 : vector<2x16x16xf32>
    %cst_51 = arith.constant dense<0.000000e+00> : vector<2x16xf32>
    %145 = vector.multi_reduction <add>, %144, %cst_51 [2] : vector<2x16x16xf32> to vector<2x16xf32>
    %146 = vector.shape_cast %145 : vector<2x16xf32> to vector<2x16x1xf32>
    %147 = tpu.reciprocal %146 {approx = true} : vector<2x16x1xf32> -> vector<2x16x1xf32>
    %148 = vector.broadcast %147 : vector<2x16x1xf32> to vector<2x16x16xf32>
    %149 = arith.mulf %144, %148 : vector<2x16x16xf32>
    "tpu.trace_start"() <{level = 10 : i32, message = "bqk,bkd->bqd"}> : () -> ()
    %cst_52 = arith.constant dense<0.000000e+00> : vector<2x16x8xf32>
    %150 = tpu.matmul %149, %134, %cst_52 {dimension_numbers = #tpu.dot_dimension_numbers<[2], [1], [1], [2], [0, 0, 0, 1, 1, 2], [0], [0]>} : vector<2x16x16xf32>, vector<2x16x8xf32>, vector<2x16x8xf32> -> vector<2x16x8xf32>
    "tpu.trace_stop"() : () -> ()
    %151 = vector.shape_cast %150 : vector<2x16x8xf32> to vector<32x8xf32>
    %c0_53 = arith.constant 0 : index
    %c24 = arith.constant 24 : index
    %c0_54 = arith.constant 0 : index
    %152 = vector.load %arg6[%c0_53, %c24, %c0_54] : memref<2x32x32xf32, #tpu.memory_space<vmem>>, vector<1x8x32xf32>
    %153 = vector.shape_cast %152 : vector<1x8x32xf32> to vector<8x32xf32>
    %cst_55 = arith.constant dense<0.000000e+00> : vector<32x32xf32>
    %154 = tpu.matmul %151, %153, %cst_55 {dimension_numbers = #tpu.dot_dimension_numbers<[1], [0], [0], [1], [0, 0, 1, 1], [], []>} : vector<32x8xf32>, vector<8x32xf32>, vector<32x32xf32> -> vector<32x32xf32>
    %155 = arith.addf %131, %154 : vector<32x32xf32>
    %156 = arith.addf %11, %155 : vector<32x32xf32>
    %157 = vector.broadcast %23 : vector<1x32xf32> to vector<32x32xf32>
    %158 = arith.addf %156, %157 : vector<32x32xf32>
    %cst_56 = arith.constant dense<0.000000e+00> : vector<32xf32>
    %159 = vector.multi_reduction <add>, %158, %cst_56 [1] : vector<32x32xf32> to vector<32xf32>
    %160 = vector.shape_cast %159 : vector<32xf32> to vector<32x1xf32>
    %cst_57 = arith.constant 3.200000e+01 : f32
    %161 = vector.broadcast %cst_57 : f32 to vector<32x1xf32>
    %162 = arith.divf %160, %161 : vector<32x1xf32>
    %163 = vector.broadcast %162 : vector<32x1xf32> to vector<32x32xf32>
    %164 = arith.subf %158, %163 : vector<32x32xf32>
    %165 = arith.mulf %164, %164 : vector<32x32xf32>
    %cst_58 = arith.constant dense<0.000000e+00> : vector<32xf32>
    %166 = vector.multi_reduction <add>, %165, %cst_58 [1] : vector<32x32xf32> to vector<32xf32>
    %167 = vector.shape_cast %166 : vector<32xf32> to vector<32x1xf32>
    %cst_59 = arith.constant 3.200000e+01 : f32
    %168 = vector.broadcast %cst_59 : f32 to vector<32x1xf32>
    %169 = arith.divf %167, %168 : vector<32x1xf32>
    %170 = vector.broadcast %162 : vector<32x1xf32> to vector<32x32xf32>
    %171 = arith.subf %158, %170 : vector<32x32xf32>
    %cst_60 = arith.constant 9.99999974E-6 : f32
    %172 = vector.broadcast %cst_60 : f32 to vector<32x1xf32>
    %173 = arith.addf %169, %172 : vector<32x1xf32>
    %174 = math.rsqrt %173 : vector<32x1xf32>
    %175 = vector.broadcast %174 : vector<32x1xf32> to vector<32x32xf32>
    %176 = arith.mulf %171, %175 : vector<32x32xf32>
    %177 = vector.broadcast %20 : vector<1x32xf32> to vector<32x32xf32>
    %178 = arith.mulf %176, %177 : vector<32x32xf32>
    %179 = vector.broadcast %21 : vector<1x32xf32> to vector<32x32xf32>
    %180 = arith.addf %178, %179 : vector<32x32xf32>
    %c0_61 = arith.constant 0 : index
    %c0_62 = arith.constant 0 : index
    %c0_63 = arith.constant 0 : index
    %181 = vector.load %arg7[%c0_61, %c0_62, %c0_63] : memref<2x32x64xf32, #tpu.memory_space<vmem>>, vector<1x32x64xf32>
    %182 = vector.shape_cast %181 : vector<1x32x64xf32> to vector<32x64xf32>
    %cst_64 = arith.constant dense<0.000000e+00> : vector<32x64xf32>
    %183 = tpu.matmul %180, %182, %cst_64 {dimension_numbers = #tpu.dot_dimension_numbers<[1], [0], [0], [1], [0, 0, 1, 1], [], []>} : vector<32x32xf32>, vector<32x64xf32>, vector<32x64xf32> -> vector<32x64xf32>
    %184 = vector.broadcast %24 : vector<1x64xf32> to vector<32x64xf32>
    %185 = arith.addf %183, %184 : vector<32x64xf32>
    %186 = arith.mulf %185, %185 : vector<32x64xf32>
    %187 = arith.mulf %185, %186 : vector<32x64xf32>
    %cst_65 = arith.constant 4.471500e-02 : f32
    %188 = vector.broadcast %cst_65 : f32 to vector<32x64xf32>
    %189 = arith.mulf %188, %187 : vector<32x64xf32>
    %190 = arith.addf %185, %189 : vector<32x64xf32>
    %cst_66 = arith.constant 0.797884583 : f32
    %191 = vector.broadcast %cst_66 : f32 to vector<32x64xf32>
    %192 = arith.mulf %191, %190 : vector<32x64xf32>
    %193 = math.tanh %192 : vector<32x64xf32>
    %cst_67 = arith.constant 1.000000e+00 : f32
    %194 = vector.broadcast %cst_67 : f32 to vector<32x64xf32>
    %195 = arith.addf %194, %193 : vector<32x64xf32>
    %cst_68 = arith.constant 5.000000e-01 : f32
    %196 = vector.broadcast %cst_68 : f32 to vector<32x64xf32>
    %197 = arith.mulf %196, %195 : vector<32x64xf32>
    %198 = arith.mulf %185, %197 : vector<32x64xf32>
    %c0_69 = arith.constant 0 : index
    %c0_70 = arith.constant 0 : index
    %c0_71 = arith.constant 0 : index
    %199 = vector.load %arg8[%c0_69, %c0_70, %c0_71] : memref<2x64x32xf32, #tpu.memory_space<vmem>>, vector<1x64x32xf32>
    %200 = vector.shape_cast %199 : vector<1x64x32xf32> to vector<64x32xf32>
    %cst_72 = arith.constant dense<0.000000e+00> : vector<32x32xf32>
    %201 = tpu.matmul %198, %200, %cst_72 {dimension_numbers = #tpu.dot_dimension_numbers<[1], [0], [0], [1], [0, 0, 1, 1], [], []>} : vector<32x64xf32>, vector<64x32xf32>, vector<32x32xf32> -> vector<32x32xf32>
    %202 = vector.broadcast %25 : vector<1x32xf32> to vector<32x32xf32>
    %203 = arith.addf %201, %202 : vector<32x32xf32>
    %204 = arith.addf %158, %203 : vector<32x32xf32>
    %c1_73 = arith.constant 1 : index
    %c0_74 = arith.constant 0 : index
    %c0_75 = arith.constant 0 : index
    %205 = vector.load %arg9[%c1_73, %c0_74, %c0_75] : memref<2x8x96xf32, #tpu.memory_space<vmem>>, vector<1x8x96xf32>
    %206 = vector.shape_cast %205 : vector<1x8x96xf32> to vector<8x96xf32>
    %207 = vector.extract_strided_slice %206 {offsets = [0, 0], sizes = [1, 32], strides = [1, 1]} : vector<8x96xf32> to vector<1x32xf32>
    %208 = vector.extract_strided_slice %206 {offsets = [1, 0], sizes = [1, 32], strides = [1, 1]} : vector<8x96xf32> to vector<1x32xf32>
    %209 = vector.extract_strided_slice %206 {offsets = [2, 0], sizes = [1, 32], strides = [1, 1]} : vector<8x96xf32> to vector<1x32xf32>
    %210 = vector.extract_strided_slice %206 {offsets = [3, 0], sizes = [1, 32], strides = [1, 1]} : vector<8x96xf32> to vector<1x32xf32>
    %211 = vector.extract_strided_slice %206 {offsets = [4, 0], sizes = [1, 96], strides = [1, 1]} : vector<8x96xf32> to vector<1x96xf32>
    %212 = vector.extract_strided_slice %206 {offsets = [5, 0], sizes = [1, 32], strides = [1, 1]} : vector<8x96xf32> to vector<1x32xf32>
    %213 = vector.extract_strided_slice %206 {offsets = [6, 0], sizes = [1, 64], strides = [1, 1]} : vector<8x96xf32> to vector<1x64xf32>
    %214 = vector.extract_strided_slice %206 {offsets = [7, 0], sizes = [1, 32], strides = [1, 1]} : vector<8x96xf32> to vector<1x32xf32>
    %cst_76 = arith.constant dense<0.000000e+00> : vector<32xf32>
    %215 = vector.multi_reduction <add>, %204, %cst_76 [1] : vector<32x32xf32> to vector<32xf32>
    %216 = vector.shape_cast %215 : vector<32xf32> to vector<32x1xf32>
    %cst_77 = arith.constant 3.200000e+01 : f32
    %217 = vector.broadcast %cst_77 : f32 to vector<32x1xf32>
    %218 = arith.divf %216, %217 : vector<32x1xf32>
    %219 = vector.broadcast %218 : vector<32x1xf32> to vector<32x32xf32>
    %220 = arith.subf %204, %219 : vector<32x32xf32>
    %221 = arith.mulf %220, %220 : vector<32x32xf32>
    %cst_78 = arith.constant dense<0.000000e+00> : vector<32xf32>
    %222 = vector.multi_reduction <add>, %221, %cst_78 [1] : vector<32x32xf32> to vector<32xf32>
    %223 = vector.shape_cast %222 : vector<32xf32> to vector<32x1xf32>
    %cst_79 = arith.constant 3.200000e+01 : f32
    %224 = vector.broadcast %cst_79 : f32 to vector<32x1xf32>
    %225 = arith.divf %223, %224 : vector<32x1xf32>
    %226 = vector.broadcast %218 : vector<32x1xf32> to vector<32x32xf32>
    %227 = arith.subf %204, %226 : vector<32x32xf32>
    %cst_80 = arith.constant 9.99999974E-6 : f32
    %228 = vector.broadcast %cst_80 : f32 to vector<32x1xf32>
    %229 = arith.addf %225, %228 : vector<32x1xf32>
    %230 = math.rsqrt %229 : vector<32x1xf32>
    %231 = vector.broadcast %230 : vector<32x1xf32> to vector<32x32xf32>
    %232 = arith.mulf %227, %231 : vector<32x32xf32>
    %233 = vector.broadcast %207 : vector<1x32xf32> to vector<32x32xf32>
    %234 = arith.mulf %232, %233 : vector<32x32xf32>
    %235 = vector.broadcast %208 : vector<1x32xf32> to vector<32x32xf32>
    %236 = arith.addf %234, %235 : vector<32x32xf32>
    %c1_81 = arith.constant 1 : index
    %c0_82 = arith.constant 0 : index
    %c0_83 = arith.constant 0 : index
    %237 = vector.load %arg5[%c1_81, %c0_82, %c0_83] : memref<2x32x96xf32, #tpu.memory_space<vmem>>, vector<1x32x96xf32>
    %238 = vector.shape_cast %237 : vector<1x32x96xf32> to vector<32x96xf32>
    %cst_84 = arith.constant dense<0.000000e+00> : vector<32x96xf32>
    %239 = tpu.matmul %236, %238, %cst_84 {dimension_numbers = #tpu.dot_dimension_numbers<[1], [0], [0], [1], [0, 0, 1, 1], [], []>} : vector<32x32xf32>, vector<32x96xf32>, vector<32x96xf32> -> vector<32x96xf32>
    %240 = vector.broadcast %211 : vector<1x96xf32> to vector<32x96xf32>
    %241 = arith.addf %239, %240 : vector<32x96xf32>
    %242 = vector.extract_strided_slice %241 {offsets = [0, 0], sizes = [32, 32], strides = [1, 1]} : vector<32x96xf32> to vector<32x32xf32>
    %243 = vector.shape_cast %242 : vector<32x32xf32> to vector<2x16x32xf32>
    %244 = vector.extract_strided_slice %241 {offsets = [0, 32], sizes = [32, 32], strides = [1, 1]} : vector<32x96xf32> to vector<32x32xf32>
    %245 = vector.shape_cast %244 : vector<32x32xf32> to vector<2x16x32xf32>
    %246 = vector.extract_strided_slice %241 {offsets = [0, 64], sizes = [32, 32], strides = [1, 1]} : vector<32x96xf32> to vector<32x32xf32>
    %247 = vector.shape_cast %246 : vector<32x32xf32> to vector<2x16x32xf32>
    %cst_85 = arith.constant 0.000000e+00 : f32
    %248 = vector.broadcast %cst_85 : f32 to vector<32x32xf32>
    %249 = vector.extract_strided_slice %243 {offsets = [0, 0, 0], sizes = [2, 16, 8], strides = [1, 1, 1]} : vector<2x16x32xf32> to vector<2x16x8xf32>
    %250 = vector.extract_strided_slice %245 {offsets = [0, 0, 0], sizes = [2, 16, 8], strides = [1, 1, 1]} : vector<2x16x32xf32> to vector<2x16x8xf32>
    %251 = vector.extract_strided_slice %247 {offsets = [0, 0, 0], sizes = [2, 16, 8], strides = [1, 1, 1]} : vector<2x16x32xf32> to vector<2x16x8xf32>
    "tpu.trace_start"() <{level = 10 : i32, message = "bqd,bkd->bqk"}> : () -> ()
    %cst_86 = arith.constant dense<0.000000e+00> : vector<2x16x16xf32>
    %252 = tpu.matmul %249, %250, %cst_86 {dimension_numbers = #tpu.dot_dimension_numbers<[2], [2], [1], [1], [0, 0, 0, 1, 1, 1], [0], [0]>} : vector<2x16x8xf32>, vector<2x16x8xf32>, vector<2x16x16xf32> -> vector<2x16x16xf32>
    "tpu.trace_stop"() : () -> ()
    %cst_87 = arith.constant 0.353553385 : f32
    %253 = vector.broadcast %cst_87 : f32 to vector<2x16x16xf32>
    %254 = arith.mulf %252, %253 : vector<2x16x16xf32>
    %255 = vector.broadcast %15 : vector<2x1x16xf32> to vector<2x16x16xf32>
    %256 = arith.addf %254, %255 : vector<2x16x16xf32>
    %cst_88 = arith.constant dense<0xFF800000> : vector<2x16xf32>
    %257 = vector.multi_reduction <maximumf>, %256, %cst_88 [2] : vector<2x16x16xf32> to vector<2x16xf32>
    %258 = vector.shape_cast %257 : vector<2x16xf32> to vector<2x16x1xf32>
    %259 = vector.broadcast %258 : vector<2x16x1xf32> to vector<2x16x16xf32>
    %260 = arith.subf %256, %259 : vector<2x16x16xf32>
    %261 = math.exp %260 : vector<2x16x16xf32>
    %cst_89 = arith.constant dense<0.000000e+00> : vector<2x16xf32>
    %262 = vector.multi_reduction <add>, %261, %cst_89 [2] : vector<2x16x16xf32> to vector<2x16xf32>
    %263 = vector.shape_cast %262 : vector<2x16xf32> to vector<2x16x1xf32>
    %264 = tpu.reciprocal %263 {approx = true} : vector<2x16x1xf32> -> vector<2x16x1xf32>
    %265 = vector.broadcast %264 : vector<2x16x1xf32> to vector<2x16x16xf32>
    %266 = arith.mulf %261, %265 : vector<2x16x16xf32>
    "tpu.trace_start"() <{level = 10 : i32, message = "bqk,bkd->bqd"}> : () -> ()
    %cst_90 = arith.constant dense<0.000000e+00> : vector<2x16x8xf32>
    %267 = tpu.matmul %266, %251, %cst_90 {dimension_numbers = #tpu.dot_dimension_numbers<[2], [1], [1], [2], [0, 0, 0, 1, 1, 2], [0], [0]>} : vector<2x16x16xf32>, vector<2x16x8xf32>, vector<2x16x8xf32> -> vector<2x16x8xf32>
    "tpu.trace_stop"() : () -> ()
    %268 = vector.shape_cast %267 : vector<2x16x8xf32> to vector<32x8xf32>
    %c1_91 = arith.constant 1 : index
    %c0_92 = arith.constant 0 : index
    %c0_93 = arith.constant 0 : index
    %269 = vector.load %arg6[%c1_91, %c0_92, %c0_93] : memref<2x32x32xf32, #tpu.memory_space<vmem>>, vector<1x8x32xf32>
    %270 = vector.shape_cast %269 : vector<1x8x32xf32> to vector<8x32xf32>
    %cst_94 = arith.constant dense<0.000000e+00> : vector<32x32xf32>
    %271 = tpu.matmul %268, %270, %cst_94 {dimension_numbers = #tpu.dot_dimension_numbers<[1], [0], [0], [1], [0, 0, 1, 1], [], []>} : vector<32x8xf32>, vector<8x32xf32>, vector<32x32xf32> -> vector<32x32xf32>
    %272 = arith.addf %248, %271 : vector<32x32xf32>
    %273 = vector.extract_strided_slice %243 {offsets = [0, 0, 8], sizes = [2, 16, 8], strides = [1, 1, 1]} : vector<2x16x32xf32> to vector<2x16x8xf32>
    %274 = vector.extract_strided_slice %245 {offsets = [0, 0, 8], sizes = [2, 16, 8], strides = [1, 1, 1]} : vector<2x16x32xf32> to vector<2x16x8xf32>
    %275 = vector.extract_strided_slice %247 {offsets = [0, 0, 8], sizes = [2, 16, 8], strides = [1, 1, 1]} : vector<2x16x32xf32> to vector<2x16x8xf32>
    "tpu.trace_start"() <{level = 10 : i32, message = "bqd,bkd->bqk"}> : () -> ()
    %cst_95 = arith.constant dense<0.000000e+00> : vector<2x16x16xf32>
    %276 = tpu.matmul %273, %274, %cst_95 {dimension_numbers = #tpu.dot_dimension_numbers<[2], [2], [1], [1], [0, 0, 0, 1, 1, 1], [0], [0]>} : vector<2x16x8xf32>, vector<2x16x8xf32>, vector<2x16x16xf32> -> vector<2x16x16xf32>
    "tpu.trace_stop"() : () -> ()
    %cst_96 = arith.constant 0.353553385 : f32
    %277 = vector.broadcast %cst_96 : f32 to vector<2x16x16xf32>
    %278 = arith.mulf %276, %277 : vector<2x16x16xf32>
    %279 = vector.broadcast %15 : vector<2x1x16xf32> to vector<2x16x16xf32>
    %280 = arith.addf %278, %279 : vector<2x16x16xf32>
    %cst_97 = arith.constant dense<0xFF800000> : vector<2x16xf32>
    %281 = vector.multi_reduction <maximumf>, %280, %cst_97 [2] : vector<2x16x16xf32> to vector<2x16xf32>
    %282 = vector.shape_cast %281 : vector<2x16xf32> to vector<2x16x1xf32>
    %283 = vector.broadcast %282 : vector<2x16x1xf32> to vector<2x16x16xf32>
    %284 = arith.subf %280, %283 : vector<2x16x16xf32>
    %285 = math.exp %284 : vector<2x16x16xf32>
    %cst_98 = arith.constant dense<0.000000e+00> : vector<2x16xf32>
    %286 = vector.multi_reduction <add>, %285, %cst_98 [2] : vector<2x16x16xf32> to vector<2x16xf32>
    %287 = vector.shape_cast %286 : vector<2x16xf32> to vector<2x16x1xf32>
    %288 = tpu.reciprocal %287 {approx = true} : vector<2x16x1xf32> -> vector<2x16x1xf32>
    %289 = vector.broadcast %288 : vector<2x16x1xf32> to vector<2x16x16xf32>
    %290 = arith.mulf %285, %289 : vector<2x16x16xf32>
    "tpu.trace_start"() <{level = 10 : i32, message = "bqk,bkd->bqd"}> : () -> ()
    %cst_99 = arith.constant dense<0.000000e+00> : vector<2x16x8xf32>
    %291 = tpu.matmul %290, %275, %cst_99 {dimension_numbers = #tpu.dot_dimension_numbers<[2], [1], [1], [2], [0, 0, 0, 1, 1, 2], [0], [0]>} : vector<2x16x16xf32>, vector<2x16x8xf32>, vector<2x16x8xf32> -> vector<2x16x8xf32>
    "tpu.trace_stop"() : () -> ()
    %292 = vector.shape_cast %291 : vector<2x16x8xf32> to vector<32x8xf32>
    %c1_100 = arith.constant 1 : index
    %c8_101 = arith.constant 8 : index
    %c0_102 = arith.constant 0 : index
    %293 = vector.load %arg6[%c1_100, %c8_101, %c0_102] : memref<2x32x32xf32, #tpu.memory_space<vmem>>, vector<1x8x32xf32>
    %294 = vector.shape_cast %293 : vector<1x8x32xf32> to vector<8x32xf32>
    %cst_103 = arith.constant dense<0.000000e+00> : vector<32x32xf32>
    %295 = tpu.matmul %292, %294, %cst_103 {dimension_numbers = #tpu.dot_dimension_numbers<[1], [0], [0], [1], [0, 0, 1, 1], [], []>} : vector<32x8xf32>, vector<8x32xf32>, vector<32x32xf32> -> vector<32x32xf32>
    %296 = arith.addf %272, %295 : vector<32x32xf32>
    %297 = vector.extract_strided_slice %243 {offsets = [0, 0, 16], sizes = [2, 16, 8], strides = [1, 1, 1]} : vector<2x16x32xf32> to vector<2x16x8xf32>
    %298 = vector.extract_strided_slice %245 {offsets = [0, 0, 16], sizes = [2, 16, 8], strides = [1, 1, 1]} : vector<2x16x32xf32> to vector<2x16x8xf32>
    %299 = vector.extract_strided_slice %247 {offsets = [0, 0, 16], sizes = [2, 16, 8], strides = [1, 1, 1]} : vector<2x16x32xf32> to vector<2x16x8xf32>
    "tpu.trace_start"() <{level = 10 : i32, message = "bqd,bkd->bqk"}> : () -> ()
    %cst_104 = arith.constant dense<0.000000e+00> : vector<2x16x16xf32>
    %300 = tpu.matmul %297, %298, %cst_104 {dimension_numbers = #tpu.dot_dimension_numbers<[2], [2], [1], [1], [0, 0, 0, 1, 1, 1], [0], [0]>} : vector<2x16x8xf32>, vector<2x16x8xf32>, vector<2x16x16xf32> -> vector<2x16x16xf32>
    "tpu.trace_stop"() : () -> ()
    %cst_105 = arith.constant 0.353553385 : f32
    %301 = vector.broadcast %cst_105 : f32 to vector<2x16x16xf32>
    %302 = arith.mulf %300, %301 : vector<2x16x16xf32>
    %303 = vector.broadcast %15 : vector<2x1x16xf32> to vector<2x16x16xf32>
    %304 = arith.addf %302, %303 : vector<2x16x16xf32>
    %cst_106 = arith.constant dense<0xFF800000> : vector<2x16xf32>
    %305 = vector.multi_reduction <maximumf>, %304, %cst_106 [2] : vector<2x16x16xf32> to vector<2x16xf32>
    %306 = vector.shape_cast %305 : vector<2x16xf32> to vector<2x16x1xf32>
    %307 = vector.broadcast %306 : vector<2x16x1xf32> to vector<2x16x16xf32>
    %308 = arith.subf %304, %307 : vector<2x16x16xf32>
    %309 = math.exp %308 : vector<2x16x16xf32>
    %cst_107 = arith.constant dense<0.000000e+00> : vector<2x16xf32>
    %310 = vector.multi_reduction <add>, %309, %cst_107 [2] : vector<2x16x16xf32> to vector<2x16xf32>
    %311 = vector.shape_cast %310 : vector<2x16xf32> to vector<2x16x1xf32>
    %312 = tpu.reciprocal %311 {approx = true} : vector<2x16x1xf32> -> vector<2x16x1xf32>
    %313 = vector.broadcast %312 : vector<2x16x1xf32> to vector<2x16x16xf32>
    %314 = arith.mulf %309, %313 : vector<2x16x16xf32>
    "tpu.trace_start"() <{level = 10 : i32, message = "bqk,bkd->bqd"}> : () -> ()
    %cst_108 = arith.constant dense<0.000000e+00> : vector<2x16x8xf32>
    %315 = tpu.matmul %314, %299, %cst_108 {dimension_numbers = #tpu.dot_dimension_numbers<[2], [1], [1], [2], [0, 0, 0, 1, 1, 2], [0], [0]>} : vector<2x16x16xf32>, vector<2x16x8xf32>, vector<2x16x8xf32> -> vector<2x16x8xf32>
    "tpu.trace_stop"() : () -> ()
    %316 = vector.shape_cast %315 : vector<2x16x8xf32> to vector<32x8xf32>
    %c1_109 = arith.constant 1 : index
    %c16_110 = arith.constant 16 : index
    %c0_111 = arith.constant 0 : index
    %317 = vector.load %arg6[%c1_109, %c16_110, %c0_111] : memref<2x32x32xf32, #tpu.memory_space<vmem>>, vector<1x8x32xf32>
    %318 = vector.shape_cast %317 : vector<1x8x32xf32> to vector<8x32xf32>
    %cst_112 = arith.constant dense<0.000000e+00> : vector<32x32xf32>
    %319 = tpu.matmul %316, %318, %cst_112 {dimension_numbers = #tpu.dot_dimension_numbers<[1], [0], [0], [1], [0, 0, 1, 1], [], []>} : vector<32x8xf32>, vector<8x32xf32>, vector<32x32xf32> -> vector<32x32xf32>
    %320 = arith.addf %296, %319 : vector<32x32xf32>
    %321 = vector.extract_strided_slice %243 {offsets = [0, 0, 24], sizes = [2, 16, 8], strides = [1, 1, 1]} : vector<2x16x32xf32> to vector<2x16x8xf32>
    %322 = vector.extract_strided_slice %245 {offsets = [0, 0, 24], sizes = [2, 16, 8], strides = [1, 1, 1]} : vector<2x16x32xf32> to vector<2x16x8xf32>
    %323 = vector.extract_strided_slice %247 {offsets = [0, 0, 24], sizes = [2, 16, 8], strides = [1, 1, 1]} : vector<2x16x32xf32> to vector<2x16x8xf32>
    "tpu.trace_start"() <{level = 10 : i32, message = "bqd,bkd->bqk"}> : () -> ()
    %cst_113 = arith.constant dense<0.000000e+00> : vector<2x16x16xf32>
    %324 = tpu.matmul %321, %322, %cst_113 {dimension_numbers = #tpu.dot_dimension_numbers<[2], [2], [1], [1], [0, 0, 0, 1, 1, 1], [0], [0]>} : vector<2x16x8xf32>, vector<2x16x8xf32>, vector<2x16x16xf32> -> vector<2x16x16xf32>
    "tpu.trace_stop"() : () -> ()
    %cst_114 = arith.constant 0.353553385 : f32
    %325 = vector.broadcast %cst_114 : f32 to vector<2x16x16xf32>
    %326 = arith.mulf %324, %325 : vector<2x16x16xf32>
    %327 = vector.broadcast %15 : vector<2x1x16xf32> to vector<2x16x16xf32>
    %328 = arith.addf %326, %327 : vector<2x16x16xf32>
    %cst_115 = arith.constant dense<0xFF800000> : vector<2x16xf32>
    %329 = vector.multi_reduction <maximumf>, %328, %cst_115 [2] : vector<2x16x16xf32> to vector<2x16xf32>
    %330 = vector.shape_cast %329 : vector<2x16xf32> to vector<2x16x1xf32>
    %331 = vector.broadcast %330 : vector<2x16x1xf32> to vector<2x16x16xf32>
    %332 = arith.subf %328, %331 : vector<2x16x16xf32>
    %333 = math.exp %332 : vector<2x16x16xf32>
    %cst_116 = arith.constant dense<0.000000e+00> : vector<2x16xf32>
    %334 = vector.multi_reduction <add>, %333, %cst_116 [2] : vector<2x16x16xf32> to vector<2x16xf32>
    %335 = vector.shape_cast %334 : vector<2x16xf32> to vector<2x16x1xf32>
    %336 = tpu.reciprocal %335 {approx = true} : vector<2x16x1xf32> -> vector<2x16x1xf32>
    %337 = vector.broadcast %336 : vector<2x16x1xf32> to vector<2x16x16xf32>
    %338 = arith.mulf %333, %337 : vector<2x16x16xf32>
    "tpu.trace_start"() <{level = 10 : i32, message = "bqk,bkd->bqd"}> : () -> ()
    %cst_117 = arith.constant dense<0.000000e+00> : vector<2x16x8xf32>
    %339 = tpu.matmul %338, %323, %cst_117 {dimension_numbers = #tpu.dot_dimension_numbers<[2], [1], [1], [2], [0, 0, 0, 1, 1, 2], [0], [0]>} : vector<2x16x16xf32>, vector<2x16x8xf32>, vector<2x16x8xf32> -> vector<2x16x8xf32>
    "tpu.trace_stop"() : () -> ()
    %340 = vector.shape_cast %339 : vector<2x16x8xf32> to vector<32x8xf32>
    %c1_118 = arith.constant 1 : index
    %c24_119 = arith.constant 24 : index
    %c0_120 = arith.constant 0 : index
    %341 = vector.load %arg6[%c1_118, %c24_119, %c0_120] : memref<2x32x32xf32, #tpu.memory_space<vmem>>, vector<1x8x32xf32>
    %342 = vector.shape_cast %341 : vector<1x8x32xf32> to vector<8x32xf32>
    %cst_121 = arith.constant dense<0.000000e+00> : vector<32x32xf32>
    %343 = tpu.matmul %340, %342, %cst_121 {dimension_numbers = #tpu.dot_dimension_numbers<[1], [0], [0], [1], [0, 0, 1, 1], [], []>} : vector<32x8xf32>, vector<8x32xf32>, vector<32x32xf32> -> vector<32x32xf32>
    %344 = arith.addf %320, %343 : vector<32x32xf32>
    %345 = arith.addf %204, %344 : vector<32x32xf32>
    %346 = vector.broadcast %212 : vector<1x32xf32> to vector<32x32xf32>
    %347 = arith.addf %345, %346 : vector<32x32xf32>
    %cst_122 = arith.constant dense<0.000000e+00> : vector<32xf32>
    %348 = vector.multi_reduction <add>, %347, %cst_122 [1] : vector<32x32xf32> to vector<32xf32>
    %349 = vector.shape_cast %348 : vector<32xf32> to vector<32x1xf32>
    %cst_123 = arith.constant 3.200000e+01 : f32
    %350 = vector.broadcast %cst_123 : f32 to vector<32x1xf32>
    %351 = arith.divf %349, %350 : vector<32x1xf32>
    %352 = vector.broadcast %351 : vector<32x1xf32> to vector<32x32xf32>
    %353 = arith.subf %347, %352 : vector<32x32xf32>
    %354 = arith.mulf %353, %353 : vector<32x32xf32>
    %cst_124 = arith.constant dense<0.000000e+00> : vector<32xf32>
    %355 = vector.multi_reduction <add>, %354, %cst_124 [1] : vector<32x32xf32> to vector<32xf32>
    %356 = vector.shape_cast %355 : vector<32xf32> to vector<32x1xf32>
    %cst_125 = arith.constant 3.200000e+01 : f32
    %357 = vector.broadcast %cst_125 : f32 to vector<32x1xf32>
    %358 = arith.divf %356, %357 : vector<32x1xf32>
    %359 = vector.broadcast %351 : vector<32x1xf32> to vector<32x32xf32>
    %360 = arith.subf %347, %359 : vector<32x32xf32>
    %cst_126 = arith.constant 9.99999974E-6 : f32
    %361 = vector.broadcast %cst_126 : f32 to vector<32x1xf32>
    %362 = arith.addf %358, %361 : vector<32x1xf32>
    %363 = math.rsqrt %362 : vector<32x1xf32>
    %364 = vector.broadcast %363 : vector<32x1xf32> to vector<32x32xf32>
    %365 = arith.mulf %360, %364 : vector<32x32xf32>
    %366 = vector.broadcast %209 : vector<1x32xf32> to vector<32x32xf32>
    %367 = arith.mulf %365, %366 : vector<32x32xf32>
    %368 = vector.broadcast %210 : vector<1x32xf32> to vector<32x32xf32>
    %369 = arith.addf %367, %368 : vector<32x32xf32>
    %c1_127 = arith.constant 1 : index
    %c0_128 = arith.constant 0 : index
    %c0_129 = arith.constant 0 : index
    %370 = vector.load %arg7[%c1_127, %c0_128, %c0_129] : memref<2x32x64xf32, #tpu.memory_space<vmem>>, vector<1x32x64xf32>
    %371 = vector.shape_cast %370 : vector<1x32x64xf32> to vector<32x64xf32>
    %cst_130 = arith.constant dense<0.000000e+00> : vector<32x64xf32>
    %372 = tpu.matmul %369, %371, %cst_130 {dimension_numbers = #tpu.dot_dimension_numbers<[1], [0], [0], [1], [0, 0, 1, 1], [], []>} : vector<32x32xf32>, vector<32x64xf32>, vector<32x64xf32> -> vector<32x64xf32>
    %373 = vector.broadcast %213 : vector<1x64xf32> to vector<32x64xf32>
    %374 = arith.addf %372, %373 : vector<32x64xf32>
    %375 = arith.mulf %374, %374 : vector<32x64xf32>
    %376 = arith.mulf %374, %375 : vector<32x64xf32>
    %cst_131 = arith.constant 4.471500e-02 : f32
    %377 = vector.broadcast %cst_131 : f32 to vector<32x64xf32>
    %378 = arith.mulf %377, %376 : vector<32x64xf32>
    %379 = arith.addf %374, %378 : vector<32x64xf32>
    %cst_132 = arith.constant 0.797884583 : f32
    %380 = vector.broadcast %cst_132 : f32 to vector<32x64xf32>
    %381 = arith.mulf %380, %379 : vector<32x64xf32>
    %382 = math.tanh %381 : vector<32x64xf32>
    %cst_133 = arith.constant 1.000000e+00 : f32
    %383 = vector.broadcast %cst_133 : f32 to vector<32x64xf32>
    %384 = arith.addf %383, %382 : vector<32x64xf32>
    %cst_134 = arith.constant 5.000000e-01 : f32
    %385 = vector.broadcast %cst_134 : f32 to vector<32x64xf32>
    %386 = arith.mulf %385, %384 : vector<32x64xf32>
    %387 = arith.mulf %374, %386 : vector<32x64xf32>
    %c1_135 = arith.constant 1 : index
    %c0_136 = arith.constant 0 : index
    %c0_137 = arith.constant 0 : index
    %388 = vector.load %arg8[%c1_135, %c0_136, %c0_137] : memref<2x64x32xf32, #tpu.memory_space<vmem>>, vector<1x64x32xf32>
    %389 = vector.shape_cast %388 : vector<1x64x32xf32> to vector<64x32xf32>
    %cst_138 = arith.constant dense<0.000000e+00> : vector<32x32xf32>
    %390 = tpu.matmul %387, %389, %cst_138 {dimension_numbers = #tpu.dot_dimension_numbers<[1], [0], [0], [1], [0, 0, 1, 1], [], []>} : vector<32x64xf32>, vector<64x32xf32>, vector<32x32xf32> -> vector<32x32xf32>
    %391 = vector.broadcast %214 : vector<1x32xf32> to vector<32x32xf32>
    %392 = arith.addf %390, %391 : vector<32x32xf32>
    %393 = arith.addf %347, %392 : vector<32x32xf32>
    %c2 = arith.constant 2 : index
    %c0_139 = arith.constant 0 : index
    %394 = vector.load %arg4[%c2, %c0_139] : memref<4x32xf32, #tpu.memory_space<vmem>>, vector<1x32xf32>
    %c3 = arith.constant 3 : index
    %c0_140 = arith.constant 0 : index
    %395 = vector.load %arg4[%c3, %c0_140] : memref<4x32xf32, #tpu.memory_space<vmem>>, vector<1x32xf32>
    %cst_141 = arith.constant dense<0.000000e+00> : vector<32xf32>
    %396 = vector.multi_reduction <add>, %393, %cst_141 [1] : vector<32x32xf32> to vector<32xf32>
    %397 = vector.shape_cast %396 : vector<32xf32> to vector<32x1xf32>
    %cst_142 = arith.constant 3.200000e+01 : f32
    %398 = vector.broadcast %cst_142 : f32 to vector<32x1xf32>
    %399 = arith.divf %397, %398 : vector<32x1xf32>
    %400 = vector.broadcast %399 : vector<32x1xf32> to vector<32x32xf32>
    %401 = arith.subf %393, %400 : vector<32x32xf32>
    %402 = arith.mulf %401, %401 : vector<32x32xf32>
    %cst_143 = arith.constant dense<0.000000e+00> : vector<32xf32>
    %403 = vector.multi_reduction <add>, %402, %cst_143 [1] : vector<32x32xf32> to vector<32xf32>
    %404 = vector.shape_cast %403 : vector<32xf32> to vector<32x1xf32>
    %cst_144 = arith.constant 3.200000e+01 : f32
    %405 = vector.broadcast %cst_144 : f32 to vector<32x1xf32>
    %406 = arith.divf %404, %405 : vector<32x1xf32>
    %407 = vector.broadcast %399 : vector<32x1xf32> to vector<32x32xf32>
    %408 = arith.subf %393, %407 : vector<32x32xf32>
    %cst_145 = arith.constant 9.99999974E-6 : f32
    %409 = vector.broadcast %cst_145 : f32 to vector<32x1xf32>
    %410 = arith.addf %406, %409 : vector<32x1xf32>
    %411 = math.rsqrt %410 : vector<32x1xf32>
    %412 = vector.broadcast %411 : vector<32x1xf32> to vector<32x32xf32>
    %413 = arith.mulf %408, %412 : vector<32x32xf32>
    %414 = vector.broadcast %394 : vector<1x32xf32> to vector<32x32xf32>
    %415 = arith.mulf %413, %414 : vector<32x32xf32>
    %416 = vector.broadcast %395 : vector<1x32xf32> to vector<32x32xf32>
    %417 = arith.addf %415, %416 : vector<32x32xf32>
    %418 = vector.shape_cast %417 : vector<32x32xf32> to vector<2x16x32xf32>
    %c0_146 = arith.constant 0 : index
    %c0_147 = arith.constant 0 : index
    %c0_148 = arith.constant 0 : index
    %419 = vector.load %arg10[%c0_146, %c0_147, %c0_148] : memref<2x16x32xf32, #tpu.memory_space<vmem>>, vector<2x16x32xf32>
    tpu.vector_store %arg10[%c0_146, %c0_147, %c0_148], %418 {strides = array<i32>} : memref<2x16x32xf32, #tpu.memory_space<vmem>>, vector<2x16x32xf32>,
    return
  }
  func.func @transform_0(%arg0: i32) -> (i32, i32, i32) {
    %c0_i32 = arith.constant 0 : i32
    %c0_i32_0 = arith.constant 0 : i32
    %c0_i32_1 = arith.constant 0 : i32
    %c0_i32_2 = arith.constant 0 : i32
    return %c0_i32, %c0_i32_0, %c0_i32_1 : i32, i32, i32
  }
  func.func @transform_1(%arg0: i32) -> (i32, i32, i32) {
    %c0_i32 = arith.constant 0 : i32
    %c0_i32_0 = arith.constant 0 : i32
    %c0_i32_1 = arith.constant 0 : i32
    %c0_i32_2 = arith.constant 0 : i32
    return %c0_i32, %c0_i32_0, %c0_i32_1 : i32, i32, i32
  }
  func.func @transform_2(%arg0: i32) -> (i32, i32) {
    %c0_i32 = arith.constant 0 : i32
    %c0_i32_0 = arith.constant 0 : i32
    %c0_i32_1 = arith.constant 0 : i32
    return %c0_i32, %c0_i32_0 : i32, i32
  }
  func.func @transform_3(%arg0: i32) -> (i32, i32) {
    %c0_i32 = arith.constant 0 : i32
    %c0_i32_0 = arith.constant 0 : i32
    %c0_i32_1 = arith.constant 0 : i32
    return %c0_i32, %c0_i32_0 : i32, i32
  }
  func.func @transform_4(%arg0: i32) -> (i32, i32, i32) {
    %c0_i32 = arith.constant 0 : i32
    %c0_i32_0 = arith.constant 0 : i32
    %c0_i32_1 = arith.constant 0 : i32
    %c0_i32_2 = arith.constant 0 : i32
    return %c0_i32, %c0_i32_0, %c0_i32_1 : i32, i32, i32
  }
  func.func @transform_5(%arg0: i32) -> (i32, i32, i32) {
    %c0_i32 = arith.constant 0 : i32
    %c0_i32_0 = arith.constant 0 : i32
    %c0_i32_1 = arith.constant 0 : i32
    %c0_i32_2 = arith.constant 0 : i32
    return %c0_i32, %c0_i32_0, %c0_i32_1 : i32, i32, i32
  }
  func.func @transform_6(%arg0: i32) -> (i32, i32, i32) {
    %c0_i32 = arith.constant 0 : i32
    %c0_i32_0 = arith.constant 0 : i32
    %c0_i32_1 = arith.constant 0 : i32
    %c0_i32_2 = arith.constant 0 : i32
    return %c0_i32, %c0_i32_0, %c0_i32_1 : i32, i32, i32
  }
  func.func @transform_7(%arg0: i32) -> (i32, i32, i32) {
    %c0_i32 = arith.constant 0 : i32
    %c0_i32_0 = arith.constant 0 : i32
    %c0_i32_1 = arith.constant 0 : i32
    %c0_i32_2 = arith.constant 0 : i32
    return %c0_i32, %c0_i32_0, %c0_i32_1 : i32, i32, i32
  }
  func.func @transform_8(%arg0: i32) -> (i32, i32, i32) {
    %c0_i32 = arith.constant 0 : i32
    %c0_i32_0 = arith.constant 0 : i32
    %c0_i32_1 = arith.constant 0 : i32
    %c0_i32_2 = arith.constant 0 : i32
    return %c0_i32, %c0_i32_0, %c0_i32_1 : i32, i32, i32
  }
  func.func @transform_9(%arg0: i32) -> (i32, i32, i32) {
    %c0_i32 = arith.constant 0 : i32
    %c0_i32_0 = arith.constant 0 : i32
    %c0_i32_1 = arith.constant 0 : i32
    %c0_i32_2 = arith.constant 0 : i32
    return %c0_i32, %c0_i32_0, %c0_i32_1 : i32, i32, i32
  }
}

</mosaic_0001>

<llo_original>
// kernel: tpu_custom_call.1
$region0: #{tpu_custom_call.1}
  #allocation0 [shape = 'u32[]', space=smem, size = 0x4, offset = 0x4, fixed_abs, tag = 'smem constant byte address 0x4 - core index']
  #allocation1 [shape = 'u32[144,128]{1,0:T(1,128)}', space=vmem, size = 0x12000, scoped, tag = 'internal scratch']
  %s0 = inlined_call_operand.hbm [shape: f32[2,8,32], index: 0, kind: input, shape index: {}]
  %s1 = inlined_call_operand.hbm [shape: f32[2,8,32], index: 1, kind: input, shape index: {}]
  %s2 = inlined_call_operand.vmem [shape: f32[2,16], index: 2, kind: input, shape index: {}]
  %s3 = inlined_call_operand.hbm [shape: f32[4,32], index: 3, kind: input, shape index: {}]
  %s4 = inlined_call_operand.vmem [shape: f32[2,32,96], index: 4, kind: input, shape index: {}]
  %s5 = inlined_call_operand.vmem [shape: f32[2,32,32], index: 5, kind: input, shape index: {}]
  %s6 = inlined_call_operand.vmem [shape: f32[2,32,64], index: 6, kind: input, shape index: {}]
  %s7 = inlined_call_operand.vmem [shape: f32[2,64,32], index: 7, kind: input, shape index: {}]
  %s8 = inlined_call_operand.vmem [shape: f32[2,8,96], index: 8, kind: input, shape index: {}]
  %s9 = inlined_call_operand.hbm [shape: f32[2,16,32], index: 9, kind: output, shape index: {}]
  %s10 = sld [smem:[#allocation0]]
  $region58: #{tpu_custom_call.1} parent=0
    _
  %s12 = ssub.s32 1, %s10
  %s13 = scalar_select 0, %s12, %s10
  $region1: #{tpu_custom_call.1} parent=0
    #allocation2 [shape = 'u8[8192]{0}', space=vmem, size = 0x2000, scoped, tag = 'input window, operand 0, single buffered']
    #allocation3 [shape = 's32[1]{0}', space=sflag, size = 0x4, scoped, tag = 'scoped memory for tpu_custom_call.1']
    #allocation4 [shape = 's32[1]{0}', space=sflag, size = 0x4, scoped, tag = 'scoped memory for tpu_custom_call.1']
    #allocation5 [shape = 'u8[8192]{0}', space=vmem, size = 0x2000, scoped, tag = 'input window, operand 1, single buffered']
    #allocation6 [shape = 's32[1]{0}', space=sflag, size = 0x4, scoped, tag = 'scoped memory for tpu_custom_call.1']
    #allocation7 [shape = 'u8[2048]{0}', space=vmem, size = 0x800, scoped, tag = 'input window, operand 3, single buffered']
    #allocation8 [shape = 'u8[16384]{0}', space=vmem, size = 0x4000, scoped, tag = 'output window, operand 0, single buffered']
    %14 = vsyncpa [#allocation3], 0
    %15 = vsyncpa [#allocation6], 0
    %16 = vsyncpa [#allocation4], 0
    // Predicated region
    $region2: #{tpu_custom_call.1} parent=1 // pred_check
      _
    $region3: #{tpu_custom_call.1} parent=1 // pred_check_branch
      %18 = sbr.rel (0) target = $region5
    $region4: #{tpu_custom_call.1} parent=1 // pred_region
      %s20 = ssub.s32 256, 256
      %21 = vsyncadd [#allocation3], %s20
      %s22 = sshll.u32 [#allocation2], 4
      %s23 = int_to_ptr.vmem [resolvable:$true] %s22
      %28 = dma.hbm_to_vmem [thread:$0]  %s0, 256, %s23, [#allocation3], 128, 128, 8
    $region5: #{tpu_custom_call.1} parent=1 // pred_fallthru
      _
    // Predicated region
    $region6: #{tpu_custom_call.1} parent=1 // pred_check
      _
    $region7: #{tpu_custom_call.1} parent=1 // pred_check_branch
      %30 = sbr.rel (0) target = $region9
    $region8: #{tpu_custom_call.1} parent=1 // pred_region
      %s32 = ssub.s32 256, 256
      %33 = vsyncadd [#allocation6], %s32
      %s34 = sshll.u32 [#allocation5], 4
      %s35 = int_to_ptr.vmem [resolvable:$true] %s34
      %40 = dma.hbm_to_vmem [thread:$0]  %s1, 256, %s35, [#allocation6], 128, 128, 8
    $region9: #{tpu_custom_call.1} parent=1 // pred_fallthru
      _
    // Predicated region
    $region10: #{tpu_custom_call.1} parent=1 // pred_check
      _
    $region11: #{tpu_custom_call.1} parent=1 // pred_check_branch
      %42 = sbr.rel (0) target = $region13
    $region12: #{tpu_custom_call.1} parent=1 // pred_region
      _
    $region13: #{tpu_custom_call.1} parent=1 // pred_fallthru
      _
    // Predicated region
    $region14: #{tpu_custom_call.1} parent=1 // pred_check
      _
    $region15: #{tpu_custom_call.1} parent=1 // pred_check_branch
      %44 = sbr.rel (0) target = $region17
    $region16: #{tpu_custom_call.1} parent=1 // pred_region
      %s46 = ssub.s32 64, 64
      %47 = vsyncadd [#allocation6], %s46
      %s49 = sshll.u32 [#allocation7], 4
      %s50 = int_to_ptr.vmem [resolvable:$true] %s49
      %52 = dma.hbm_to_vmem [thread:$0]  %s3, 64, %s50, [#allocation6]
    $region17: #{tpu_custom_call.1} parent=1 // pred_fallthru
      _
    // Predicated region
    $region18: #{tpu_custom_call.1} parent=1 // pred_check
      _
    $region19: #{tpu_custom_call.1} parent=1 // pred_check_branch
      %54 = sbr.rel (0) target = $region21
    $region20: #{tpu_custom_call.1} parent=1 // pred_region
      _
    $region21: #{tpu_custom_call.1} parent=1 // pred_fallthru
      _
    // Predicated region
    $region22: #{tpu_custom_call.1} parent=1 // pred_check
      _
    $region23: #{tpu_custom_call.1} parent=1 // pred_check_branch
      %56 = sbr.rel (0) target = $region25
    $region24: #{tpu_custom_call.1} parent=1 // pred_region
      _
    $region25: #{tpu_custom_call.1} parent=1 // pred_fallthru
      _
    // Predicated region
    $region26: #{tpu_custom_call.1} parent=1 // pred_check
      _
    $region27: #{tpu_custom_call.1} parent=1 // pred_check_branch
      %58 = sbr.rel (0) target = $region29
    $region28: #{tpu_custom_call.1} parent=1 // pred_region
      _
    $region29: #{tpu_custom_call.1} parent=1 // pred_fallthru
      _
    // Predicated region
    $region30: #{tpu_custom_call.1} parent=1 // pred_check
      _
    $region31: #{tpu_custom_call.1} parent=1 // pred_check_branch
      %60 = sbr.rel (0) target = $region33
    $region32: #{tpu_custom_call.1} parent=1 // pred_region
      _
    $region33: #{tpu_custom_call.1} parent=1 // pred_fallthru
      _
    // Predicated region
    $region34: #{tpu_custom_call.1} parent=1 // pred_check
      _
    $region35: #{tpu_custom_call.1} parent=1 // pred_check_branch
      %62 = sbr.rel (0) target = $region37
    $region36: #{tpu_custom_call.1} parent=1 // pred_region
      _
    $region37: #{tpu_custom_call.1} parent=1 // pred_fallthru
      _
    // Predicated region
    $region38: #{tpu_custom_call.1} parent=1 // pred_check
      _
    $region39: #{tpu_custom_call.1} parent=1 // pred_check_branch
      %64 = sbr.rel (0) target = $region41
    $region40: #{tpu_custom_call.1} parent=1 // pred_region
      %65 = dma.done [#allocation3], 256
    $region41: #{tpu_custom_call.1} parent=1 // pred_fallthru
      _
    // Predicated region
    $region42: #{tpu_custom_call.1} parent=1 // pred_check
      _
    $region43: #{tpu_custom_call.1} parent=1 // pred_check_branch
      %67 = sbr.rel (0) target = $region45
    $region44: #{tpu_custom_call.1} parent=1 // pred_region
      %68 = dma.done [#allocation6], 256
    $region45: #{tpu_custom_call.1} parent=1 // pred_fallthru
      _
    // Predicated region
    $region46: #{tpu_custom_call.1} parent=1 // pred_check
      _
    $region47: #{tpu_custom_call.1} parent=1 // pred_check_branch
      %70 = sbr.rel (0) target = $region49
    $region48: #{tpu_custom_call.1} parent=1 // pred_region
      %71 = dma.done [#allocation6], 64
    $region49: #{tpu_custom_call.1} parent=1 // pred_fallthru
      _
    %v72 = vld [vmem:[#allocation2] sm:$0xff]
    %v73 = vld [vmem:[#allocation2 + $0x8] sm:$0xff]
    %v74 = vld [vmem:[#allocation7] sm:$0x1]
    %v75 = vlaneseq
    %v76 = vshrl.u32 %v75, 7
    %v77 = vsub.s32 0, %v76
    %v78 = vrot.slane %v74, %v77
    %v79 = vadd.f32 %v72, %v78
    %v80 = vadd.f32 %v73, %v78
    %v81 = vld [vmem:[#allocation5] sm:$0xff]
    %v82 = vld [vmem:[#allocation5 + $0x8] sm:$0xff]
    %v83 = vld [vmem:[#allocation7 + $0x1] sm:$0x1]
    %v84 = vlaneseq
    %v85 = vshrl.u32 %v84, 7
    %v86 = vsub.s32 0, %v85
    %v87 = vrot.slane %v83, %v86
    %v88 = vadd.f32 %v81, %v87
    %v89 = vadd.f32 %v82, %v87
    %v90 = vld [vmem:[%s2] sm:$0x3]
    %v91 = vmul.f32 %v90, -1e+09
    %v94 = vunpack.c.l.s4 1966171168
    %v95 = vunpack.c.0.s8 %v94
    %v96 = vlaneseq
    %v97 = vshrl.u32 %v96, 7
    %v98 = vsub.s32 %v95, %v97
    %v99 = vrot.slane %v91, %v98
    %v100 = vcombine.high %v99, %v99
    %v102 = vunpack.c.l.s4 1966171168
    %v103 = vunpack.c.0.s8 %v102
    %v104 = vlaneseq
    %v105 = vshrl.u32 %v104, 7
    %v106 = vsub.s32 %v103, %v105
    %v107 = vrot.slane %v99, %v106
    %v109 = vunpack.c.l.s4 1966171168
    %v110 = vunpack.c.0.s8 %v109
    %v111 = vlaneseq
    %v112 = vshrl.u32 %v111, 7
    %v113 = vsub.s32 %v110, %v112
    %v114 = vrot.slane %v100, %v113
    %v115 = vld [vmem:[%s8] sm:$0xff]
    %vm116 = vcmask 261120
    %v117 = vsel %vm116, %v79, 0.0
    %118 = vadd.xlane.f32.xlu0 %v117
    %v119 = vpop.xlane.xlu0 %118
    %v120 = vsel %vm116, %v88, 0.0
    %121 = vadd.xlane.f32.xlu0 %v120
    %v122 = vpop.xlane.xlu0 %121
    %v123 = vsel %vm116, %v80, 0.0
    %124 = vadd.xlane.f32.xlu0 %v123
    %v125 = vpop.xlane.xlu0 %124
    %v126 = vsel %vm116, %v89, 0.0
    %127 = vadd.xlane.f32.xlu0 %v126
    %v128 = vpop.xlane.xlu0 %127
    %v129 = vrcp.pop 32.0
    %v130 = vmul.f32 %v119, %v129
    %v131 = vmul.f32 %v122, %v129
    %v132 = vmul.f32 %v125, %v129
    %v133 = vmul.f32 %v128, %v129
    %v134 = vsub.f32 %v79, %v130
    %v135 = vsub.f32 %v88, %v131
    %v136 = vsub.f32 %v80, %v132
    %v137 = vsub.f32 %v89, %v133
    %v138 = vmul.f32 %v134, %v134
    %v139 = vmul.f32 %v135, %v135
    %v140 = vmul.f32 %v136, %v136
    %v141 = vmul.f32 %v137, %v137
    %v142 = vsel %vm116, %v138, 0.0
    %143 = vadd.xlane.f32.xlu0 %v142
    %v144 = vpop.xlane.xlu0 %143
    %v145 = vsel %vm116, %v139, 0.0
    %146 = vadd.xlane.f32.xlu0 %v145
    %v147 = vpop.xlane.xlu0 %146
    %v148 = vsel %vm116, %v140, 0.0
    %149 = vadd.xlane.f32.xlu0 %v148
    %v150 = vpop.xlane.xlu0 %149
    %v151 = vsel %vm116, %v141, 0.0
    %152 = vadd.xlane.f32.xlu0 %v151
    %v153 = vpop.xlane.xlu0 %152
    %v154 = vmul.f32 %v144, %v129
    %v155 = vmul.f32 %v147, %v129
    %v156 = vmul.f32 %v150, %v129
    %v157 = vmul.f32 %v153, %v129
    %v158 = vadd.f32 %v154, 1e-05
    %v159 = vadd.f32 %v155, 1e-05
    %v160 = vadd.f32 %v156, 1e-05
    %v161 = vadd.f32 %v157, 1e-05
    %v162 = vrsqrt.pop %v158
    %v163 = vrsqrt.pop %v159
    %v164 = vrsqrt.pop %v160
    %v165 = vrsqrt.pop %v161
    %v166 = vmul.f32 %v134, %v162
    %v167 = vmul.f32 %v135, %v163
    %v168 = vmul.f32 %v136, %v164
    %v169 = vmul.f32 %v137, %v165
    %v170 = vlaneseq
    %v171 = vshrl.u32 %v170, 7
    %v172 = vsub.s32 0, %v171
    %v173 = vrot.slane %v115, %v172
    %v174 = vmul.f32 %v166, %v173
    %v175 = vmul.f32 %v167, %v173
    %v176 = vmul.f32 %v168, %v173
    %v177 = vmul.f32 %v169, %v173
    %v178 = vlaneseq
    %v179 = vshrl.u32 %v178, 7
    %v180 = vsub.s32 1, %v179
    %v181 = vrot.slane %v115, %v180
    %v182 = vadd.f32 %v174, %v181
    %v183 = vadd.f32 %v175, %v181
    %v184 = vadd.f32 %v176, %v181
    %v185 = vadd.f32 %v177, %v181
    %v186 = vld [vmem:[%s4] sm:$0xff]
    %v187 = vld [vmem:[%s4 + $0x8] sm:$0xff]
    %v188 = vld [vmem:[%s4 + $0x10] sm:$0xff]
    %v189 = vld [vmem:[%s4 + $0x18] sm:$0xff]
    %v190 = vlaneseq
    %v191 = vshrl.u32 %v190, 7
    %v192 = vsub.s32 4, %v191
    %v193 = vrot.slane %v115, %v192
    %v195 = vsel %vm116, %v182, 0
    %v198 = vsel %vm116, %v183, 0
    %v201 = vsel %vm116, %v184, 0
    %v204 = vsel %vm116, %v185, 0
    %206 = vmatprep.subr.mxu0 0.0
    %207 = vmatpush1.msra.mxu0 %v186
    %208 = vmatprep.subr.mxu0 0.0
    %209 = vmatpush1.msra.mxu0 %v187
    %210 = vmatprep.subr.mxu0 0.0
    %211 = vmatpush1.msra.mxu0 %v188
    %212 = vmatprep.subr.mxu0 0.0
    %213 = vmatpush1.msra.mxu0 %v189
    %214 = vmatprep.subr.mxu0 0.0
    %215 = vmatpush1.msra.mxu0 0.0
    %216 = vmatprep.subr.mxu0 0.0
    %217 = vmatpush1.msra.mxu0 0.0
    %218 = vmatprep.subr.mxu0 0.0
    %219 = vmatpush1.msra.mxu0 0.0
    %220 = vmatprep.subr.mxu0 0.0
    %221 = vmatpush1.msra.mxu0 0.0
    %222 = vmatprep.subr.mxu0 0.0
    %223 = vmatpush1.msra.mxu0 0.0
    %224 = vmatprep.subr.mxu0 0.0
    %225 = vmatpush1.msra.mxu0 0.0
    %226 = vmatprep.subr.mxu0 0.0
    %227 = vmatpush1.msra.mxu0 0.0
    %228 = vmatprep.subr.mxu0 0.0
    %229 = vmatpush1.msra.mxu0 0.0
    %230 = vmatprep.subr.mxu0 0.0
    %231 = vmatpush1.msra.mxu0 0.0
    %232 = vmatprep.subr.mxu0 0.0
    %233 = vmatpush1.msra.mxu0 0.0
    %234 = vmatprep.subr.mxu0 0.0
    %235 = vmatpush1.msra.mxu0 0.0
    %236 = vmatprep.subr.mxu0 0.0
    %237 = vmatpush1.msra.mxu0 0.0
    %238 = vmatprep.subr.mxu0 0.0
    %239 = vmatpush1.msra.mxu0 0.0
    %240 = vmatprep.subr.mxu0 0.0
    %241 = vmatpush1.msra.mxu0 0.0
    %242 = vmatprep.subr.mxu0 0.0
    %243 = vmatpush1.msra.mxu0 0.0
    %244 = vmatprep.subr.mxu0 0.0
    %245 = vmatpush1.msra.mxu0 0.0
    %246 = vmatprep.subr.mxu0 0.0
    %247 = vmatpush1.msra.mxu0 0.0
    %248 = vmatprep.subr.mxu0 0.0
    %249 = vmatpush1.msra.mxu0 0.0
    %250 = vmatprep.subr.mxu0 0.0
    %251 = vmatpush1.msra.mxu0 0.0
    %252 = vmatprep.subr.mxu0 0.0
    %253 = vmatpush1.msra.mxu0 0.0
    %254 = vmatprep.subr.mxu0 0.0
    %255 = vmatpush1.msra.mxu0 0.0
    %256 = vmatprep.subr.mxu0 0.0
    %257 = vmatpush1.msra.mxu0 0.0
    %258 = vmatprep.subr.mxu0 0.0
    %259 = vmatpush1.msra.mxu0 0.0
    %260 = vmatprep.subr.mxu0 0.0
    %261 = vmatpush1.msra.mxu0 0.0
    %262 = vmatprep.subr.mxu0 0.0
    %263 = vmatpush1.msra.mxu0 0.0
    %264 = vmatprep.subr.mxu0 0.0
    %265 = vmatpush1.msra.mxu0 0.0
    %266 = vmatprep.subr.mxu0 0.0
    %267 = vmatpush1.msra.mxu0 0.0
    %268 = vmatprep.subr.mxu0 0.0
    %269 = vmatpush1.msra.mxu0 0.0
    %270 = vmatprep.mubr.f32.mxu0 0.0
    %271 = vmatmul.mubr.f32.gmra.mrb[0].mxu0 %v195
    %v272 = vpop.f32.mrb[0].mxu0
    %v273 = vadd.f32 %v193, %v272
    %v274 = vpop.f32.mrb[0].mxu0
    %275 = vmatprep.mubr.f32.mxu0 0.0
    %276 = vmatmul.mubr.f32.gmra.mrb[0].mxu0 %v198
    %v277 = vpop.f32.mrb[0].mxu0
    %v278 = vadd.f32 %v193, %v277
    %v279 = vpop.f32.mrb[0].mxu0
    %280 = vmatprep.mubr.f32.mxu0 0.0
    %281 = vmatmul.mubr.f32.gmra.mrb[0].mxu0 %v201
    %v282 = vpop.f32.mrb[0].mxu0
    %v283 = vadd.f32 %v193, %v282
    %v284 = vpop.f32.mrb[0].mxu0
    %285 = vmatprep.mubr.f32.mxu0 0.0
    %286 = vmatmul.mubr.f32.gmra.mrb[0].mxu0 %v204
    %v287 = vpop.f32.mrb[0].mxu0
    %v288 = vadd.f32 %v193, %v287
    %v289 = vpop.f32.mrb[0].mxu0
    %290 = vdwg.mxu0
    %293 = vrot.lane.b32.xlu0 %v273, 96
    %v294 = vpop.permute.xlu0 %293
    %295 = vrot.lane.b32.xlu0 %v278, 96
    %v296 = vpop.permute.xlu0 %295
    %vm297 = vcmask 64512
    %v298 = vsel %vm297, %v273, 0
    %v300 = vsel %vm297, %v278, 0
    %v302 = vsel %vm297, %v294, 0
    %v304 = vsel %vm297, %v296, 0
    %306 = vmatprep.subr.mxu0 0.0
    %307 = vmatpush1.xpose.msra.mxu0 %v302
    %308 = vmatprep.subr.mxu0 0.0
    %309 = vmatpush1.xpose.msra.mxu0 %v304
    %310 = vmatprep.subr.mxu0 0.0
    %311 = vmatpush1.xpose.msra.mxu0 0.0
    %312 = vmatprep.subr.mxu0 0.0
    %313 = vmatpush1.xpose.msra.mxu0 0.0
    %314 = vmatprep.subr.mxu0 0.0
    %315 = vmatpush1.xpose.msra.mxu0 0.0
    %316 = vmatprep.subr.mxu0 0.0
    %317 = vmatpush1.xpose.msra.mxu0 0.0
    %318 = vmatprep.subr.mxu0 0.0
    %319 = vmatpush1.xpose.msra.mxu0 0.0
    %320 = vmatprep.subr.mxu0 0.0
    %321 = vmatpush1.xpose.msra.mxu0 0.0
    %322 = vmatprep.subr.mxu0 0.0
    %323 = vmatpush1.xpose.msra.mxu0 0.0
    %324 = vmatprep.subr.mxu0 0.0
    %325 = vmatpush1.xpose.msra.mxu0 0.0
    %326 = vmatprep.subr.mxu0 0.0
    %327 = vmatpush1.xpose.msra.mxu0 0.0
    %328 = vmatprep.subr.mxu0 0.0
    %329 = vmatpush1.xpose.msra.mxu0 0.0
    %330 = vmatprep.subr.mxu0 0.0
    %331 = vmatpush1.xpose.msra.mxu0 0.0
    %332 = vmatprep.subr.mxu0 0.0
    %333 = vmatpush1.xpose.msra.mxu0 0.0
    %334 = vmatprep.subr.mxu0 0.0
    %335 = vmatpush1.xpose.msra.mxu0 0.0
    %336 = vmatprep.subr.mxu0 0.0
    %337 = vmatpush1.xpose.msra.mxu0 0.0
    %338 = vmatprep.subr.mxu0 0.0
    %339 = vmatpush1.xpose.msra.mxu0 0.0
    %340 = vmatprep.subr.mxu0 0.0
    %341 = vmatpush1.xpose.msra.mxu0 0.0
    %342 = vmatprep.subr.mxu0 0.0
    %343 = vmatpush1.xpose.msra.mxu0 0.0
    %344 = vmatprep.subr.mxu0 0.0
    %345 = vmatpush1.xpose.msra.mxu0 0.0
    %346 = vmatprep.subr.mxu0 0.0
    %347 = vmatpush1.xpose.msra.mxu0 0.0
    %348 = vmatprep.subr.mxu0 0.0
    %349 = vmatpush1.xpose.msra.mxu0 0.0
    %350 = vmatprep.subr.mxu0 0.0
    %351 = vmatpush1.xpose.msra.mxu0 0.0
    %352 = vmatprep.subr.mxu0 0.0
    %353 = vmatpush1.xpose.msra.mxu0 0.0
    %354 = vmatprep.subr.mxu0 0.0
    %355 = vmatpush1.xpose.msra.mxu0 0.0
    %356 = vmatprep.subr.mxu0 0.0
    %357 = vmatpush1.xpose.msra.mxu0 0.0
    %358 = vmatprep.subr.mxu0 0.0
    %359 = vmatpush1.xpose.msra.mxu0 0.0
    %360 = vmatprep.subr.mxu0 0.0
    %361 = vmatpush1.xpose.msra.mxu0 0.0
    %362 = vmatprep.subr.mxu0 0.0
    %363 = vmatpush1.xpose.msra.mxu0 0.0
    %364 = vmatprep.subr.mxu0 0.0
    %365 = vmatpush1.xpose.msra.mxu0 0.0
    %366 = vmatprep.subr.mxu0 0.0
    %367 = vmatpush1.xpose.msra.mxu0 0.0
    %368 = vmatprep.subr.mxu0 0.0
    %369 = vmatpush1.xpose.msra.mxu0 0.0
    %370 = vmatprep.mubr.f32.mxu0 0.0
    %371 = vmatmul.mubr.f32.gmra.mrb[0].mxu0 %v298
    %v372 = vpop.f32.mrb[0].mxu0
    %v373 = vadd.f32 0.0, %v372
    %v374 = vpop.f32.mrb[0].mxu0
    %375 = vmatprep.mubr.f32.mxu0 0.0
    %376 = vmatmul.mubr.f32.gmra.mrb[0].mxu0 %v300
    %v377 = vpop.f32.mrb[0].mxu0
    %v378 = vadd.f32 0.0, %v377
    %v379 = vpop.f32.mrb[0].mxu0
    %380 = vdwg.mxu0
    %383 = vrot.lane.b32.xlu0 %v283, 96
    %v384 = vpop.permute.xlu0 %383
    %385 = vrot.lane.b32.xlu0 %v288, 96
    %v386 = vpop.permute.xlu0 %385
    %v387 = vsel %vm297, %v283, 0
    %v389 = vsel %vm297, %v288, 0
    %v391 = vsel %vm297, %v384, 0
    %v393 = vsel %vm297, %v386, 0
    %395 = vmatprep.subr.mxu0 0.0
    %396 = vmatpush1.xpose.msra.mxu0 %v391
    %397 = vmatprep.subr.mxu0 0.0
    %398 = vmatpush1.xpose.msra.mxu0 %v393
    %399 = vmatprep.subr.mxu0 0.0
    %400 = vmatpush1.xpose.msra.mxu0 0.0
    %401 = vmatprep.subr.mxu0 0.0
    %402 = vmatpush1.xpose.msra.mxu0 0.0
    %403 = vmatprep.subr.mxu0 0.0
    %404 = vmatpush1.xpose.msra.mxu0 0.0
    %405 = vmatprep.subr.mxu0 0.0
    %406 = vmatpush1.xpose.msra.mxu0 0.0
    %407 = vmatprep.subr.mxu0 0.0
    %408 = vmatpush1.xpose.msra.mxu0 0.0
    %409 = vmatprep.subr.mxu0 0.0
    %410 = vmatpush1.xpose.msra.mxu0 0.0
    %411 = vmatprep.subr.mxu0 0.0
    %412 = vmatpush1.xpose.msra.mxu0 0.0
    %413 = vmatprep.subr.mxu0 0.0
    %414 = vmatpush1.xpose.msra.mxu0 0.0
    %415 = vmatprep.subr.mxu0 0.0
    %416 = vmatpush1.xpose.msra.mxu0 0.0
    %417 = vmatprep.subr.mxu0 0.0
    %418 = vmatpush1.xpose.msra.mxu0 0.0
    %419 = vmatprep.subr.mxu0 0.0
    %420 = vmatpush1.xpose.msra.mxu0 0.0
    %421 = vmatprep.subr.mxu0 0.0
    %422 = vmatpush1.xpose.msra.mxu0 0.0
    %423 = vmatprep.subr.mxu0 0.0
    %424 = vmatpush1.xpose.msra.mxu0 0.0
    %425 = vmatprep.subr.mxu0 0.0
    %426 = vmatpush1.xpose.msra.mxu0 0.0
    %427 = vmatprep.subr.mxu0 0.0
    %428 = vmatpush1.xpose.msra.mxu0 0.0
    %429 = vmatprep.subr.mxu0 0.0
    %430 = vmatpush1.xpose.msra.mxu0 0.0
    %431 = vmatprep.subr.mxu0 0.0
    %432 = vmatpush1.xpose.msra.mxu0 0.0
    %433 = vmatprep.subr.mxu0 0.0
    %434 = vmatpush1.xpose.msra.mxu0 0.0
    %435 = vmatprep.subr.mxu0 0.0
    %436 = vmatpush1.xpose.msra.mxu0 0.0
    %437 = vmatprep.subr.mxu0 0.0
    %438 = vmatpush1.xpose.msra.mxu0 0.0
    %439 = vmatprep.subr.mxu0 0.0
    %440 = vmatpush1.xpose.msra.mxu0 0.0
    %441 = vmatprep.subr.mxu0 0.0
    %442 = vmatpush1.xpose.msra.mxu0 0.0
    %443 = vmatprep.subr.mxu0 0.0
    %444 = vmatpush1.xpose.msra.mxu0 0.0
    %445 = vmatprep.subr.mxu0 0.0
    %446 = vmatpush1.xpose.msra.mxu0 0.0
    %447 = vmatprep.subr.mxu0 0.0
    %448 = vmatpush1.xpose.msra.mxu0 0.0
    %449 = vmatprep.subr.mxu0 0.0
    %450 = vmatpush1.xpose.msra.mxu0 0.0
    %451 = vmatprep.subr.mxu0 0.0
    %452 = vmatpush1.xpose.msra.mxu0 0.0
    %453 = vmatprep.subr.mxu0 0.0
    %454 = vmatpush1.xpose.msra.mxu0 0.0
    %455 = vmatprep.subr.mxu0 0.0
    %456 = vmatpush1.xpose.msra.mxu0 0.0
    %457 = vmatprep.subr.mxu0 0.0
    %458 = vmatpush1.xpose.msra.mxu0 0.0
    %459 = vmatprep.mubr.f32.mxu0 0.0
    %460 = vmatmul.mubr.f32.gmra.mrb[0].mxu0 %v387
    %v461 = vpop.f32.mrb[0].mxu0
    %v462 = vadd.f32 0.0, %v461
    %v463 = vpop.f32.mrb[0].mxu0
    %464 = vmatprep.mubr.f32.mxu0 0.0
    %465 = vmatmul.mubr.f32.gmra.mrb[0].mxu0 %v389
    %v466 = vpop.f32.mrb[0].mxu0
    %v467 = vadd.f32 0.0, %v466
    %v468 = vpop.f32.mrb[0].mxu0
    %469 = vdwg.mxu0
    %v470 = vmul.f32 %v373, 0.35355338
    %v471 = vmul.f32 %v378, 0.35355338
    %v472 = vmul.f32 %v462, 0.35355338
    %v473 = vmul.f32 %v467, 0.35355338
    %v474 = vlaneseq
    %v475 = vshrl.u32 %v474, 7
    %v476 = vsub.s32 0, %v475
    %v477 = vrot.slane %v107, %v476
    %v478 = vlaneseq
    %v479 = vshrl.u32 %v478, 7
    %v480 = vsub.s32 0, %v479
    %v481 = vrot.slane %v114, %v480
    %v484 = vadd.f32 %v470, %v477
    %v485 = vadd.f32 %v471, %v477
    %v486 = vadd.f32 %v472, %v481
    %v487 = vadd.f32 %v473, %v481
    %vm488 = vcmask 130048
    %v489 = vsel %vm488, %v484, -inf
    %490 = vmax.xlane.f32.xlu0 %v489
    %v491 = vpop.xlane.xlu0 %490
    %v492 = vsel %vm488, %v485, -inf
    %493 = vmax.xlane.f32.xlu0 %v492
    %v494 = vpop.xlane.xlu0 %493
    %v495 = vsel %vm488, %v486, -inf
    %496 = vmax.xlane.f32.xlu0 %v495
    %v497 = vpop.xlane.xlu0 %496
    %v498 = vsel %vm488, %v487, -inf
    %499 = vmax.xlane.f32.xlu0 %v498
    %v500 = vpop.xlane.xlu0 %499
    %v501 = vsub.f32 %v484, %v491
    %v502 = vsub.f32 %v485, %v494
    %v503 = vsub.f32 %v486, %v497
    %v504 = vsub.f32 %v487, %v500
    %v505 = vmul.f32 %v501, 1.442695
    %v506 = vpow.pop %v505
    %v507 = vmul.f32 %v502, 1.442695
    %v508 = vpow.pop %v507
    %v509 = vmul.f32 %v503, 1.442695
    %v510 = vpow.pop %v509
    %v511 = vmul.f32 %v504, 1.442695
    %v512 = vpow.pop %v511
    %v513 = vsel %vm488, %v506, 0.0
    %514 = vadd.xlane.f32.xlu0 %v513
    %v515 = vpop.xlane.xlu0 %514
    %v516 = vsel %vm488, %v508, 0.0
    %517 = vadd.xlane.f32.xlu0 %v516
    %v518 = vpop.xlane.xlu0 %517
    %v519 = vsel %vm488, %v510, 0.0
    %520 = vadd.xlane.f32.xlu0 %v519
    %v521 = vpop.xlane.xlu0 %520
    %v522 = vsel %vm488, %v512, 0.0
    %523 = vadd.xlane.f32.xlu0 %v522
    %v524 = vpop.xlane.xlu0 %523
    %v525 = vrcp.pop %v515
    %v526 = vrcp.pop %v518
    %v527 = vrcp.pop %v521
    %v528 = vrcp.pop %v524
    %v529 = vmul.f32 %v506, %v525
    %v530 = vmul.f32 %v508, %v526
    %v531 = vmul.f32 %v510, %v527
    %v532 = vmul.f32 %v512, %v528
    %533 = vrot.lane.b32.xlu0 %v273, 64
    %v534 = vpop.permute.xlu0 %533
    %535 = vrot.lane.b32.xlu0 %v278, 64
    %v536 = vpop.permute.xlu0 %535
    %v540 = vsel %vm488, %v529, 0
    %v543 = vsel %vm488, %v530, 0
    %545 = vmatprep.subr.mxu0 0.0
    %546 = vmatpush1.msra.mxu0 %v534
    %547 = vmatprep.subr.mxu0 0.0
    %548 = vmatpush1.msra.mxu0 %v536
    %549 = vmatprep.subr.mxu0 0.0
    %550 = vmatpush1.msra.mxu0 0.0
    %551 = vmatprep.subr.mxu0 0.0
    %552 = vmatpush1.msra.mxu0 0.0
    %553 = vmatprep.subr.mxu0 0.0
    %554 = vmatpush1.msra.mxu0 0.0
    %555 = vmatprep.subr.mxu0 0.0
    %556 = vmatpush1.msra.mxu0 0.0
    %557 = vmatprep.subr.mxu0 0.0
    %558 = vmatpush1.msra.mxu0 0.0
    %559 = vmatprep.subr.mxu0 0.0
    %560 = vmatpush1.msra.mxu0 0.0
    %561 = vmatprep.subr.mxu0 0.0
    %562 = vmatpush1.msra.mxu0 0.0
    %563 = vmatprep.subr.mxu0 0.0
    %564 = vmatpush1.msra.mxu0 0.0
    %565 = vmatprep.subr.mxu0 0.0
    %566 = vmatpush1.msra.mxu0 0.0
    %567 = vmatprep.subr.mxu0 0.0
    %568 = vmatpush1.msra.mxu0 0.0
    %569 = vmatprep.subr.mxu0 0.0
    %570 = vmatpush1.msra.mxu0 0.0
    %571 = vmatprep.subr.mxu0 0.0
    %572 = vmatpush1.msra.mxu0 0.0
    %573 = vmatprep.subr.mxu0 0.0
    %574 = vmatpush1.msra.mxu0 0.0
    %575 = vmatprep.subr.mxu0 0.0
    %576 = vmatpush1.msra.mxu0 0.0
    %577 = vmatprep.subr.mxu0 0.0
    %578 = vmatpush1.msra.mxu0 0.0
    %579 = vmatprep.subr.mxu0 0.0
    %580 = vmatpush1.msra.mxu0 0.0
    %581 = vmatprep.subr.mxu0 0.0
    %582 = vmatpush1.msra.mxu0 0.0
    %583 = vmatprep.subr.mxu0 0.0
    %584 = vmatpush1.msra.mxu0 0.0
    %585 = vmatprep.subr.mxu0 0.0
    %586 = vmatpush1.msra.mxu0 0.0
    %587 = vmatprep.subr.mxu0 0.0
    %588 = vmatpush1.msra.mxu0 0.0
    %589 = vmatprep.subr.mxu0 0.0
    %590 = vmatpush1.msra.mxu0 0.0
    %591 = vmatprep.subr.mxu0 0.0
    %592 = vmatpush1.msra.mxu0 0.0
    %593 = vmatprep.subr.mxu0 0.0
    %594 = vmatpush1.msra.mxu0 0.0
    %595 = vmatprep.subr.mxu0 0.0
    %596 = vmatpush1.msra.mxu0 0.0
    %597 = vmatprep.subr.mxu0 0.0
    %598 = vmatpush1.msra.mxu0 0.0
    %599 = vmatprep.subr.mxu0 0.0
    %600 = vmatpush1.msra.mxu0 0.0
    %601 = vmatprep.subr.mxu0 0.0
    %602 = vmatpush1.msra.mxu0 0.0
    %603 = vmatprep.subr.mxu0 0.0
    %604 = vmatpush1.msra.mxu0 0.0
    %605 = vmatprep.subr.mxu0 0.0
    %606 = vmatpush1.msra.mxu0 0.0
    %607 = vmatprep.subr.mxu0 0.0
    %608 = vmatpush1.msra.mxu0 0.0
    %609 = vmatprep.mubr.f32.mxu0 0.0
    %610 = vmatmul.mubr.f32.gmra.mrb[0].mxu0 %v540
    %v611 = vpop.f32.mrb[0].mxu0
    %v612 = vadd.f32 0.0, %v611
    %v613 = vpop.f32.mrb[0].mxu0
    %614 = vmatprep.mubr.f32.mxu0 0.0
    %615 = vmatmul.mubr.f32.gmra.mrb[0].mxu0 %v543
    %v616 = vpop.f32.mrb[0].mxu0
    %v617 = vadd.f32 0.0, %v616
    %v618 = vpop.f32.mrb[0].mxu0
    %619 = vdwg.mxu0
    %620 = vrot.lane.b32.xlu0 %v283, 64
    %v621 = vpop.permute.xlu0 %620
    %622 = vrot.lane.b32.xlu0 %v288, 64
    %v623 = vpop.permute.xlu0 %622
    %v627 = vsel %vm488, %v531, 0
    %v630 = vsel %vm488, %v532, 0
    %632 = vmatprep.subr.mxu0 0.0
    %633 = vmatpush1.msra.mxu0 %v621
    %634 = vmatprep.subr.mxu0 0.0
    %635 = vmatpush1.msra.mxu0 %v623
    %636 = vmatprep.subr.mxu0 0.0
    %637 = vmatpush1.msra.mxu0 0.0
    %638 = vmatprep.subr.mxu0 0.0
    %639 = vmatpush1.msra.mxu0 0.0
    %640 = vmatprep.subr.mxu0 0.0
    %641 = vmatpush1.msra.mxu0 0.0
    %642 = vmatprep.subr.mxu0 0.0
    %643 = vmatpush1.msra.mxu0 0.0
    %644 = vmatprep.subr.mxu0 0.0
    %645 = vmatpush1.msra.mxu0 0.0
    %646 = vmatprep.subr.mxu0 0.0
    %647 = vmatpush1.msra.mxu0 0.0
    %648 = vmatprep.subr.mxu0 0.0
    %649 = vmatpush1.msra.mxu0 0.0
    %650 = vmatprep.subr.mxu0 0.0
    %651 = vmatpush1.msra.mxu0 0.0
    %652 = vmatprep.subr.mxu0 0.0
    %653 = vmatpush1.msra.mxu0 0.0
    %654 = vmatprep.subr.mxu0 0.0
    %655 = vmatpush1.msra.mxu0 0.0
    %656 = vmatprep.subr.mxu0 0.0
    %657 = vmatpush1.msra.mxu0 0.0
    %658 = vmatprep.subr.mxu0 0.0
    %659 = vmatpush1.msra.mxu0 0.0
    %660 = vmatprep.subr.mxu0 0.0
    %661 = vmatpush1.msra.mxu0 0.0
    %662 = vmatprep.subr.mxu0 0.0
    %663 = vmatpush1.msra.mxu0 0.0
    %664 = vmatprep.subr.mxu0 0.0
    %665 = vmatpush1.msra.mxu0 0.0
    %666 = vmatprep.subr.mxu0 0.0
    %667 = vmatpush1.msra.mxu0 0.0
    %668 = vmatprep.subr.mxu0 0.0
    %669 = vmatpush1.msra.mxu0 0.0
    %670 = vmatprep.subr.mxu0 0.0
    %671 = vmatpush1.msra.mxu0 0.0
    %672 = vmatprep.subr.mxu0 0.0
    %673 = vmatpush1.msra.mxu0 0.0
    %674 = vmatprep.subr.mxu0 0.0
    %675 = vmatpush1.msra.mxu0 0.0
    %676 = vmatprep.subr.mxu0 0.0
    %677 = vmatpush1.msra.mxu0 0.0
    %678 = vmatprep.subr.mxu0 0.0
    %679 = vmatpush1.msra.mxu0 0.0
    %680 = vmatprep.subr.mxu0 0.0
    %681 = vmatpush1.msra.mxu0 0.0
    %682 = vmatprep.subr.mxu0 0.0
    %683 = vmatpush1.msra.mxu0 0.0
    %684 = vmatprep.subr.mxu0 0.0
    %685 = vmatpush1.msra.mxu0 0.0
    %686 = vmatprep.subr.mxu0 0.0
    %687 = vmatpush1.msra.mxu0 0.0
    %688 = vmatprep.subr.mxu0 0.0
    %689 = vmatpush1.msra.mxu0 0.0
    %690 = vmatprep.subr.mxu0 0.0
    %691 = vmatpush1.msra.mxu0 0.0
    %692 = vmatprep.subr.mxu0 0.0
    %693 = vmatpush1.msra.mxu0 0.0
    %694 = vmatprep.subr.mxu0 0.0
    %695 = vmatpush1.msra.mxu0 0.0
    %696 = vmatprep.mubr.f32.mxu0 0.0
    %697 = vmatmul.mubr.f32.gmra.mrb[0].mxu0 %v627
    %v698 = vpop.f32.mrb[0].mxu0
    %v699 = vadd.f32 0.0, %v698
    %v700 = vpop.f32.mrb[0].mxu0
    %701 = vmatprep.mubr.f32.mxu0 0.0
    %702 = vmatmul.mubr.f32.gmra.mrb[0].mxu0 %v630
    %v703 = vpop.f32.mrb[0].mxu0
    %v704 = vadd.f32 0.0, %v703
    %v705 = vpop.f32.mrb[0].mxu0
    %706 = vdwg.mxu0
    %v707 = vld [vmem:[%s5] sm:$0xff]
    %708 = vrot.lane.b32.xlu0 %v273, 120
    %v709 = vpop.permute.xlu0 %708
    %710 = vrot.lane.b32.xlu0 %v278, 120
    %v711 = vpop.permute.xlu0 %710
    %712 = vrot.lane.b32.xlu0 %v273, 88
    %v713 = vpop.permute.xlu0 %712
    %714 = vrot.lane.b32.xlu0 %v278, 88
    %v715 = vpop.permute.xlu0 %714
    %v716 = vsel %vm297, %v709, 0
    %v718 = vsel %vm297, %v711, 0
    %v720 = vsel %vm297, %v713, 0
    %v722 = vsel %vm297, %v715, 0
    %724 = vmatprep.subr.mxu0 0.0
    %725 = vmatpush1.xpose.msra.mxu0 %v720
    %726 = vmatprep.subr.mxu0 0.0
    %727 = vmatpush1.xpose.msra.mxu0 %v722
    %728 = vmatprep.subr.mxu0 0.0
    %729 = vmatpush1.xpose.msra.mxu0 0.0
    %730 = vmatprep.subr.mxu0 0.0
    %731 = vmatpush1.xpose.msra.mxu0 0.0
    %732 = vmatprep.subr.mxu0 0.0
    %733 = vmatpush1.xpose.msra.mxu0 0.0
    %734 = vmatprep.subr.mxu0 0.0
    %735 = vmatpush1.xpose.msra.mxu0 0.0
    %736 = vmatprep.subr.mxu0 0.0
    %737 = vmatpush1.xpose.msra.mxu0 0.0
    %738 = vmatprep.subr.mxu0 0.0
    %739 = vmatpush1.xpose.msra.mxu0 0.0
    %740 = vmatprep.subr.mxu0 0.0
    %741 = vmatpush1.xpose.msra.mxu0 0.0
    %742 = vmatprep.subr.mxu0 0.0
    %743 = vmatpush1.xpose.msra.mxu0 0.0
    %744 = vmatprep.subr.mxu0 0.0
    %745 = vmatpush1.xpose.msra.mxu0 0.0
    %746 = vmatprep.subr.mxu0 0.0
    %747 = vmatpush1.xpose.msra.mxu0 0.0
    %748 = vmatprep.subr.mxu0 0.0
    %749 = vmatpush1.xpose.msra.mxu0 0.0
    %750 = vmatprep.subr.mxu0 0.0
    %751 = vmatpush1.xpose.msra.mxu0 0.0
    %752 = vmatprep.subr.mxu0 0.0
    %753 = vmatpush1.xpose.msra.mxu0 0.0
    %754 = vmatprep.subr.mxu0 0.0
    %755 = vmatpush1.xpose.msra.mxu0 0.0
    %756 = vmatprep.subr.mxu0 0.0
    %757 = vmatpush1.xpose.msra.mxu0 0.0
    %758 = vmatprep.subr.mxu0 0.0
    %759 = vmatpush1.xpose.msra.mxu0 0.0
    %760 = vmatprep.subr.mxu0 0.0
    %761 = vmatpush1.xpose.msra.mxu0 0.0
    %762 = vmatprep.subr.mxu0 0.0
    %763 = vmatpush1.xpose.msra.mxu0 0.0
    %764 = vmatprep.subr.mxu0 0.0
    %765 = vmatpush1.xpose.msra.mxu0 0.0
    %766 = vmatprep.subr.mxu0 0.0
    %767 = vmatpush1.xpose.msra.mxu0 0.0
    %768 = vmatprep.subr.mxu0 0.0
    %769 = vmatpush1.xpose.msra.mxu0 0.0
    %770 = vmatprep.subr.mxu0 0.0
    %771 = vmatpush1.xpose.msra.mxu0 0.0
    %772 = vmatprep.subr.mxu0 0.0
    %773 = vmatpush1.xpose.msra.mxu0 0.0
    %774 = vmatprep.subr.mxu0 0.0
    %775 = vmatpush1.xpose.msra.mxu0 0.0
    %776 = vmatprep.subr.mxu0 0.0
    %777 = vmatpush1.xpose.msra.mxu0 0.0
    %778 = vmatprep.subr.mxu0 0.0
    %779 = vmatpush1.xpose.msra.mxu0 0.0
    %780 = vmatprep.subr.mxu0 0.0
    %781 = vmatpush1.xpose.msra.mxu0 0.0
    %782 = vmatprep.subr.mxu0 0.0
    %783 = vmatpush1.xpose.msra.mxu0 0.0
    %784 = vmatprep.subr.mxu0 0.0
    %785 = vmatpush1.xpose.msra.mxu0 0.0
    %786 = vmatprep.subr.mxu0 0.0
    %787 = vmatpush1.xpose.msra.mxu0 0.0
    %788 = vmatprep.mubr.f32.mxu0 0.0
    %789 = vmatmul.mubr.f32.gmra.mrb[0].mxu0 %v716
    %v790 = vpop.f32.mrb[0].mxu0
    %v791 = vadd.f32 0.0, %v790
    %v792 = vpop.f32.mrb[0].mxu0
    %793 = vmatprep.mubr.f32.mxu0 0.0
    %794 = vmatmul.mubr.f32.gmra.mrb[0].mxu0 %v718
    %v795 = vpop.f32.mrb[0].mxu0
    %v796 = vadd.f32 0.0, %v795
    %v797 = vpop.f32.mrb[0].mxu0
    %798 = vdwg.mxu0
    %799 = vrot.lane.b32.xlu0 %v283, 120
    %v800 = vpop.permute.xlu0 %799
    %801 = vrot.lane.b32.xlu0 %v288, 120
    %v802 = vpop.permute.xlu0 %801
    %803 = vrot.lane.b32.xlu0 %v283, 88
    %v804 = vpop.permute.xlu0 %803
    %805 = vrot.lane.b32.xlu0 %v288, 88
    %v806 = vpop.permute.xlu0 %805
    %v807 = vsel %vm297, %v800, 0
    %v809 = vsel %vm297, %v802, 0
    %v811 = vsel %vm297, %v804, 0
    %v813 = vsel %vm297, %v806, 0
    %815 = vmatprep.subr.mxu0 0.0
    %816 = vmatpush1.xpose.msra.mxu0 %v811
    %817 = vmatprep.subr.mxu0 0.0
    %818 = vmatpush1.xpose.msra.mxu0 %v813
    %819 = vmatprep.subr.mxu0 0.0
    %820 = vmatpush1.xpose.msra.mxu0 0.0
    %821 = vmatprep.subr.mxu0 0.0
    %822 = vmatpush1.xpose.msra.mxu0 0.0
    %823 = vmatprep.subr.mxu0 0.0
    %824 = vmatpush1.xpose.msra.mxu0 0.0
    %825 = vmatprep.subr.mxu0 0.0
    %826 = vmatpush1.xpose.msra.mxu0 0.0
    %827 = vmatprep.subr.mxu0 0.0
    %828 = vmatpush1.xpose.msra.mxu0 0.0
    %829 = vmatprep.subr.mxu0 0.0
    %830 = vmatpush1.xpose.msra.mxu0 0.0
    %831 = vmatprep.subr.mxu0 0.0
    %832 = vmatpush1.xpose.msra.mxu0 0.0
    %833 = vmatprep.subr.mxu0 0.0
    %834 = vmatpush1.xpose.msra.mxu0 0.0
    %835 = vmatprep.subr.mxu0 0.0
    %836 = vmatpush1.xpose.msra.mxu0 0.0
    %837 = vmatprep.subr.mxu0 0.0
    %838 = vmatpush1.xpose.msra.mxu0 0.0
    %839 = vmatprep.subr.mxu0 0.0
    %840 = vmatpush1.xpose.msra.mxu0 0.0
    %841 = vmatprep.subr.mxu0 0.0
    %842 = vmatpush1.xpose.msra.mxu0 0.0
    %843 = vmatprep.subr.mxu0 0.0
    %844 = vmatpush1.xpose.msra.mxu0 0.0
    %845 = vmatprep.subr.mxu0 0.0
    %846 = vmatpush1.xpose.msra.mxu0 0.0
    %847 = vmatprep.subr.mxu0 0.0
    %848 = vmatpush1.xpose.msra.mxu0 0.0
    %849 = vmatprep.subr.mxu0 0.0
    %850 = vmatpush1.xpose.msra.mxu0 0.0
    %851 = vmatprep.subr.mxu0 0.0
    %852 = vmatpush1.xpose.msra.mxu0 0.0
    %853 = vmatprep.subr.mxu0 0.0
    %854 = vmatpush1.xpose.msra.mxu0 0.0
    %855 = vmatprep.subr.mxu0 0.0
    %856 = vmatpush1.xpose.msra.mxu0 0.0
    %857 = vmatprep.subr.mxu0 0.0
    %858 = vmatpush1.xpose.msra.mxu0 0.0
    %859 = vmatprep.subr.mxu0 0.0
    %860 = vmatpush1.xpose.msra.mxu0 0.0
    %861 = vmatprep.subr.mxu0 0.0
    %862 = vmatpush1.xpose.msra.mxu0 0.0
    %863 = vmatprep.subr.mxu0 0.0
    %864 = vmatpush1.xpose.msra.mxu0 0.0
    %865 = vmatprep.subr.mxu0 0.0
    %866 = vmatpush1.xpose.msra.mxu0 0.0
    %867 = vmatprep.subr.mxu0 0.0
    %868 = vmatpush1.xpose.msra.mxu0 0.0
    %869 = vmatprep.subr.mxu0 0.0
    %870 = vmatpush1.xpose.msra.mxu0 0.0
    %871 = vmatprep.subr.mxu0 0.0
    %872 = vmatpush1.xpose.msra.mxu0 0.0
    %873 = vmatprep.subr.mxu0 0.0
    %874 = vmatpush1.xpose.msra.mxu0 0.0
    %875 = vmatprep.subr.mxu0 0.0
    %876 = vmatpush1.xpose.msra.mxu0 0.0
    %877 = vmatprep.subr.mxu0 0.0
    %878 = vmatpush1.xpose.msra.mxu0 0.0
    %879 = vmatprep.mubr.f32.mxu0 0.0
    %880 = vmatmul.mubr.f32.gmra.mrb[0].mxu0 %v807
    %v881 = vpop.f32.mrb[0].mxu0
    %v882 = vadd.f32 0.0, %v881
    %v883 = vpop.f32.mrb[0].mxu0
    %884 = vmatprep.mubr.f32.mxu0 0.0
    %885 = vmatmul.mubr.f32.gmra.mrb[0].mxu0 %v809
    %v886 = vpop.f32.mrb[0].mxu0
    %v887 = vadd.f32 0.0, %v886
    %v888 = vpop.f32.mrb[0].mxu0
    %889 = vdwg.mxu0
    %v890 = vmul.f32 %v791, 0.35355338
    %v891 = vmul.f32 %v796, 0.35355338
    %v892 = vmul.f32 %v882, 0.35355338
    %v893 = vmul.f32 %v887, 0.35355338
    %v894 = vadd.f32 %v890, %v477
    %v895 = vadd.f32 %v891, %v477
    %v896 = vadd.f32 %v892, %v481
    %v897 = vadd.f32 %v893, %v481
    %v898 = vsel %vm488, %v894, -inf
    %899 = vmax.xlane.f32.xlu0 %v898
    %v900 = vpop.xlane.xlu0 %899
    %v901 = vsel %vm488, %v895, -inf
    %902 = vmax.xlane.f32.xlu0 %v901
    %v903 = vpop.xlane.xlu0 %902
    %v904 = vsel %vm488, %v896, -inf
    %905 = vmax.xlane.f32.xlu0 %v904
    %v906 = vpop.xlane.xlu0 %905
    %v907 = vsel %vm488, %v897, -inf
    %908 = vmax.xlane.f32.xlu0 %v907
    %v909 = vpop.xlane.xlu0 %908
    %v910 = vsub.f32 %v894, %v900
    %v911 = vsub.f32 %v895, %v903
    %v912 = vsub.f32 %v896, %v906
    %v913 = vsub.f32 %v897, %v909
    %v914 = vmul.f32 %v910, 1.442695
    %v915 = vpow.pop %v914
    %v916 = vmul.f32 %v911, 1.442695
    %v917 = vpow.pop %v916
    %v918 = vmul.f32 %v912, 1.442695
    %v919 = vpow.pop %v918
    %v920 = vmul.f32 %v913, 1.442695
    %v921 = vpow.pop %v920
    %v922 = vsel %vm488, %v915, 0.0
    %923 = vadd.xlane.f32.xlu0 %v922
    %v924 = vpop.xlane.xlu0 %923
    %v925 = vsel %vm488, %v917, 0.0
    %926 = vadd.xlane.f32.xlu0 %v925
    %v927 = vpop.xlane.xlu0 %926
    %v928 = vsel %vm488, %v919, 0.0
    %929 = vadd.xlane.f32.xlu0 %v928
    %v930 = vpop.xlane.xlu0 %929
    %v931 = vsel %vm488, %v921, 0.0
    %932 = vadd.xlane.f32.xlu0 %v931
    %v933 = vpop.xlane.xlu0 %932
    %v934 = vrcp.pop %v924
    %v935 = vrcp.pop %v927
    %v936 = vrcp.pop %v930
    %v937 = vrcp.pop %v933
    %v938 = vmul.f32 %v915, %v934
    %v939 = vmul.f32 %v917, %v935
    %v940 = vmul.f32 %v919, %v936
    %v941 = vmul.f32 %v921, %v937
    %942 = vrot.lane.b32.xlu0 %v273, 56
    %v943 = vpop.permute.xlu0 %942
    %944 = vrot.lane.b32.xlu0 %v278, 56
    %v945 = vpop.permute.xlu0 %944
    %v949 = vsel %vm488, %v938, 0
    %v952 = vsel %vm488, %v939, 0
    %954 = vmatprep.subr.mxu0 0.0
    %955 = vmatpush1.msra.mxu0 %v943
    %956 = vmatprep.subr.mxu0 0.0
    %957 = vmatpush1.msra.mxu0 %v945
    %958 = vmatprep.subr.mxu0 0.0
    %959 = vmatpush1.msra.mxu0 0.0
    %960 = vmatprep.subr.mxu0 0.0
    %961 = vmatpush1.msra.mxu0 0.0
    %962 = vmatprep.subr.mxu0 0.0
    %963 = vmatpush1.msra.mxu0 0.0
    %964 = vmatprep.subr.mxu0 0.0
    %965 = vmatpush1.msra.mxu0 0.0
    %966 = vmatprep.subr.mxu0 0.0
    %967 = vmatpush1.msra.mxu0 0.0
    %968 = vmatprep.subr.mxu0 0.0
    %969 = vmatpush1.msra.mxu0 0.0
    %970 = vmatprep.subr.mxu0 0.0
    %971 = vmatpush1.msra.mxu0 0.0
    %972 = vmatprep.subr.mxu0 0.0
    %973 = vmatpush1.msra.mxu0 0.0
    %974 = vmatprep.subr.mxu0 0.0
    %975 = vmatpush1.msra.mxu0 0.0
    %976 = vmatprep.subr.mxu0 0.0
    %977 = vmatpush1.msra.mxu0 0.0
    %978 = vmatprep.subr.mxu0 0.0
    %979 = vmatpush1.msra.mxu0 0.0
    %980 = vmatprep.subr.mxu0 0.0
    %981 = vmatpush1.msra.mxu0 0.0
    %982 = vmatprep.subr.mxu0 0.0
    %983 = vmatpush1.msra.mxu0 0.0
    %984 = vmatprep.subr.mxu0 0.0
    %985 = vmatpush1.msra.mxu0 0.0
    %986 = vmatprep.subr.mxu0 0.0
    %987 = vmatpush1.msra.mxu0 0.0
    %988 = vmatprep.subr.mxu0 0.0
    %989 = vmatpush1.msra.mxu0 0.0
    %990 = vmatprep.subr.mxu0 0.0
    %991 = vmatpush1.msra.mxu0 0.0
    %992 = vmatprep.subr.mxu0 0.0
    %993 = vmatpush1.msra.mxu0 0.0
    %994 = vmatprep.subr.mxu0 0.0
    %995 = vmatpush1.msra.mxu0 0.0
    %996 = vmatprep.subr.mxu0 0.0
    %997 = vmatpush1.msra.mxu0 0.0
    %998 = vmatprep.subr.mxu0 0.0
    %999 = vmatpush1.msra.mxu0 0.0
    %1000 = vmatprep.subr.mxu0 0.0
    %1001 = vmatpush1.msra.mxu0 0.0
    %1002 = vmatprep.subr.mxu0 0.0
    %1003 = vmatpush1.msra.mxu0 0.0
    %1004 = vmatprep.subr.mxu0 0.0
    %1005 = vmatpush1.msra.mxu0 0.0
    %1006 = vmatprep.subr.mxu0 0.0
    %1007 = vmatpush1.msra.mxu0 0.0
    %1008 = vmatprep.subr.mxu0 0.0
    %1009 = vmatpush1.msra.mxu0 0.0
    %1010 = vmatprep.subr.mxu0 0.0
    %1011 = vmatpush1.msra.mxu0 0.0
    %1012 = vmatprep.subr.mxu0 0.0
    %1013 = vmatpush1.msra.mxu0 0.0
    %1014 = vmatprep.subr.mxu0 0.0
    %1015 = vmatpush1.msra.mxu0 0.0
    %1016 = vmatprep.subr.mxu0 0.0
    %1017 = vmatpush1.msra.mxu0 0.0
    %1018 = vmatprep.mubr.f32.mxu0 0.0
    %1019 = vmatmul.mubr.f32.gmra.mrb[0].mxu0 %v949
    %v1020 = vpop.f32.mrb[0].mxu0
    %v1021 = vadd.f32 0.0, %v1020
    %v1022 = vpop.f32.mrb[0].mxu0
    %1023 = vmatprep.mubr.f32.mxu0 0.0
    %1024 = vmatmul.mubr.f32.gmra.mrb[0].mxu0 %v952
    %v1025 = vpop.f32.mrb[0].mxu0
    %v1026 = vadd.f32 0.0, %v1025
    %v1027 = vpop.f32.mrb[0].mxu0
    %1028 = vdwg.mxu0
    %1029 = vrot.lane.b32.xlu0 %v283, 56
    %v1030 = vpop.permute.xlu0 %1029
    %1031 = vrot.lane.b32.xlu0 %v288, 56
    %v1032 = vpop.permute.xlu0 %1031
    %v1036 = vsel %vm488, %v940, 0
    %v1039 = vsel %vm488, %v941, 0
    %1041 = vmatprep.subr.mxu0 0.0
    %1042 = vmatpush1.msra.mxu0 %v1030
    %1043 = vmatprep.subr.mxu0 0.0
    %1044 = vmatpush1.msra.mxu0 %v1032
    %1045 = vmatprep.subr.mxu0 0.0
    %1046 = vmatpush1.msra.mxu0 0.0
    %1047 = vmatprep.subr.mxu0 0.0
    %1048 = vmatpush1.msra.mxu0 0.0
    %1049 = vmatprep.subr.mxu0 0.0
    %1050 = vmatpush1.msra.mxu0 0.0
    %1051 = vmatprep.subr.mxu0 0.0
    %1052 = vmatpush1.msra.mxu0 0.0
    %1053 = vmatprep.subr.mxu0 0.0
    %1054 = vmatpush1.msra.mxu0 0.0
    %1055 = vmatprep.subr.mxu0 0.0
    %1056 = vmatpush1.msra.mxu0 0.0
    %1057 = vmatprep.subr.mxu0 0.0
    %1058 = vmatpush1.msra.mxu0 0.0
    %1059 = vmatprep.subr.mxu0 0.0
    %1060 = vmatpush1.msra.mxu0 0.0
    %1061 = vmatprep.subr.mxu0 0.0
    %1062 = vmatpush1.msra.mxu0 0.0
    %1063 = vmatprep.subr.mxu0 0.0
    %1064 = vmatpush1.msra.mxu0 0.0
    %1065 = vmatprep.subr.mxu0 0.0
    %1066 = vmatpush1.msra.mxu0 0.0
    %1067 = vmatprep.subr.mxu0 0.0
    %1068 = vmatpush1.msra.mxu0 0.0
    %1069 = vmatprep.subr.mxu0 0.0
    %1070 = vmatpush1.msra.mxu0 0.0
    %1071 = vmatprep.subr.mxu0 0.0
    %1072 = vmatpush1.msra.mxu0 0.0
    %1073 = vmatprep.subr.mxu0 0.0
    %1074 = vmatpush1.msra.mxu0 0.0
    %1075 = vmatprep.subr.mxu0 0.0
    %1076 = vmatpush1.msra.mxu0 0.0
    %1077 = vmatprep.subr.mxu0 0.0
    %1078 = vmatpush1.msra.mxu0 0.0
    %1079 = vmatprep.subr.mxu0 0.0
    %1080 = vmatpush1.msra.mxu0 0.0
    %1081 = vmatprep.subr.mxu0 0.0
    %1082 = vmatpush1.msra.mxu0 0.0
    %1083 = vmatprep.subr.mxu0 0.0
    %1084 = vmatpush1.msra.mxu0 0.0
    %1085 = vmatprep.subr.mxu0 0.0
    %1086 = vmatpush1.msra.mxu0 0.0
    %1087 = vmatprep.subr.mxu0 0.0
    %1088 = vmatpush1.msra.mxu0 0.0
    %1089 = vmatprep.subr.mxu0 0.0
    %1090 = vmatpush1.msra.mxu0 0.0
    %1091 = vmatprep.subr.mxu0 0.0
    %1092 = vmatpush1.msra.mxu0 0.0
    %1093 = vmatprep.subr.mxu0 0.0
    %1094 = vmatpush1.msra.mxu0 0.0
    %1095 = vmatprep.subr.mxu0 0.0
    %1096 = vmatpush1.msra.mxu0 0.0
    %1097 = vmatprep.subr.mxu0 0.0
    %1098 = vmatpush1.msra.mxu0 0.0
    %1099 = vmatprep.subr.mxu0 0.0
    %1100 = vmatpush1.msra.mxu0 0.0
    %1101 = vmatprep.subr.mxu0 0.0
    %1102 = vmatpush1.msra.mxu0 0.0
    %1103 = vmatprep.subr.mxu0 0.0
    %1104 = vmatpush1.msra.mxu0 0.0
    %1105 = vmatprep.mubr.f32.mxu0 0.0
    %1106 = vmatmul.mubr.f32.gmra.mrb[0].mxu0 %v1036
    %v1107 = vpop.f32.mrb[0].mxu0
    %v1108 = vadd.f32 0.0, %v1107
    %v1109 = vpop.f32.mrb[0].mxu0
    %1110 = vmatprep.mubr.f32.mxu0 0.0
    %1111 = vmatmul.mubr.f32.gmra.mrb[0].mxu0 %v1039
    %v1112 = vpop.f32.mrb[0].mxu0
    %v1113 = vadd.f32 0.0, %v1112
    %v1114 = vpop.f32.mrb[0].mxu0
    %1115 = vdwg.mxu0
    %v1116 = vld [vmem:[%s5 + $0x8] sm:$0xff]
    %v1118 = vsel %vm297, %v1021, 0
    %v1121 = vsel %vm297, %v1026, 0
    %v1124 = vsel %vm297, %v1108, 0
    %v1127 = vsel %vm297, %v1113, 0
    %1129 = vmatprep.subr.mxu0 0.0
    %1130 = vmatpush1.msra.mxu0 %v1116
    %1131 = vmatprep.subr.mxu0 0.0
    %1132 = vmatpush1.msra.mxu0 0.0
    %1133 = vmatprep.subr.mxu0 0.0
    %1134 = vmatpush1.msra.mxu0 0.0
    %1135 = vmatprep.subr.mxu0 0.0
    %1136 = vmatpush1.msra.mxu0 0.0
    %1137 = vmatprep.subr.mxu0 0.0
    %1138 = vmatpush1.msra.mxu0 0.0
    %1139 = vmatprep.subr.mxu0 0.0
    %1140 = vmatpush1.msra.mxu0 0.0
    %1141 = vmatprep.subr.mxu0 0.0
    %1142 = vmatpush1.msra.mxu0 0.0
    %1143 = vmatprep.subr.mxu0 0.0
    %1144 = vmatpush1.msra.mxu0 0.0
    %1145 = vmatprep.subr.mxu0 0.0
    %1146 = vmatpush1.msra.mxu0 0.0
    %1147 = vmatprep.subr.mxu0 0.0
    %1148 = vmatpush1.msra.mxu0 0.0
    %1149 = vmatprep.subr.mxu0 0.0
    %1150 = vmatpush1.msra.mxu0 0.0
    %1151 = vmatprep.subr.mxu0 0.0
    %1152 = vmatpush1.msra.mxu0 0.0
    %1153 = vmatprep.subr.mxu0 0.0
    %1154 = vmatpush1.msra.mxu0 0.0
    %1155 = vmatprep.subr.mxu0 0.0
    %1156 = vmatpush1.msra.mxu0 0.0
    %1157 = vmatprep.subr.mxu0 0.0
    %1158 = vmatpush1.msra.mxu0 0.0
    %1159 = vmatprep.subr.mxu0 0.0
    %1160 = vmatpush1.msra.mxu0 0.0
    %1161 = vmatprep.subr.mxu0 0.0
    %1162 = vmatpush1.msra.mxu0 0.0
    %1163 = vmatprep.subr.mxu0 0.0
    %1164 = vmatpush1.msra.mxu0 0.0
    %1165 = vmatprep.subr.mxu0 0.0
    %1166 = vmatpush1.msra.mxu0 0.0
    %1167 = vmatprep.subr.mxu0 0.0
    %1168 = vmatpush1.msra.mxu0 0.0
    %1169 = vmatprep.subr.mxu0 0.0
    %1170 = vmatpush1.msra.mxu0 0.0
    %1171 = vmatprep.subr.mxu0 0.0
    %1172 = vmatpush1.msra.mxu0 0.0
    %1173 = vmatprep.subr.mxu0 0.0
    %1174 = vmatpush1.msra.mxu0 0.0
    %1175 = vmatprep.subr.mxu0 0.0
    %1176 = vmatpush1.msra.mxu0 0.0
    %1177 = vmatprep.subr.mxu0 0.0
    %1178 = vmatpush1.msra.mxu0 0.0
    %1179 = vmatprep.subr.mxu0 0.0
    %1180 = vmatpush1.msra.mxu0 0.0
    %1181 = vmatprep.subr.mxu0 0.0
    %1182 = vmatpush1.msra.mxu0 0.0
    %1183 = vmatprep.subr.mxu0 0.0
    %1184 = vmatpush1.msra.mxu0 0.0
    %1185 = vmatprep.subr.mxu0 0.0
    %1186 = vmatpush1.msra.mxu0 0.0
    %1187 = vmatprep.subr.mxu0 0.0
    %1188 = vmatpush1.msra.mxu0 0.0
    %1189 = vmatprep.subr.mxu0 0.0
    %1190 = vmatpush1.msra.mxu0 0.0
    %1191 = vmatprep.subr.mxu0 0.0
    %1192 = vmatpush1.msra.mxu0 0.0
    %1193 = vmatprep.mubr.f32.mxu0 0.0
    %1194 = vmatmul.mubr.f32.gmra.mrb[0].mxu0 %v1118
    %v1195 = vpop.f32.mrb[0].mxu0
    %v1196 = vadd.f32 0.0, %v1195
    %v1197 = vpop.f32.mrb[0].mxu0
    %1198 = vmatprep.mubr.f32.mxu0 0.0
    %1199 = vmatmul.mubr.f32.gmra.mrb[0].mxu0 %v1121
    %v1200 = vpop.f32.mrb[0].mxu0
    %v1201 = vadd.f32 0.0, %v1200
    %v1202 = vpop.f32.mrb[0].mxu0
    %1203 = vmatprep.mubr.f32.mxu0 0.0
    %1204 = vmatmul.mubr.f32.gmra.mrb[0].mxu0 %v1124
    %v1205 = vpop.f32.mrb[0].mxu0
    %v1206 = vadd.f32 0.0, %v1205
    %v1207 = vpop.f32.mrb[0].mxu0
    %1208 = vmatprep.mubr.f32.mxu0 0.0
    %1209 = vmatmul.mubr.f32.gmra.mrb[0].mxu0 %v1127
    %v1210 = vpop.f32.mrb[0].mxu0
    %v1211 = vadd.f32 0.0, %v1210
    %v1212 = vpop.f32.mrb[0].mxu0
    %1213 = vdwg.mxu0
    %v1215 = vsel %vm297, %v612, 0
    %v1218 = vsel %vm297, %v617, 0
    %v1221 = vsel %vm297, %v699, 0
    %v1224 = vsel %vm297, %v704, 0
    %1226 = vmatprep.subr.mxu0 0.0
    %1227 = vmatpush1.msra.mxu0 %v707
    %1228 = vmatprep.subr.mxu0 0.0
    %1229 = vmatpush1.msra.mxu0 0.0
    %1230 = vmatprep.subr.mxu0 0.0
    %1231 = vmatpush1.msra.mxu0 0.0
    %1232 = vmatprep.subr.mxu0 0.0
    %1233 = vmatpush1.msra.mxu0 0.0
    %1234 = vmatprep.subr.mxu0 0.0
    %1235 = vmatpush1.msra.mxu0 0.0
    %1236 = vmatprep.subr.mxu0 0.0
    %1237 = vmatpush1.msra.mxu0 0.0
    %1238 = vmatprep.subr.mxu0 0.0
    %1239 = vmatpush1.msra.mxu0 0.0
    %1240 = vmatprep.subr.mxu0 0.0
    %1241 = vmatpush1.msra.mxu0 0.0
    %1242 = vmatprep.subr.mxu0 0.0
    %1243 = vmatpush1.msra.mxu0 0.0
    %1244 = vmatprep.subr.mxu0 0.0
    %1245 = vmatpush1.msra.mxu0 0.0
    %1246 = vmatprep.subr.mxu0 0.0
    %1247 = vmatpush1.msra.mxu0 0.0
    %1248 = vmatprep.subr.mxu0 0.0
    %1249 = vmatpush1.msra.mxu0 0.0
    %1250 = vmatprep.subr.mxu0 0.0
    %1251 = vmatpush1.msra.mxu0 0.0
    %1252 = vmatprep.subr.mxu0 0.0
    %1253 = vmatpush1.msra.mxu0 0.0
    %1254 = vmatprep.subr.mxu0 0.0
    %1255 = vmatpush1.msra.mxu0 0.0
    %1256 = vmatprep.subr.mxu0 0.0
    %1257 = vmatpush1.msra.mxu0 0.0
    %1258 = vmatprep.subr.mxu0 0.0
    %1259 = vmatpush1.msra.mxu0 0.0
    %1260 = vmatprep.subr.mxu0 0.0
    %1261 = vmatpush1.msra.mxu0 0.0
    %1262 = vmatprep.subr.mxu0 0.0
    %1263 = vmatpush1.msra.mxu0 0.0
    %1264 = vmatprep.subr.mxu0 0.0
    %1265 = vmatpush1.msra.mxu0 0.0
    %1266 = vmatprep.subr.mxu0 0.0
    %1267 = vmatpush1.msra.mxu0 0.0
    %1268 = vmatprep.subr.mxu0 0.0
    %1269 = vmatpush1.msra.mxu0 0.0
    %1270 = vmatprep.subr.mxu0 0.0
    %1271 = vmatpush1.msra.mxu0 0.0
    %1272 = vmatprep.subr.mxu0 0.0
    %1273 = vmatpush1.msra.mxu0 0.0
    %1274 = vmatprep.subr.mxu0 0.0
    %1275 = vmatpush1.msra.mxu0 0.0
    %1276 = vmatprep.subr.mxu0 0.0
    %1277 = vmatpush1.msra.mxu0 0.0
    %1278 = vmatprep.subr.mxu0 0.0
    %1279 = vmatpush1.msra.mxu0 0.0
    %1280 = vmatprep.subr.mxu0 0.0
    %1281 = vmatpush1.msra.mxu0 0.0
    %1282 = vmatprep.subr.mxu0 0.0
    %1283 = vmatpush1.msra.mxu0 0.0
    %1284 = vmatprep.subr.mxu0 0.0
    %1285 = vmatpush1.msra.mxu0 0.0
    %1286 = vmatprep.subr.mxu0 0.0
    %1287 = vmatpush1.msra.mxu0 0.0
    %1288 = vmatprep.subr.mxu0 0.0
    %1289 = vmatpush1.msra.mxu0 0.0
    %1290 = vmatprep.mubr.f32.mxu0 0.0
    %1291 = vmatmul.mubr.f32.gmra.mrb[0].mxu0 %v1215
    %v1292 = vpop.f32.mrb[0].mxu0
    %v1293 = vadd.f32 %v1196, %v1292
    %v1294 = vpop.f32.mrb[0].mxu0
    %1295 = vmatprep.mubr.f32.mxu0 0.0
    %1296 = vmatmul.mubr.f32.gmra.mrb[0].mxu0 %v1218
    %v1297 = vpop.f32.mrb[0].mxu0
    %v1298 = vadd.f32 %v1201, %v1297
    %v1299 = vpop.f32.mrb[0].mxu0
    %1300 = vmatprep.mubr.f32.mxu0 0.0
    %1301 = vmatmul.mubr.f32.gmra.mrb[0].mxu0 %v1221
    %v1302 = vpop.f32.mrb[0].mxu0
    %v1303 = vadd.f32 %v1206, %v1302
    %v1304 = vpop.f32.mrb[0].mxu0
    %1305 = vmatprep.mubr.f32.mxu0 0.0
    %1306 = vmatmul.mubr.f32.gmra.mrb[0].mxu0 %v1224
    %v1307 = vpop.f32.mrb[0].mxu0
    %v1308 = vadd.f32 %v1211, %v1307
    %v1309 = vpop.f32.mrb[0].mxu0
    %1310 = vdwg.mxu0
    %1311 = vrot.lane.b32.xlu0 %v273, 112
    %v1312 = vpop.permute.xlu0 %1311
    %1313 = vrot.lane.b32.xlu0 %v278, 112
    %v1314 = vpop.permute.xlu0 %1313
    %1315 = vrot.lane.b32.xlu0 %v273, 80
    %v1316 = vpop.permute.xlu0 %1315
    %1317 = vrot.lane.b32.xlu0 %v278, 80
    %v1318 = vpop.permute.xlu0 %1317
    %v1319 = vsel %vm297, %v1312, 0
    %v1321 = vsel %vm297, %v1314, 0
    %v1323 = vsel %vm297, %v1316, 0
    %v1325 = vsel %vm297, %v1318, 0
    %1327 = vmatprep.subr.mxu0 0.0
    %1328 = vmatpush1.xpose.msra.mxu0 %v1323
    %1329 = vmatprep.subr.mxu0 0.0
    %1330 = vmatpush1.xpose.msra.mxu0 %v1325
    %1331 = vmatprep.subr.mxu0 0.0
    %1332 = vmatpush1.xpose.msra.mxu0 0.0
    %1333 = vmatprep.subr.mxu0 0.0
    %1334 = vmatpush1.xpose.msra.mxu0 0.0
    %1335 = vmatprep.subr.mxu0 0.0
    %1336 = vmatpush1.xpose.msra.mxu0 0.0
    %1337 = vmatprep.subr.mxu0 0.0
    %1338 = vmatpush1.xpose.msra.mxu0 0.0
    %1339 = vmatprep.subr.mxu0 0.0
    %1340 = vmatpush1.xpose.msra.mxu0 0.0
    %1341 = vmatprep.subr.mxu0 0.0
    %1342 = vmatpush1.xpose.msra.mxu0 0.0
    %1343 = vmatprep.subr.mxu0 0.0
    %1344 = vmatpush1.xpose.msra.mxu0 0.0
    %1345 = vmatprep.subr.mxu0 0.0
    %1346 = vmatpush1.xpose.msra.mxu0 0.0
    %1347 = vmatprep.subr.mxu0 0.0
    %1348 = vmatpush1.xpose.msra.mxu0 0.0
    %1349 = vmatprep.subr.mxu0 0.0
    %1350 = vmatpush1.xpose.msra.mxu0 0.0
    %1351 = vmatprep.subr.mxu0 0.0
    %1352 = vmatpush1.xpose.msra.mxu0 0.0
    %1353 = vmatprep.subr.mxu0 0.0
    %1354 = vmatpush1.xpose.msra.mxu0 0.0
    %1355 = vmatprep.subr.mxu0 0.0
    %1356 = vmatpush1.xpose.msra.mxu0 0.0
    %1357 = vmatprep.subr.mxu0 0.0
    %1358 = vmatpush1.xpose.msra.mxu0 0.0
    %1359 = vmatprep.subr.mxu0 0.0
    %1360 = vmatpush1.xpose.msra.mxu0 0.0
    %1361 = vmatprep.subr.mxu0 0.0
    %1362 = vmatpush1.xpose.msra.mxu0 0.0
    %1363 = vmatprep.subr.mxu0 0.0
    %1364 = vmatpush1.xpose.msra.mxu0 0.0
    %1365 = vmatprep.subr.mxu0 0.0
    %1366 = vmatpush1.xpose.msra.mxu0 0.0
    %1367 = vmatprep.subr.mxu0 0.0
    %1368 = vmatpush1.xpose.msra.mxu0 0.0
    %1369 = vmatprep.subr.mxu0 0.0
    %1370 = vmatpush1.xpose.msra.mxu0 0.0
    %1371 = vmatprep.subr.mxu0 0.0
    %1372 = vmatpush1.xpose.msra.mxu0 0.0
    %1373 = vmatprep.subr.mxu0 0.0
    %1374 = vmatpush1.xpose.msra.mxu0 0.0
    %1375 = vmatprep.subr.mxu0 0.0
    %1376 = vmatpush1.xpose.msra.mxu0 0.0
    %1377 = vmatprep.subr.mxu0 0.0
    %1378 = vmatpush1.xpose.msra.mxu0 0.0
    %1379 = vmatprep.subr.mxu0 0.0
    %1380 = vmatpush1.xpose.msra.mxu0 0.0
    %1381 = vmatprep.subr.mxu0 0.0
    %1382 = vmatpush1.xpose.msra.mxu0 0.0
    %1383 = vmatprep.subr.mxu0 0.0
    %1384 = vmatpush1.xpose.msra.mxu0 0.0
    %1385 = vmatprep.subr.mxu0 0.0
    %1386 = vmatpush1.xpose.msra.mxu0 0.0
    %1387 = vmatprep.subr.mxu0 0.0
    %1388 = vmatpush1.xpose.msra.mxu0 0.0
    %1389 = vmatprep.subr.mxu0 0.0
    %1390 = vmatpush1.xpose.msra.mxu0 0.0
    %1391 = vmatprep.mubr.f32.mxu0 0.0
    %1392 = vmatmul.mubr.f32.gmra.mrb[0].mxu0 %v1319
    %v1393 = vpop.f32.mrb[0].mxu0
    %v1394 = vadd.f32 0.0, %v1393
    %v1395 = vpop.f32.mrb[0].mxu0
    %1396 = vmatprep.mubr.f32.mxu0 0.0
    %1397 = vmatmul.mubr.f32.gmra.mrb[0].mxu0 %v1321
    %v1398 = vpop.f32.mrb[0].mxu0
    %v1399 = vadd.f32 0.0, %v1398
    %v1400 = vpop.f32.mrb[0].mxu0
    %1401 = vdwg.mxu0
    %1402 = vrot.lane.b32.xlu0 %v283, 112
    %v1403 = vpop.permute.xlu0 %1402
    %1404 = vrot.lane.b32.xlu0 %v288, 112
    %v1405 = vpop.permute.xlu0 %1404
    %1406 = vrot.lane.b32.xlu0 %v283, 80
    %v1407 = vpop.permute.xlu0 %1406
    %1408 = vrot.lane.b32.xlu0 %v288, 80
    %v1409 = vpop.permute.xlu0 %1408
    %v1410 = vsel %vm297, %v1403, 0
    %v1412 = vsel %vm297, %v1405, 0
    %v1414 = vsel %vm297, %v1407, 0
    %v1416 = vsel %vm297, %v1409, 0
    %1418 = vmatprep.subr.mxu0 0.0
    %1419 = vmatpush1.xpose.msra.mxu0 %v1414
    %1420 = vmatprep.subr.mxu0 0.0
    %1421 = vmatpush1.xpose.msra.mxu0 %v1416
    %1422 = vmatprep.subr.mxu0 0.0
    %1423 = vmatpush1.xpose.msra.mxu0 0.0
    %1424 = vmatprep.subr.mxu0 0.0
    %1425 = vmatpush1.xpose.msra.mxu0 0.0
    %1426 = vmatprep.subr.mxu0 0.0
    %1427 = vmatpush1.xpose.msra.mxu0 0.0
    %1428 = vmatprep.subr.mxu0 0.0
    %1429 = vmatpush1.xpose.msra.mxu0 0.0
    %1430 = vmatprep.subr.mxu0 0.0
    %1431 = vmatpush1.xpose.msra.mxu0 0.0
    %1432 = vmatprep.subr.mxu0 0.0
    %1433 = vmatpush1.xpose.msra.mxu0 0.0
    %1434 = vmatprep.subr.mxu0 0.0
    %1435 = vmatpush1.xpose.msra.mxu0 0.0
    %1436 = vmatprep.subr.mxu0 0.0
    %1437 = vmatpush1.xpose.msra.mxu0 0.0
    %1438 = vmatprep.subr.mxu0 0.0
    %1439 = vmatpush1.xpose.msra.mxu0 0.0
    %1440 = vmatprep.subr.mxu0 0.0
    %1441 = vmatpush1.xpose.msra.mxu0 0.0
    %1442 = vmatprep.subr.mxu0 0.0
    %1443 = vmatpush1.xpose.msra.mxu0 0.0
    %1444 = vmatprep.subr.mxu0 0.0
    %1445 = vmatpush1.xpose.msra.mxu0 0.0
    %1446 = vmatprep.subr.mxu0 0.0
    %1447 = vmatpush1.xpose.msra.mxu0 0.0
    %1448 = vmatprep.subr.mxu0 0.0
    %1449 = vmatpush1.xpose.msra.mxu0 0.0
    %1450 = vmatprep.subr.mxu0 0.0
    %1451 = vmatpush1.xpose.msra.mxu0 0.0
    %1452 = vmatprep.subr.mxu0 0.0
    %1453 = vmatpush1.xpose.msra.mxu0 0.0
    %1454 = vmatprep.subr.mxu0 0.0
    %1455 = vmatpush1.xpose.msra.mxu0 0.0
    %1456 = vmatprep.subr.mxu0 0.0
    %1457 = vmatpush1.xpose.msra.mxu0 0.0
    %1458 = vmatprep.subr.mxu0 0.0
    %1459 = vmatpush1.xpose.msra.mxu0 0.0
    %1460 = vmatprep.subr.mxu0 0.0
    %1461 = vmatpush1.xpose.msra.mxu0 0.0
    %1462 = vmatprep.subr.mxu0 0.0
    %1463 = vmatpush1.xpose.msra.mxu0 0.0
    %1464 = vmatprep.subr.mxu0 0.0
    %1465 = vmatpush1.xpose.msra.mxu0 0.0
    %1466 = vmatprep.subr.mxu0 0.0
    %1467 = vmatpush1.xpose.msra.mxu0 0.0
    %1468 = vmatprep.subr.mxu0 0.0
    %1469 = vmatpush1.xpose.msra.mxu0 0.0
    %1470 = vmatprep.subr.mxu0 0.0
    %1471 = vmatpush1.xpose.msra.mxu0 0.0
    %1472 = vmatprep.subr.mxu0 0.0
    %1473 = vmatpush1.xpose.msra.mxu0 0.0
    %1474 = vmatprep.subr.mxu0 0.0
    %1475 = vmatpush1.xpose.msra.mxu0 0.0
    %1476 = vmatprep.subr.mxu0 0.0
    %1477 = vmatpush1.xpose.msra.mxu0 0.0
    %1478 = vmatprep.subr.mxu0 0.0
    %1479 = vmatpush1.xpose.msra.mxu0 0.0
    %1480 = vmatprep.subr.mxu0 0.0
    %1481 = vmatpush1.xpose.msra.mxu0 0.0
    %1482 = vmatprep.mubr.f32.mxu0 0.0
    %1483 = vmatmul.mubr.f32.gmra.mrb[0].mxu0 %v1410
    %v1484 = vpop.f32.mrb[0].mxu0
    %v1485 = vadd.f32 0.0, %v1484
    %v1486 = vpop.f32.mrb[0].mxu0
    %1487 = vmatprep.mubr.f32.mxu0 0.0
    %1488 = vmatmul.mubr.f32.gmra.mrb[0].mxu0 %v1412
    %v1489 = vpop.f32.mrb[0].mxu0
    %v1490 = vadd.f32 0.0, %v1489
    %v1491 = vpop.f32.mrb[0].mxu0
    %1492 = vdwg.mxu0
    %v1493 = vmul.f32 %v1394, 0.35355338
    %v1494 = vmul.f32 %v1399, 0.35355338
    %v1495 = vmul.f32 %v1485, 0.35355338
    %v1496 = vmul.f32 %v1490, 0.35355338
    %v1497 = vadd.f32 %v1493, %v477
    %v1498 = vadd.f32 %v1494, %v477
    %v1499 = vadd.f32 %v1495, %v481
    %v1500 = vadd.f32 %v1496, %v481
    %v1501 = vsel %vm488, %v1497, -inf
    %1502 = vmax.xlane.f32.xlu0 %v1501
    %v1503 = vpop.xlane.xlu0 %1502
    %v1504 = vsel %vm488, %v1498, -inf
    %1505 = vmax.xlane.f32.xlu0 %v1504
    %v1506 = vpop.xlane.xlu0 %1505
    %v1507 = vsel %vm488, %v1499, -inf
    %1508 = vmax.xlane.f32.xlu0 %v1507
    %v1509 = vpop.xlane.xlu0 %1508
    %v1510 = vsel %vm488, %v1500, -inf
    %1511 = vmax.xlane.f32.xlu0 %v1510
    %v1512 = vpop.xlane.xlu0 %1511
    %v1513 = vsub.f32 %v1497, %v1503
    %v1514 = vsub.f32 %v1498, %v1506
    %v1515 = vsub.f32 %v1499, %v1509
    %v1516 = vsub.f32 %v1500, %v1512
    %v1517 = vmul.f32 %v1513, 1.442695
    %v1518 = vpow.pop %v1517
    %v1519 = vmul.f32 %v1514, 1.442695
    %v1520 = vpow.pop %v1519
    %v1521 = vmul.f32 %v1515, 1.442695
    %v1522 = vpow.pop %v1521
    %v1523 = vmul.f32 %v1516, 1.442695
    %v1524 = vpow.pop %v1523
    %v1525 = vsel %vm488, %v1518, 0.0
    %1526 = vadd.xlane.f32.xlu0 %v1525
    %v1527 = vpop.xlane.xlu0 %1526
    %v1528 = vsel %vm488, %v1520, 0.0
    %1529 = vadd.xlane.f32.xlu0 %v1528
    %v1530 = vpop.xlane.xlu0 %1529
    %v1531 = vsel %vm488, %v1522, 0.0
    %1532 = vadd.xlane.f32.xlu0 %v1531
    %v1533 = vpop.xlane.xlu0 %1532
    %v1534 = vsel %vm488, %v1524, 0.0
    %1535 = vadd.xlane.f32.xlu0 %v1534
    %v1536 = vpop.xlane.xlu0 %1535
    %v1537 = vrcp.pop %v1527
    %v1538 = vrcp.pop %v1530
    %v1539 = vrcp.pop %v1533
    %v1540 = vrcp.pop %v1536
    %v1541 = vmul.f32 %v1518, %v1537
    %v1542 = vmul.f32 %v1520, %v1538
    %v1543 = vmul.f32 %v1522, %v1539
    %v1544 = vmul.f32 %v1524, %v1540
    %1545 = vrot.lane.b32.xlu0 %v273, 48
    %v1546 = vpop.permute.xlu0 %1545
    %1547 = vrot.lane.b32.xlu0 %v278, 48
    %v1548 = vpop.permute.xlu0 %1547
    %v1552 = vsel %vm488, %v1541, 0
    %v1555 = vsel %vm488, %v1542, 0
    %1557 = vmatprep.subr.mxu0 0.0
    %1558 = vmatpush1.msra.mxu0 %v1546
    %1559 = vmatprep.subr.mxu0 0.0
    %1560 = vmatpush1.msra.mxu0 %v1548
    %1561 = vmatprep.subr.mxu0 0.0
    %1562 = vmatpush1.msra.mxu0 0.0
    %1563 = vmatprep.subr.mxu0 0.0
    %1564 = vmatpush1.msra.mxu0 0.0
    %1565 = vmatprep.subr.mxu0 0.0
    %1566 = vmatpush1.msra.mxu0 0.0
    %1567 = vmatprep.subr.mxu0 0.0
    %1568 = vmatpush1.msra.mxu0 0.0
    %1569 = vmatprep.subr.mxu0 0.0
    %1570 = vmatpush1.msra.mxu0 0.0
    %1571 = vmatprep.subr.mxu0 0.0
    %1572 = vmatpush1.msra.mxu0 0.0
    %1573 = vmatprep.subr.mxu0 0.0
    %1574 = vmatpush1.msra.mxu0 0.0
    %1575 = vmatprep.subr.mxu0 0.0
    %1576 = vmatpush1.msra.mxu0 0.0
    %1577 = vmatprep.subr.mxu0 0.0
    %1578 = vmatpush1.msra.mxu0 0.0
    %1579 = vmatprep.subr.mxu0 0.0
    %1580 = vmatpush1.msra.mxu0 0.0
    %1581 = vmatprep.subr.mxu0 0.0
    %1582 = vmatpush1.msra.mxu0 0.0
    %1583 = vmatprep.subr.mxu0 0.0
    %1584 = vmatpush1.msra.mxu0 0.0
    %1585 = vmatprep.subr.mxu0 0.0
    %1586 = vmatpush1.msra.mxu0 0.0
    %1587 = vmatprep.subr.mxu0 0.0
    %1588 = vmatpush1.msra.mxu0 0.0
    %1589 = vmatprep.subr.mxu0 0.0
    %1590 = vmatpush1.msra.mxu0 0.0
    %1591 = vmatprep.subr.mxu0 0.0
    %1592 = vmatpush1.msra.mxu0 0.0
    %1593 = vmatprep.subr.mxu0 0.0
    %1594 = vmatpush1.msra.mxu0 0.0
    %1595 = vmatprep.subr.mxu0 0.0
    %1596 = vmatpush1.msra.mxu0 0.0
    %1597 = vmatprep.subr.mxu0 0.0
    %1598 = vmatpush1.msra.mxu0 0.0
    %1599 = vmatprep.subr.mxu0 0.0
    %1600 = vmatpush1.msra.mxu0 0.0
    %1601 = vmatprep.subr.mxu0 0.0
    %1602 = vmatpush1.msra.mxu0 0.0
    %1603 = vmatprep.subr.mxu0 0.0
    %1604 = vmatpush1.msra.mxu0 0.0
    %1605 = vmatprep.subr.mxu0 0.0
    %1606 = vmatpush1.msra.mxu0 0.0
    %1607 = vmatprep.subr.mxu0 0.0
    %1608 = vmatpush1.msra.mxu0 0.0
    %1609 = vmatprep.subr.mxu0 0.0
    %1610 = vmatpush1.msra.mxu0 0.0
    %1611 = vmatprep.subr.mxu0 0.0
    %1612 = vmatpush1.msra.mxu0 0.0
    %1613 = vmatprep.subr.mxu0 0.0
    %1614 = vmatpush1.msra.mxu0 0.0
    %1615 = vmatprep.subr.mxu0 0.0
    %1616 = vmatpush1.msra.mxu0 0.0
    %1617 = vmatprep.subr.mxu0 0.0
    %1618 = vmatpush1.msra.mxu0 0.0
    %1619 = vmatprep.subr.mxu0 0.0
    %1620 = vmatpush1.msra.mxu0 0.0
    %1621 = vmatprep.mubr.f32.mxu0 0.0
    %1622 = vmatmul.mubr.f32.gmra.mrb[0].mxu0 %v1552
    %v1623 = vpop.f32.mrb[0].mxu0
    %v1624 = vadd.f32 0.0, %v1623
    %v1625 = vpop.f32.mrb[0].mxu0
    %1626 = vmatprep.mubr.f32.mxu0 0.0
    %1627 = vmatmul.mubr.f32.gmra.mrb[0].mxu0 %v1555
    %v1628 = vpop.f32.mrb[0].mxu0
    %v1629 = vadd.f32 0.0, %v1628
    %v1630 = vpop.f32.mrb[0].mxu0
    %1631 = vdwg.mxu0
    %1632 = vrot.lane.b32.xlu0 %v283, 48
    %v1633 = vpop.permute.xlu0 %1632
    %1634 = vrot.lane.b32.xlu0 %v288, 48
    %v1635 = vpop.permute.xlu0 %1634
    %v1639 = vsel %vm488, %v1543, 0
    %v1642 = vsel %vm488, %v1544, 0
    %1644 = vmatprep.subr.mxu0 0.0
    %1645 = vmatpush1.msra.mxu0 %v1633
    %1646 = vmatprep.subr.mxu0 0.0
    %1647 = vmatpush1.msra.mxu0 %v1635
    %1648 = vmatprep.subr.mxu0 0.0
    %1649 = vmatpush1.msra.mxu0 0.0
    %1650 = vmatprep.subr.mxu0 0.0
    %1651 = vmatpush1.msra.mxu0 0.0
    %1652 = vmatprep.subr.mxu0 0.0
    %1653 = vmatpush1.msra.mxu0 0.0
    %1654 = vmatprep.subr.mxu0 0.0
    %1655 = vmatpush1.msra.mxu0 0.0
    %1656 = vmatprep.subr.mxu0 0.0
    %1657 = vmatpush1.msra.mxu0 0.0
    %1658 = vmatprep.subr.mxu0 0.0
    %1659 = vmatpush1.msra.mxu0 0.0
    %1660 = vmatprep.subr.mxu0 0.0
    %1661 = vmatpush1.msra.mxu0 0.0
    %1662 = vmatprep.subr.mxu0 0.0
    %1663 = vmatpush1.msra.mxu0 0.0
    %1664 = vmatprep.subr.mxu0 0.0
    %1665 = vmatpush1.msra.mxu0 0.0
    %1666 = vmatprep.subr.mxu0 0.0
    %1667 = vmatpush1.msra.mxu0 0.0
    %1668 = vmatprep.subr.mxu0 0.0
    %1669 = vmatpush1.msra.mxu0 0.0
    %1670 = vmatprep.subr.mxu0 0.0
    %1671 = vmatpush1.msra.mxu0 0.0
    %1672 = vmatprep.subr.mxu0 0.0
    %1673 = vmatpush1.msra.mxu0 0.0
    %1674 = vmatprep.subr.mxu0 0.0
    %1675 = vmatpush1.msra.mxu0 0.0
    %1676 = vmatprep.subr.mxu0 0.0
    %1677 = vmatpush1.msra.mxu0 0.0
    %1678 = vmatprep.subr.mxu0 0.0
    %1679 = vmatpush1.msra.mxu0 0.0
    %1680 = vmatprep.subr.mxu0 0.0
    %1681 = vmatpush1.msra.mxu0 0.0
    %1682 = vmatprep.subr.mxu0 0.0
    %1683 = vmatpush1.msra.mxu0 0.0
    %1684 = vmatprep.subr.mxu0 0.0
    %1685 = vmatpush1.msra.mxu0 0.0
    %1686 = vmatprep.subr.mxu0 0.0
    %1687 = vmatpush1.msra.mxu0 0.0
    %1688 = vmatprep.subr.mxu0 0.0
    %1689 = vmatpush1.msra.mxu0 0.0
    %1690 = vmatprep.subr.mxu0 0.0
    %1691 = vmatpush1.msra.mxu0 0.0
    %1692 = vmatprep.subr.mxu0 0.0
    %1693 = vmatpush1.msra.mxu0 0.0
    %1694 = vmatprep.subr.mxu0 0.0
    %1695 = vmatpush1.msra.mxu0 0.0
    %1696 = vmatprep.subr.mxu0 0.0
    %1697 = vmatpush1.msra.mxu0 0.0
    %1698 = vmatprep.subr.mxu0 0.0
    %1699 = vmatpush1.msra.mxu0 0.0
    %1700 = vmatprep.subr.mxu0 0.0
    %1701 = vmatpush1.msra.mxu0 0.0
    %1702 = vmatprep.subr.mxu0 0.0
    %1703 = vmatpush1.msra.mxu0 0.0
    %1704 = vmatprep.subr.mxu0 0.0
    %1705 = vmatpush1.msra.mxu0 0.0
    %1706 = vmatprep.subr.mxu0 0.0
    %1707 = vmatpush1.msra.mxu0 0.0
    %1708 = vmatprep.mubr.f32.mxu0 0.0
    %1709 = vmatmul.mubr.f32.gmra.mrb[0].mxu0 %v1639
    %v1710 = vpop.f32.mrb[0].mxu0
    %v1711 = vadd.f32 0.0, %v1710
    %v1712 = vpop.f32.mrb[0].mxu0
    %1713 = vmatprep.mubr.f32.mxu0 0.0
    %1714 = vmatmul.mubr.f32.gmra.mrb[0].mxu0 %v1642
    %v1715 = vpop.f32.mrb[0].mxu0
    %v1716 = vadd.f32 0.0, %v1715
    %v1717 = vpop.f32.mrb[0].mxu0
    %1718 = vdwg.mxu0
    %v1719 = vld [vmem:[%s5 + $0x10] sm:$0xff]
    %v1721 = vsel %vm297, %v1624, 0
    %v1724 = vsel %vm297, %v1629, 0
    %v1727 = vsel %vm297, %v1711, 0
    %v1730 = vsel %vm297, %v1716, 0
    %1732 = vmatprep.subr.mxu0 0.0
    %1733 = vmatpush1.msra.mxu0 %v1719
    %1734 = vmatprep.subr.mxu0 0.0
    %1735 = vmatpush1.msra.mxu0 0.0
    %1736 = vmatprep.subr.mxu0 0.0
    %1737 = vmatpush1.msra.mxu0 0.0
    %1738 = vmatprep.subr.mxu0 0.0
    %1739 = vmatpush1.msra.mxu0 0.0
    %1740 = vmatprep.subr.mxu0 0.0
    %1741 = vmatpush1.msra.mxu0 0.0
    %1742 = vmatprep.subr.mxu0 0.0
    %1743 = vmatpush1.msra.mxu0 0.0
    %1744 = vmatprep.subr.mxu0 0.0
    %1745 = vmatpush1.msra.mxu0 0.0
    %1746 = vmatprep.subr.mxu0 0.0
    %1747 = vmatpush1.msra.mxu0 0.0
    %1748 = vmatprep.subr.mxu0 0.0
    %1749 = vmatpush1.msra.mxu0 0.0
    %1750 = vmatprep.subr.mxu0 0.0
    %1751 = vmatpush1.msra.mxu0 0.0
    %1752 = vmatprep.subr.mxu0 0.0
    %1753 = vmatpush1.msra.mxu0 0.0
    %1754 = vmatprep.subr.mxu0 0.0
    %1755 = vmatpush1.msra.mxu0 0.0
    %1756 = vmatprep.subr.mxu0 0.0
    %1757 = vmatpush1.msra.mxu0 0.0
    %1758 = vmatprep.subr.mxu0 0.0
    %1759 = vmatpush1.msra.mxu0 0.0
    %1760 = vmatprep.subr.mxu0 0.0
    %1761 = vmatpush1.msra.mxu0 0.0
    %1762 = vmatprep.subr.mxu0 0.0
    %1763 = vmatpush1.msra.mxu0 0.0
    %1764 = vmatprep.subr.mxu0 0.0
    %1765 = vmatpush1.msra.mxu0 0.0
    %1766 = vmatprep.subr.mxu0 0.0
    %1767 = vmatpush1.msra.mxu0 0.0
    %1768 = vmatprep.subr.mxu0 0.0
    %1769 = vmatpush1.msra.mxu0 0.0
    %1770 = vmatprep.subr.mxu0 0.0
    %1771 = vmatpush1.msra.mxu0 0.0
    %1772 = vmatprep.subr.mxu0 0.0
    %1773 = vmatpush1.msra.mxu0 0.0
    %1774 = vmatprep.subr.mxu0 0.0
    %1775 = vmatpush1.msra.mxu0 0.0
    %1776 = vmatprep.subr.mxu0 0.0
    %1777 = vmatpush1.msra.mxu0 0.0
    %1778 = vmatprep.subr.mxu0 0.0
    %1779 = vmatpush1.msra.mxu0 0.0
    %1780 = vmatprep.subr.mxu0 0.0
    %1781 = vmatpush1.msra.mxu0 0.0
    %1782 = vmatprep.subr.mxu0 0.0
    %1783 = vmatpush1.msra.mxu0 0.0
    %1784 = vmatprep.subr.mxu0 0.0
    %1785 = vmatpush1.msra.mxu0 0.0
    %1786 = vmatprep.subr.mxu0 0.0
    %1787 = vmatpush1.msra.mxu0 0.0
    %1788 = vmatprep.subr.mxu0 0.0
    %1789 = vmatpush1.msra.mxu0 0.0
    %1790 = vmatprep.subr.mxu0 0.0
    %1791 = vmatpush1.msra.mxu0 0.0
    %1792 = vmatprep.subr.mxu0 0.0
    %1793 = vmatpush1.msra.mxu0 0.0
    %1794 = vmatprep.subr.mxu0 0.0
    %1795 = vmatpush1.msra.mxu0 0.0
    %1796 = vmatprep.mubr.f32.mxu0 0.0
    %1797 = vmatmul.mubr.f32.gmra.mrb[0].mxu0 %v1721
    %v1798 = vpop.f32.mrb[0].mxu0
    %v1799 = vadd.f32 0.0, %v1798
    %v1800 = vpop.f32.mrb[0].mxu0
    %1801 = vmatprep.mubr.f32.mxu0 0.0
    %1802 = vmatmul.mubr.f32.gmra.mrb[0].mxu0 %v1724
    %v1803 = vpop.f32.mrb[0].mxu0
    %v1804 = vadd.f32 0.0, %v1803
    %v1805 = vpop.f32.mrb[0].mxu0
    %1806 = vmatprep.mubr.f32.mxu0 0.0
    %1807 = vmatmul.mubr.f32.gmra.mrb[0].mxu0 %v1727
    %v1808 = vpop.f32.mrb[0].mxu0
    %v1809 = vadd.f32 0.0, %v1808
    %v1810 = vpop.f32.mrb[0].mxu0
    %1811 = vmatprep.mubr.f32.mxu0 0.0
    %1812 = vmatmul.mubr.f32.gmra.mrb[0].mxu0 %v1730
    %v1813 = vpop.f32.mrb[0].mxu0
    %v1814 = vadd.f32 0.0, %v1813
    %v1815 = vpop.f32.mrb[0].mxu0
    %1816 = vdwg.mxu0
    %v1817 = vadd.f32 %v1293, %v1799
    %v1818 = vadd.f32 %v1298, %v1804
    %v1819 = vadd.f32 %v1303, %v1809
    %v1820 = vadd.f32 %v1308, %v1814
    %1821 = vrot.lane.b32.xlu0 %v273, 104
    %v1822 = vpop.permute.xlu0 %1821
    %1823 = vrot.lane.b32.xlu0 %v278, 104
    %v1824 = vpop.permute.xlu0 %1823
    %1825 = vrot.lane.b32.xlu0 %v273, 72
    %v1826 = vpop.permute.xlu0 %1825
    %1827 = vrot.lane.b32.xlu0 %v278, 72
    %v1828 = vpop.permute.xlu0 %1827
    %v1829 = vsel %vm297, %v1822, 0
    %v1831 = vsel %vm297, %v1824, 0
    %v1833 = vsel %vm297, %v1826, 0
    %v1835 = vsel %vm297, %v1828, 0
    %1837 = vmatprep.subr.mxu0 0.0
    %1838 = vmatpush1.xpose.msra.mxu0 %v1833
    %1839 = vmatprep.subr.mxu0 0.0
    %1840 = vmatpush1.xpose.msra.mxu0 %v1835
    %1841 = vmatprep.subr.mxu0 0.0
    %1842 = vmatpush1.xpose.msra.mxu0 0.0
    %1843 = vmatprep.subr.mxu0 0.0
    %1844 = vmatpush1.xpose.msra.mxu0 0.0
    %1845 = vmatprep.subr.mxu0 0.0
    %1846 = vmatpush1.xpose.msra.mxu0 0.0
    %1847 = vmatprep.subr.mxu0 0.0
    %1848 = vmatpush1.xpose.msra.mxu0 0.0
    %1849 = vmatprep.subr.mxu0 0.0
    %1850 = vmatpush1.xpose.msra.mxu0 0.0
    %1851 = vmatprep.subr.mxu0 0.0
    %1852 = vmatpush1.xpose.msra.mxu0 0.0
    %1853 = vmatprep.subr.mxu0 0.0
    %1854 = vmatpush1.xpose.msra.mxu0 0.0
    %1855 = vmatprep.subr.mxu0 0.0
    %1856 = vmatpush1.xpose.msra.mxu0 0.0
    %1857 = vmatprep.subr.mxu0 0.0
    %1858 = vmatpush1.xpose.msra.mxu0 0.0
    %1859 = vmatprep.subr.mxu0 0.0
    %1860 = vmatpush1.xpose.msra.mxu0 0.0
    %1861 = vmatprep.subr.mxu0 0.0
    %1862 = vmatpush1.xpose.msra.mxu0 0.0
    %1863 = vmatprep.subr.mxu0 0.0
    %1864 = vmatpush1.xpose.msra.mxu0 0.0
    %1865 = vmatprep.subr.mxu0 0.0
    %1866 = vmatpush1.xpose.msra.mxu0 0.0
    %1867 = vmatprep.subr.mxu0 0.0
    %1868 = vmatpush1.xpose.msra.mxu0 0.0
    %1869 = vmatprep.subr.mxu0 0.0
    %1870 = vmatpush1.xpose.msra.mxu0 0.0
    %1871 = vmatprep.subr.mxu0 0.0
    %1872 = vmatpush1.xpose.msra.mxu0 0.0
    %1873 = vmatprep.subr.mxu0 0.0
    %1874 = vmatpush1.xpose.msra.mxu0 0.0
    %1875 = vmatprep.subr.mxu0 0.0
    %1876 = vmatpush1.xpose.msra.mxu0 0.0
    %1877 = vmatprep.subr.mxu0 0.0
    %1878 = vmatpush1.xpose.msra.mxu0 0.0
    %1879 = vmatprep.subr.mxu0 0.0
    %1880 = vmatpush1.xpose.msra.mxu0 0.0
    %1881 = vmatprep.subr.mxu0 0.0
    %1882 = vmatpush1.xpose.msra.mxu0 0.0
    %1883 = vmatprep.subr.mxu0 0.0
    %1884 = vmatpush1.xpose.msra.mxu0 0.0
    %1885 = vmatprep.subr.mxu0 0.0
    %1886 = vmatpush1.xpose.msra.mxu0 0.0
    %1887 = vmatprep.subr.mxu0 0.0
    %1888 = vmatpush1.xpose.msra.mxu0 0.0
    %1889 = vmatprep.subr.mxu0 0.0
    %1890 = vmatpush1.xpose.msra.mxu0 0.0
    %1891 = vmatprep.subr.mxu0 0.0
    %1892 = vmatpush1.xpose.msra.mxu0 0.0
    %1893 = vmatprep.subr.mxu0 0.0
    %1894 = vmatpush1.xpose.msra.mxu0 0.0
    %1895 = vmatprep.subr.mxu0 0.0
    %1896 = vmatpush1.xpose.msra.mxu0 0.0
    %1897 = vmatprep.subr.mxu0 0.0
    %1898 = vmatpush1.xpose.msra.mxu0 0.0
    %1899 = vmatprep.subr.mxu0 0.0
    %1900 = vmatpush1.xpose.msra.mxu0 0.0
    %1901 = vmatprep.mubr.f32.mxu0 0.0
    %1902 = vmatmul.mubr.f32.gmra.mrb[0].mxu0 %v1829
    %v1903 = vpop.f32.mrb[0].mxu0
    %v1904 = vadd.f32 0.0, %v1903
    %v1905 = vpop.f32.mrb[0].mxu0
    %1906 = vmatprep.mubr.f32.mxu0 0.0
    %1907 = vmatmul.mubr.f32.gmra.mrb[0].mxu0 %v1831
    %v1908 = vpop.f32.mrb[0].mxu0
    %v1909 = vadd.f32 0.0, %v1908
    %v1910 = vpop.f32.mrb[0].mxu0
    %1911 = vdwg.mxu0
    %1912 = vrot.lane.b32.xlu0 %v283, 104
    %v1913 = vpop.permute.xlu0 %1912
    %1914 = vrot.lane.b32.xlu0 %v288, 104
    %v1915 = vpop.permute.xlu0 %1914
    %1916 = vrot.lane.b32.xlu0 %v283, 72
    %v1917 = vpop.permute.xlu0 %1916
    %1918 = vrot.lane.b32.xlu0 %v288, 72
    %v1919 = vpop.permute.xlu0 %1918
    %v1920 = vsel %vm297, %v1913, 0
    %v1922 = vsel %vm297, %v1915, 0
    %v1924 = vsel %vm297, %v1917, 0
    %v1926 = vsel %vm297, %v1919, 0
    %1928 = vmatprep.subr.mxu0 0.0
    %1929 = vmatpush1.xpose.msra.mxu0 %v1924
    %1930 = vmatprep.subr.mxu0 0.0
    %1931 = vmatpush1.xpose.msra.mxu0 %v1926
    %1932 = vmatprep.subr.mxu0 0.0
    %1933 = vmatpush1.xpose.msra.mxu0 0.0
    %1934 = vmatprep.subr.mxu0 0.0
    %1935 = vmatpush1.xpose.msra.mxu0 0.0
    %1936 = vmatprep.subr.mxu0 0.0
    %1937 = vmatpush1.xpose.msra.mxu0 0.0
    %1938 = vmatprep.subr.mxu0 0.0
    %1939 = vmatpush1.xpose.msra.mxu0 0.0
    %1940 = vmatprep.subr.mxu0 0.0
    %1941 = vmatpush1.xpose.msra.mxu0 0.0
    %1942 = vmatprep.subr.mxu0 0.0
    %1943 = vmatpush1.xpose.msra.mxu0 0.0
    %1944 = vmatprep.subr.mxu0 0.0
    %1945 = vmatpush1.xpose.msra.mxu0 0.0
    %1946 = vmatprep.subr.mxu0 0.0
    %1947 = vmatpush1.xpose.msra.mxu0 0.0
    %1948 = vmatprep.subr.mxu0 0.0
    %1949 = vmatpush1.xpose.msra.mxu0 0.0
    %1950 = vmatprep.subr.mxu0 0.0
    %1951 = vmatpush1.xpose.msra.mxu0 0.0
    %1952 = vmatprep.subr.mxu0 0.0
    %1953 = vmatpush1.xpose.msra.mxu0 0.0
    %1954 = vmatprep.subr.mxu0 0.0
    %1955 = vmatpush1.xpose.msra.mxu0 0.0
    %1956 = vmatprep.subr.mxu0 0.0
    %1957 = vmatpush1.xpose.msra.mxu0 0.0
    %1958 = vmatprep.subr.mxu0 0.0
    %1959 = vmatpush1.xpose.msra.mxu0 0.0
    %1960 = vmatprep.subr.mxu0 0.0
    %1961 = vmatpush1.xpose.msra.mxu0 0.0
    %1962 = vmatprep.subr.mxu0 0.0
    %1963 = vmatpush1.xpose.msra.mxu0 0.0
    %1964 = vmatprep.subr.mxu0 0.0
    %1965 = vmatpush1.xpose.msra.mxu0 0.0
    %1966 = vmatprep.subr.mxu0 0.0
    %1967 = vmatpush1.xpose.msra.mxu0 0.0
    %1968 = vmatprep.subr.mxu0 0.0
    %1969 = vmatpush1.xpose.msra.mxu0 0.0
    %1970 = vmatprep.subr.mxu0 0.0
    %1971 = vmatpush1.xpose.msra.mxu0 0.0
    %1972 = vmatprep.subr.mxu0 0.0
    %1973 = vmatpush1.xpose.msra.mxu0 0.0
    %1974 = vmatprep.subr.mxu0 0.0
    %1975 = vmatpush1.xpose.msra.mxu0 0.0
    %1976 = vmatprep.subr.mxu0 0.0
    %1977 = vmatpush1.xpose.msra.mxu0 0.0
    %1978 = vmatprep.subr.mxu0 0.0
    %1979 = vmatpush1.xpose.msra.mxu0 0.0
    %1980 = vmatprep.subr.mxu0 0.0
    %1981 = vmatpush1.xpose.msra.mxu0 0.0
    %1982 = vmatprep.subr.mxu0 0.0
    %1983 = vmatpush1.xpose.msra.mxu0 0.0
    %1984 = vmatprep.subr.mxu0 0.0
    %1985 = vmatpush1.xpose.msra.mxu0 0.0
    %1986 = vmatprep.subr.mxu0 0.0
    %1987 = vmatpush1.xpose.msra.mxu0 0.0
    %1988 = vmatprep.subr.mxu0 0.0
    %1989 = vmatpush1.xpose.msra.mxu0 0.0
    %1990 = vmatprep.subr.mxu0 0.0
    %1991 = vmatpush1.xpose.msra.mxu0 0.0
    %1992 = vmatprep.mubr.f32.mxu0 0.0
    %1993 = vmatmul.mubr.f32.gmra.mrb[0].mxu0 %v1920
    %v1994 = vpop.f32.mrb[0].mxu0
    %v1995 = vadd.f32 0.0, %v1994
    %v1996 = vpop.f32.mrb[0].mxu0
    %1997 = vmatprep.mubr.f32.mxu0 0.0
    %1998 = vmatmul.mubr.f32.gmra.mrb[0].mxu0 %v1922
    %v1999 = vpop.f32.mrb[0].mxu0
    %v2000 = vadd.f32 0.0, %v1999
    %v2001 = vpop.f32.mrb[0].mxu0
    %2002 = vdwg.mxu0
    %v2003 = vmul.f32 %v1904, 0.35355338
    %v2004 = vmul.f32 %v1909, 0.35355338
    %v2005 = vmul.f32 %v1995, 0.35355338
    %v2006 = vmul.f32 %v2000, 0.35355338
    %v2007 = vadd.f32 %v2003, %v477
    %v2008 = vadd.f32 %v2004, %v477
    %v2009 = vadd.f32 %v2005, %v481
    %v2010 = vadd.f32 %v2006, %v481
    %v2011 = vsel %vm488, %v2007, -inf
    %2012 = vmax.xlane.f32.xlu0 %v2011
    %v2013 = vpop.xlane.xlu0 %2012
    %v2014 = vsel %vm488, %v2008, -inf
    %2015 = vmax.xlane.f32.xlu0 %v2014
    %v2016 = vpop.xlane.xlu0 %2015
    %v2017 = vsel %vm488, %v2009, -inf
    %2018 = vmax.xlane.f32.xlu0 %v2017
    %v2019 = vpop.xlane.xlu0 %2018
    %v2020 = vsel %vm488, %v2010, -inf
    %2021 = vmax.xlane.f32.xlu0 %v2020
    %v2022 = vpop.xlane.xlu0 %2021
    %v2023 = vsub.f32 %v2007, %v2013
    %v2024 = vsub.f32 %v2008, %v2016
    %v2025 = vsub.f32 %v2009, %v2019
    %v2026 = vsub.f32 %v2010, %v2022
    %v2027 = vmul.f32 %v2023, 1.442695
    %v2028 = vpow.pop %v2027
    %v2029 = vmul.f32 %v2024, 1.442695
    %v2030 = vpow.pop %v2029
    %v2031 = vmul.f32 %v2025, 1.442695
    %v2032 = vpow.pop %v2031
    %v2033 = vmul.f32 %v2026, 1.442695
    %v2034 = vpow.pop %v2033
    %v2035 = vsel %vm488, %v2028, 0.0
    %2036 = vadd.xlane.f32.xlu0 %v2035
    %v2037 = vpop.xlane.xlu0 %2036
    %v2038 = vsel %vm488, %v2030, 0.0
    %2039 = vadd.xlane.f32.xlu0 %v2038
    %v2040 = vpop.xlane.xlu0 %2039
    %v2041 = vsel %vm488, %v2032, 0.0
    %2042 = vadd.xlane.f32.xlu0 %v2041
    %v2043 = vpop.xlane.xlu0 %2042
    %v2044 = vsel %vm488, %v2034, 0.0
    %2045 = vadd.xlane.f32.xlu0 %v2044
    %v2046 = vpop.xlane.xlu0 %2045
    %v2047 = vrcp.pop %v2037
    %v2048 = vrcp.pop %v2040
    %v2049 = vrcp.pop %v2043
    %v2050 = vrcp.pop %v2046
    %v2051 = vmul.f32 %v2028, %v2047
    %v2052 = vmul.f32 %v2030, %v2048
    %v2053 = vmul.f32 %v2032, %v2049
    %v2054 = vmul.f32 %v2034, %v2050
    %2055 = vrot.lane.b32.xlu0 %v273, 40
    %v2056 = vpop.permute.xlu0 %2055
    %2057 = vrot.lane.b32.xlu0 %v278, 40
    %v2058 = vpop.permute.xlu0 %2057
    %v2062 = vsel %vm488, %v2051, 0
    %v2065 = vsel %vm488, %v2052, 0
    %2067 = vmatprep.subr.mxu0 0.0
    %2068 = vmatpush1.msra.mxu0 %v2056
    %2069 = vmatprep.subr.mxu0 0.0
    %2070 = vmatpush1.msra.mxu0 %v2058
    %2071 = vmatprep.subr.mxu0 0.0
    %2072 = vmatpush1.msra.mxu0 0.0
    %2073 = vmatprep.subr.mxu0 0.0
    %2074 = vmatpush1.msra.mxu0 0.0
    %2075 = vmatprep.subr.mxu0 0.0
    %2076 = vmatpush1.msra.mxu0 0.0
    %2077 = vmatprep.subr.mxu0 0.0
    %2078 = vmatpush1.msra.mxu0 0.0
    %2079 = vmatprep.subr.mxu0 0.0
    %2080 = vmatpush1.msra.mxu0 0.0
    %2081 = vmatprep.subr.mxu0 0.0
    %2082 = vmatpush1.msra.mxu0 0.0
    %2083 = vmatprep.subr.mxu0 0.0
    %2084 = vmatpush1.msra.mxu0 0.0
    %2085 = vmatprep.subr.mxu0 0.0
    %2086 = vmatpush1.msra.mxu0 0.0
    %2087 = vmatprep.subr.mxu0 0.0
    %2088 = vmatpush1.msra.mxu0 0.0
    %2089 = vmatprep.subr.mxu0 0.0
    %2090 = vmatpush1.msra.mxu0 0.0
    %2091 = vmatprep.subr.mxu0 0.0
    %2092 = vmatpush1.msra.mxu0 0.0
    %2093 = vmatprep.subr.mxu0 0.0
    %2094 = vmatpush1.msra.mxu0 0.0
    %2095 = vmatprep.subr.mxu0 0.0
    %2096 = vmatpush1.msra.mxu0 0.0
    %2097 = vmatprep.subr.mxu0 0.0
    %2098 = vmatpush1.msra.mxu0 0.0
    %2099 = vmatprep.subr.mxu0 0.0
    %2100 = vmatpush1.msra.mxu0 0.0
    %2101 = vmatprep.subr.mxu0 0.0
    %2102 = vmatpush1.msra.mxu0 0.0
    %2103 = vmatprep.subr.mxu0 0.0
    %2104 = vmatpush1.msra.mxu0 0.0
    %2105 = vmatprep.subr.mxu0 0.0
    %2106 = vmatpush1.msra.mxu0 0.0
    %2107 = vmatprep.subr.mxu0 0.0
    %2108 = vmatpush1.msra.mxu0 0.0
    %2109 = vmatprep.subr.mxu0 0.0
    %2110 = vmatpush1.msra.mxu0 0.0
    %2111 = vmatprep.subr.mxu0 0.0
    %2112 = vmatpush1.msra.mxu0 0.0
    %2113 = vmatprep.subr.mxu0 0.0
    %2114 = vmatpush1.msra.mxu0 0.0
    %2115 = vmatprep.subr.mxu0 0.0
    %2116 = vmatpush1.msra.mxu0 0.0
    %2117 = vmatprep.subr.mxu0 0.0
    %2118 = vmatpush1.msra.mxu0 0.0
    %2119 = vmatprep.subr.mxu0 0.0
    %2120 = vmatpush1.msra.mxu0 0.0
    %2121 = vmatprep.subr.mxu0 0.0
    %2122 = vmatpush1.msra.mxu0 0.0
    %2123 = vmatprep.subr.mxu0 0.0
    %2124 = vmatpush1.msra.mxu0 0.0
    %2125 = vmatprep.subr.mxu0 0.0
    %2126 = vmatpush1.msra.mxu0 0.0
    %2127 = vmatprep.subr.mxu0 0.0
    %2128 = vmatpush1.msra.mxu0 0.0
    %2129 = vmatprep.subr.mxu0 0.0
    %2130 = vmatpush1.msra.mxu0 0.0
    %2131 = vmatprep.mubr.f32.mxu0 0.0
    %2132 = vmatmul.mubr.f32.gmra.mrb[0].mxu0 %v2062
    %v2133 = vpop.f32.mrb[0].mxu0
    %v2134 = vadd.f32 0.0, %v2133
    %v2135 = vpop.f32.mrb[0].mxu0
    %2136 = vmatprep.mubr.f32.mxu0 0.0
    %2137 = vmatmul.mubr.f32.gmra.mrb[0].mxu0 %v2065
    %v2138 = vpop.f32.mrb[0].mxu0
    %v2139 = vadd.f32 0.0, %v2138
    %v2140 = vpop.f32.mrb[0].mxu0
    %2141 = vdwg.mxu0
    %2142 = vrot.lane.b32.xlu0 %v283, 40
    %v2143 = vpop.permute.xlu0 %2142
    %2144 = vrot.lane.b32.xlu0 %v288, 40
    %v2145 = vpop.permute.xlu0 %2144
    %v2149 = vsel %vm488, %v2053, 0
    %v2152 = vsel %vm488, %v2054, 0
    %2154 = vmatprep.subr.mxu0 0.0
    %2155 = vmatpush1.msra.mxu0 %v2143
    %2156 = vmatprep.subr.mxu0 0.0
    %2157 = vmatpush1.msra.mxu0 %v2145
    %2158 = vmatprep.subr.mxu0 0.0
    %2159 = vmatpush1.msra.mxu0 0.0
    %2160 = vmatprep.subr.mxu0 0.0
    %2161 = vmatpush1.msra.mxu0 0.0
    %2162 = vmatprep.subr.mxu0 0.0
    %2163 = vmatpush1.msra.mxu0 0.0
    %2164 = vmatprep.subr.mxu0 0.0
    %2165 = vmatpush1.msra.mxu0 0.0
    %2166 = vmatprep.subr.mxu0 0.0
    %2167 = vmatpush1.msra.mxu0 0.0
    %2168 = vmatprep.subr.mxu0 0.0
    %2169 = vmatpush1.msra.mxu0 0.0
    %2170 = vmatprep.subr.mxu0 0.0
    %2171 = vmatpush1.msra.mxu0 0.0
    %2172 = vmatprep.subr.mxu0 0.0
    %2173 = vmatpush1.msra.mxu0 0.0
    %2174 = vmatprep.subr.mxu0 0.0
    %2175 = vmatpush1.msra.mxu0 0.0
    %2176 = vmatprep.subr.mxu0 0.0
    %2177 = vmatpush1.msra.mxu0 0.0
    %2178 = vmatprep.subr.mxu0 0.0
    %2179 = vmatpush1.msra.mxu0 0.0
    %2180 = vmatprep.subr.mxu0 0.0
    %2181 = vmatpush1.msra.mxu0 0.0
    %2182 = vmatprep.subr.mxu0 0.0
    %2183 = vmatpush1.msra.mxu0 0.0
    %2184 = vmatprep.subr.mxu0 0.0
    %2185 = vmatpush1.msra.mxu0 0.0
    %2186 = vmatprep.subr.mxu0 0.0
    %2187 = vmatpush1.msra.mxu0 0.0
    %2188 = vmatprep.subr.mxu0 0.0
    %2189 = vmatpush1.msra.mxu0 0.0
    %2190 = vmatprep.subr.mxu0 0.0
    %2191 = vmatpush1.msra.mxu0 0.0
    %2192 = vmatprep.subr.mxu0 0.0
    %2193 = vmatpush1.msra.mxu0 0.0
    %2194 = vmatprep.subr.mxu0 0.0
    %2195 = vmatpush1.msra.mxu0 0.0
    %2196 = vmatprep.subr.mxu0 0.0
    %2197 = vmatpush1.msra.mxu0 0.0
    %2198 = vmatprep.subr.mxu0 0.0
    %2199 = vmatpush1.msra.mxu0 0.0
    %2200 = vmatprep.subr.mxu0 0.0
    %2201 = vmatpush1.msra.mxu0 0.0
    %2202 = vmatprep.subr.mxu0 0.0
    %2203 = vmatpush1.msra.mxu0 0.0
    %2204 = vmatprep.subr.mxu0 0.0
    %2205 = vmatpush1.msra.mxu0 0.0
    %2206 = vmatprep.subr.mxu0 0.0
    %2207 = vmatpush1.msra.mxu0 0.0
    %2208 = vmatprep.subr.mxu0 0.0
    %2209 = vmatpush1.msra.mxu0 0.0
    %2210 = vmatprep.subr.mxu0 0.0
    %2211 = vmatpush1.msra.mxu0 0.0
    %2212 = vmatprep.subr.mxu0 0.0
    %2213 = vmatpush1.msra.mxu0 0.0
    %2214 = vmatprep.subr.mxu0 0.0
    %2215 = vmatpush1.msra.mxu0 0.0
    %2216 = vmatprep.subr.mxu0 0.0
    %2217 = vmatpush1.msra.mxu0 0.0
    %2218 = vmatprep.mubr.f32.mxu0 0.0
    %2219 = vmatmul.mubr.f32.gmra.mrb[0].mxu0 %v2149
    %v2220 = vpop.f32.mrb[0].mxu0
    %v2221 = vadd.f32 0.0, %v2220
    %v2222 = vpop.f32.mrb[0].mxu0
    %2223 = vmatprep.mubr.f32.mxu0 0.0
    %2224 = vmatmul.mubr.f32.gmra.mrb[0].mxu0 %v2152
    %v2225 = vpop.f32.mrb[0].mxu0
    %v2226 = vadd.f32 0.0, %v2225
    %v2227 = vpop.f32.mrb[0].mxu0
    %2228 = vdwg.mxu0
    %v2229 = vld [vmem:[%s5 + $0x18] sm:$0xff]
    %v2231 = vsel %vm297, %v2134, 0
    %v2234 = vsel %vm297, %v2139, 0
    %v2237 = vsel %vm297, %v2221, 0
    %v2240 = vsel %vm297, %v2226, 0
    %2242 = vmatprep.subr.mxu0 0.0
    %2243 = vmatpush1.msra.mxu0 %v2229
    %2244 = vmatprep.subr.mxu0 0.0
    %2245 = vmatpush1.msra.mxu0 0.0
    %2246 = vmatprep.subr.mxu0 0.0
    %2247 = vmatpush1.msra.mxu0 0.0
    %2248 = vmatprep.subr.mxu0 0.0
    %2249 = vmatpush1.msra.mxu0 0.0
    %2250 = vmatprep.subr.mxu0 0.0
    %2251 = vmatpush1.msra.mxu0 0.0
    %2252 = vmatprep.subr.mxu0 0.0
    %2253 = vmatpush1.msra.mxu0 0.0
    %2254 = vmatprep.subr.mxu0 0.0
    %2255 = vmatpush1.msra.mxu0 0.0
    %2256 = vmatprep.subr.mxu0 0.0
    %2257 = vmatpush1.msra.mxu0 0.0
    %2258 = vmatprep.subr.mxu0 0.0
    %2259 = vmatpush1.msra.mxu0 0.0
    %2260 = vmatprep.subr.mxu0 0.0
    %2261 = vmatpush1.msra.mxu0 0.0
    %2262 = vmatprep.subr.mxu0 0.0
    %2263 = vmatpush1.msra.mxu0 0.0
    %2264 = vmatprep.subr.mxu0 0.0
    %2265 = vmatpush1.msra.mxu0 0.0
    %2266 = vmatprep.subr.mxu0 0.0
    %2267 = vmatpush1.msra.mxu0 0.0
    %2268 = vmatprep.subr.mxu0 0.0
    %2269 = vmatpush1.msra.mxu0 0.0
    %2270 = vmatprep.subr.mxu0 0.0
    %2271 = vmatpush1.msra.mxu0 0.0
    %2272 = vmatprep.subr.mxu0 0.0
    %2273 = vmatpush1.msra.mxu0 0.0
    %2274 = vmatprep.subr.mxu0 0.0
    %2275 = vmatpush1.msra.mxu0 0.0
    %2276 = vmatprep.subr.mxu0 0.0
    %2277 = vmatpush1.msra.mxu0 0.0
    %2278 = vmatprep.subr.mxu0 0.0
    %2279 = vmatpush1.msra.mxu0 0.0
    %2280 = vmatprep.subr.mxu0 0.0
    %2281 = vmatpush1.msra.mxu0 0.0
    %2282 = vmatprep.subr.mxu0 0.0
    %2283 = vmatpush1.msra.mxu0 0.0
    %2284 = vmatprep.subr.mxu0 0.0
    %2285 = vmatpush1.msra.mxu0 0.0
    %2286 = vmatprep.subr.mxu0 0.0
    %2287 = vmatpush1.msra.mxu0 0.0
    %2288 = vmatprep.subr.mxu0 0.0
    %2289 = vmatpush1.msra.mxu0 0.0
    %2290 = vmatprep.subr.mxu0 0.0
    %2291 = vmatpush1.msra.mxu0 0.0
    %2292 = vmatprep.subr.mxu0 0.0
    %2293 = vmatpush1.msra.mxu0 0.0
    %2294 = vmatprep.subr.mxu0 0.0
    %2295 = vmatpush1.msra.mxu0 0.0
    %2296 = vmatprep.subr.mxu0 0.0
    %2297 = vmatpush1.msra.mxu0 0.0
    %2298 = vmatprep.subr.mxu0 0.0
    %2299 = vmatpush1.msra.mxu0 0.0
    %2300 = vmatprep.subr.mxu0 0.0
    %2301 = vmatpush1.msra.mxu0 0.0
    %2302 = vmatprep.subr.mxu0 0.0
    %2303 = vmatpush1.msra.mxu0 0.0
    %2304 = vmatprep.subr.mxu0 0.0
    %2305 = vmatpush1.msra.mxu0 0.0
    %2306 = vmatprep.mubr.f32.mxu0 0.0
    %2307 = vmatmul.mubr.f32.gmra.mrb[0].mxu0 %v2231
    %v2308 = vpop.f32.mrb[0].mxu0
    %v2309 = vadd.f32 0.0, %v2308
    %v2310 = vpop.f32.mrb[0].mxu0
    %2311 = vmatprep.mubr.f32.mxu0 0.0
    %2312 = vmatmul.mubr.f32.gmra.mrb[0].mxu0 %v2234
    %v2313 = vpop.f32.mrb[0].mxu0
    %v2314 = vadd.f32 0.0, %v2313
    %v2315 = vpop.f32.mrb[0].mxu0
    %2316 = vmatprep.mubr.f32.mxu0 0.0
    %2317 = vmatmul.mubr.f32.gmra.mrb[0].mxu0 %v2237
    %v2318 = vpop.f32.mrb[0].mxu0
    %v2319 = vadd.f32 0.0, %v2318
    %v2320 = vpop.f32.mrb[0].mxu0
    %2321 = vmatprep.mubr.f32.mxu0 0.0
    %2322 = vmatmul.mubr.f32.gmra.mrb[0].mxu0 %v2240
    %v2323 = vpop.f32.mrb[0].mxu0
    %v2324 = vadd.f32 0.0, %v2323
    %v2325 = vpop.f32.mrb[0].mxu0
    %2326 = vdwg.mxu0
    %v2327 = vadd.f32 %v1817, %v2309
    %v2328 = vadd.f32 %v1818, %v2314
    %v2329 = vadd.f32 %v1819, %v2319
    %v2330 = vadd.f32 %v1820, %v2324
    %v2331 = vadd.f32 %v79, %v2327
    %v2332 = vadd.f32 %v88, %v2328
    %v2333 = vadd.f32 %v80, %v2329
    %v2334 = vadd.f32 %v89, %v2330
    %v2335 = vlaneseq
    %v2336 = vshrl.u32 %v2335, 7
    %v2337 = vsub.s32 5, %v2336
    %v2338 = vrot.slane %v115, %v2337
    %v2339 = vadd.f32 %v2331, %v2338
    %v2340 = vadd.f32 %v2332, %v2338
    %v2341 = vadd.f32 %v2333, %v2338
    %v2342 = vadd.f32 %v2334, %v2338
    %v2343 = vsel %vm116, %v2339, 0.0
    %2344 = vadd.xlane.f32.xlu0 %v2343
    %v2345 = vpop.xlane.xlu0 %2344
    %v2346 = vsel %vm116, %v2340, 0.0
    %2347 = vadd.xlane.f32.xlu0 %v2346
    %v2348 = vpop.xlane.xlu0 %2347
    %v2349 = vsel %vm116, %v2341, 0.0
    %2350 = vadd.xlane.f32.xlu0 %v2349
    %v2351 = vpop.xlane.xlu0 %2350
    %v2352 = vsel %vm116, %v2342, 0.0
    %2353 = vadd.xlane.f32.xlu0 %v2352
    %v2354 = vpop.xlane.xlu0 %2353
    %v2355 = vmul.f32 %v2345, %v129
    %v2356 = vmul.f32 %v2348, %v129
    %v2357 = vmul.f32 %v2351, %v129
    %v2358 = vmul.f32 %v2354, %v129
    %v2359 = vsub.f32 %v2339, %v2355
    %v2360 = vsub.f32 %v2340, %v2356
    %v2361 = vsub.f32 %v2341, %v2357
    %v2362 = vsub.f32 %v2342, %v2358
    %v2363 = vmul.f32 %v2359, %v2359
    %v2364 = vmul.f32 %v2360, %v2360
    %v2365 = vmul.f32 %v2361, %v2361
    %v2366 = vmul.f32 %v2362, %v2362
    %v2367 = vsel %vm116, %v2363, 0.0
    %2368 = vadd.xlane.f32.xlu0 %v2367
    %v2369 = vpop.xlane.xlu0 %2368
    %v2370 = vsel %vm116, %v2364, 0.0
    %2371 = vadd.xlane.f32.xlu0 %v2370
    %v2372 = vpop.xlane.xlu0 %2371
    %v2373 = vsel %vm116, %v2365, 0.0
    %2374 = vadd.xlane.f32.xlu0 %v2373
    %v2375 = vpop.xlane.xlu0 %2374
    %v2376 = vsel %vm116, %v2366, 0.0
    %2377 = vadd.xlane.f32.xlu0 %v2376
    %v2378 = vpop.xlane.xlu0 %2377
    %v2379 = vmul.f32 %v2369, %v129
    %v2380 = vmul.f32 %v2372, %v129
    %v2381 = vmul.f32 %v2375, %v129
    %v2382 = vmul.f32 %v2378, %v129
    %v2383 = vadd.f32 %v2379, 1e-05
    %v2384 = vadd.f32 %v2380, 1e-05
    %v2385 = vadd.f32 %v2381, 1e-05
    %v2386 = vadd.f32 %v2382, 1e-05
    %v2387 = vrsqrt.pop %v2383
    %v2388 = vrsqrt.pop %v2384
    %v2389 = vrsqrt.pop %v2385
    %v2390 = vrsqrt.pop %v2386
    %v2391 = vmul.f32 %v2359, %v2387
    %v2392 = vmul.f32 %v2360, %v2388
    %v2393 = vmul.f32 %v2361, %v2389
    %v2394 = vmul.f32 %v2362, %v2390
    %v2395 = vlaneseq
    %v2396 = vshrl.u32 %v2395, 7
    %v2397 = vsub.s32 2, %v2396
    %v2398 = vrot.slane %v115, %v2397
    %v2399 = vmul.f32 %v2391, %v2398
    %v2400 = vmul.f32 %v2392, %v2398
    %v2401 = vmul.f32 %v2393, %v2398
    %v2402 = vmul.f32 %v2394, %v2398
    %v2403 = vlaneseq
    %v2404 = vshrl.u32 %v2403, 7
    %v2405 = vsub.s32 3, %v2404
    %v2406 = vrot.slane %v115, %v2405
    %v2407 = vadd.f32 %v2399, %v2406
    %v2408 = vadd.f32 %v2400, %v2406
    %v2409 = vadd.f32 %v2401, %v2406
    %v2410 = vadd.f32 %v2402, %v2406
    %v2411 = vld [vmem:[%s6] sm:$0xff]
    %v2412 = vld [vmem:[%s6 + $0x8] sm:$0xff]
    %v2413 = vld [vmem:[%s6 + $0x10] sm:$0xff]
    %v2414 = vld [vmem:[%s6 + $0x18] sm:$0xff]
    %v2415 = vlaneseq
    %v2416 = vshrl.u32 %v2415, 7
    %v2417 = vsub.s32 6, %v2416
    %v2418 = vrot.slane %v115, %v2417
    %v2420 = vsel %vm116, %v2407, 0
    %v2423 = vsel %vm116, %v2408, 0
    %v2426 = vsel %vm116, %v2409, 0
    %v2429 = vsel %vm116, %v2410, 0
    %2431 = vmatprep.subr.mxu0 0.0
    %2432 = vmatpush1.msra.mxu0 %v2411
    %2433 = vmatprep.subr.mxu0 0.0
    %2434 = vmatpush1.msra.mxu0 %v2412
    %2435 = vmatprep.subr.mxu0 0.0
    %2436 = vmatpush1.msra.mxu0 %v2413
    %2437 = vmatprep.subr.mxu0 0.0
    %2438 = vmatpush1.msra.mxu0 %v2414
    %2439 = vmatprep.subr.mxu0 0.0
    %2440 = vmatpush1.msra.mxu0 0.0
    %2441 = vmatprep.subr.mxu0 0.0
    %2442 = vmatpush1.msra.mxu0 0.0
    %2443 = vmatprep.subr.mxu0 0.0
    %2444 = vmatpush1.msra.mxu0 0.0
    %2445 = vmatprep.subr.mxu0 0.0
    %2446 = vmatpush1.msra.mxu0 0.0
    %2447 = vmatprep.subr.mxu0 0.0
    %2448 = vmatpush1.msra.mxu0 0.0
    %2449 = vmatprep.subr.mxu0 0.0
    %2450 = vmatpush1.msra.mxu0 0.0
    %2451 = vmatprep.subr.mxu0 0.0
    %2452 = vmatpush1.msra.mxu0 0.0
    %2453 = vmatprep.subr.mxu0 0.0
    %2454 = vmatpush1.msra.mxu0 0.0
    %2455 = vmatprep.subr.mxu0 0.0
    %2456 = vmatpush1.msra.mxu0 0.0
    %2457 = vmatprep.subr.mxu0 0.0
    %2458 = vmatpush1.msra.mxu0 0.0
    %2459 = vmatprep.subr.mxu0 0.0
    %2460 = vmatpush1.msra.mxu0 0.0
    %2461 = vmatprep.subr.mxu0 0.0
    %2462 = vmatpush1.msra.mxu0 0.0
    %2463 = vmatprep.subr.mxu0 0.0
    %2464 = vmatpush1.msra.mxu0 0.0
    %2465 = vmatprep.subr.mxu0 0.0
    %2466 = vmatpush1.msra.mxu0 0.0
    %2467 = vmatprep.subr.mxu0 0.0
    %2468 = vmatpush1.msra.mxu0 0.0
    %2469 = vmatprep.subr.mxu0 0.0
    %2470 = vmatpush1.msra.mxu0 0.0
    %2471 = vmatprep.subr.mxu0 0.0
    %2472 = vmatpush1.msra.mxu0 0.0
    %2473 = vmatprep.subr.mxu0 0.0
    %2474 = vmatpush1.msra.mxu0 0.0
    %2475 = vmatprep.subr.mxu0 0.0
    %2476 = vmatpush1.msra.mxu0 0.0
    %2477 = vmatprep.subr.mxu0 0.0
    %2478 = vmatpush1.msra.mxu0 0.0
    %2479 = vmatprep.subr.mxu0 0.0
    %2480 = vmatpush1.msra.mxu0 0.0
    %2481 = vmatprep.subr.mxu0 0.0
    %2482 = vmatpush1.msra.mxu0 0.0
    %2483 = vmatprep.subr.mxu0 0.0
    %2484 = vmatpush1.msra.mxu0 0.0
    %2485 = vmatprep.subr.mxu0 0.0
    %2486 = vmatpush1.msra.mxu0 0.0
    %2487 = vmatprep.subr.mxu0 0.0
    %2488 = vmatpush1.msra.mxu0 0.0
    %2489 = vmatprep.subr.mxu0 0.0
    %2490 = vmatpush1.msra.mxu0 0.0
    %2491 = vmatprep.subr.mxu0 0.0
    %2492 = vmatpush1.msra.mxu0 0.0
    %2493 = vmatprep.subr.mxu0 0.0
    %2494 = vmatpush1.msra.mxu0 0.0
    %2495 = vmatprep.mubr.f32.mxu0 0.0
    %2496 = vmatmul.mubr.f32.gmra.mrb[0].mxu0 %v2420
    %v2497 = vpop.f32.mrb[0].mxu0
    %v2498 = vadd.f32 %v2418, %v2497
    %v2499 = vpop.f32.mrb[0].mxu0
    %2500 = vmatprep.mubr.f32.mxu0 0.0
    %2501 = vmatmul.mubr.f32.gmra.mrb[0].mxu0 %v2423
    %v2502 = vpop.f32.mrb[0].mxu0
    %v2503 = vadd.f32 %v2418, %v2502
    %v2504 = vpop.f32.mrb[0].mxu0
    %2505 = vmatprep.mubr.f32.mxu0 0.0
    %2506 = vmatmul.mubr.f32.gmra.mrb[0].mxu0 %v2426
    %v2507 = vpop.f32.mrb[0].mxu0
    %v2508 = vadd.f32 %v2418, %v2507
    %v2509 = vpop.f32.mrb[0].mxu0
    %2510 = vmatprep.mubr.f32.mxu0 0.0
    %2511 = vmatmul.mubr.f32.gmra.mrb[0].mxu0 %v2429
    %v2512 = vpop.f32.mrb[0].mxu0
    %v2513 = vadd.f32 %v2418, %v2512
    %v2514 = vpop.f32.mrb[0].mxu0
    %2515 = vdwg.mxu0
    %v2516 = vmul.f32 %v2498, %v2498
    %v2517 = vmul.f32 %v2503, %v2503
    %v2518 = vmul.f32 %v2508, %v2508
    %v2519 = vmul.f32 %v2513, %v2513
    %v2520 = vmul.f32 %v2498, %v2516
    %v2521 = vmul.f32 %v2503, %v2517
    %v2522 = vmul.f32 %v2508, %v2518
    %v2523 = vmul.f32 %v2513, %v2519
    %v2524 = vmul.f32 %v2520, 0.044715
    %v2525 = vmul.f32 %v2521, 0.044715
    %v2526 = vmul.f32 %v2522, 0.044715
    %v2527 = vmul.f32 %v2523, 0.044715
    %v2528 = vadd.f32 %v2498, %v2524
    %v2529 = vadd.f32 %v2503, %v2525
    %v2530 = vadd.f32 %v2508, %v2526
    %v2531 = vadd.f32 %v2513, %v2527
    %v2532 = vmul.f32 %v2528, 0.7978846
    %v2533 = vmul.f32 %v2529, 0.7978846
    %v2534 = vmul.f32 %v2530, 0.7978846
    %v2535 = vmul.f32 %v2531, 0.7978846
    %v2536 = vtanh.pop %v2532
    %v2537 = vtanh.pop %v2533
    %v2538 = vtanh.pop %v2534
    %v2539 = vtanh.pop %v2535
    %v2540 = vadd.f32 %v2536, 1.0
    %v2541 = vadd.f32 %v2537, 1.0
    %v2542 = vadd.f32 %v2538, 1.0
    %v2543 = vadd.f32 %v2539, 1.0
    %v2544 = vmul.f32 %v2540, 0.5
    %v2545 = vmul.f32 %v2541, 0.5
    %v2546 = vmul.f32 %v2542, 0.5
    %v2547 = vmul.f32 %v2543, 0.5
    %v2548 = vmul.f32 %v2498, %v2544
    %v2549 = vmul.f32 %v2503, %v2545
    %v2550 = vmul.f32 %v2508, %v2546
    %v2551 = vmul.f32 %v2513, %v2547
    %v2552 = vld [vmem:[%s7] sm:$0xff]
    %v2553 = vld [vmem:[%s7 + $0x8] sm:$0xff]
    %v2554 = vld [vmem:[%s7 + $0x10] sm:$0xff]
    %v2555 = vld [vmem:[%s7 + $0x18] sm:$0xff]
    %v2556 = vld [vmem:[%s7 + $0x20] sm:$0xff]
    %v2557 = vld [vmem:[%s7 + $0x28] sm:$0xff]
    %v2558 = vld [vmem:[%s7 + $0x30] sm:$0xff]
    %v2559 = vld [vmem:[%s7 + $0x38] sm:$0xff]
    %v2560 = vlaneseq
    %v2561 = vshrl.u32 %v2560, 7
    %v2562 = vsub.s32 7, %v2561
    %v2563 = vrot.slane %v115, %v2562
    %vm2564 = vcmask 523264
    %v2566 = vsel %vm2564, %v2548, 0
    %v2569 = vsel %vm2564, %v2549, 0
    %v2572 = vsel %vm2564, %v2550, 0
    %v2575 = vsel %vm2564, %v2551, 0
    %2577 = vmatprep.subr.mxu0 0.0
    %2578 = vmatpush1.msra.mxu0 %v2552
    %2579 = vmatprep.subr.mxu0 0.0
    %2580 = vmatpush1.msra.mxu0 %v2553
    %2581 = vmatprep.subr.mxu0 0.0
    %2582 = vmatpush1.msra.mxu0 %v2554
    %2583 = vmatprep.subr.mxu0 0.0
    %2584 = vmatpush1.msra.mxu0 %v2555
    %2585 = vmatprep.subr.mxu0 0.0
    %2586 = vmatpush1.msra.mxu0 %v2556
    %2587 = vmatprep.subr.mxu0 0.0
    %2588 = vmatpush1.msra.mxu0 %v2557
    %2589 = vmatprep.subr.mxu0 0.0
    %2590 = vmatpush1.msra.mxu0 %v2558
    %2591 = vmatprep.subr.mxu0 0.0
    %2592 = vmatpush1.msra.mxu0 %v2559
    %2593 = vmatprep.subr.mxu0 0.0
    %2594 = vmatpush1.msra.mxu0 0.0
    %2595 = vmatprep.subr.mxu0 0.0
    %2596 = vmatpush1.msra.mxu0 0.0
    %2597 = vmatprep.subr.mxu0 0.0
    %2598 = vmatpush1.msra.mxu0 0.0
    %2599 = vmatprep.subr.mxu0 0.0
    %2600 = vmatpush1.msra.mxu0 0.0
    %2601 = vmatprep.subr.mxu0 0.0
    %2602 = vmatpush1.msra.mxu0 0.0
    %2603 = vmatprep.subr.mxu0 0.0
    %2604 = vmatpush1.msra.mxu0 0.0
    %2605 = vmatprep.subr.mxu0 0.0
    %2606 = vmatpush1.msra.mxu0 0.0
    %2607 = vmatprep.subr.mxu0 0.0
    %2608 = vmatpush1.msra.mxu0 0.0
    %2609 = vmatprep.subr.mxu0 0.0
    %2610 = vmatpush1.msra.mxu0 0.0
    %2611 = vmatprep.subr.mxu0 0.0
    %2612 = vmatpush1.msra.mxu0 0.0
    %2613 = vmatprep.subr.mxu0 0.0
    %2614 = vmatpush1.msra.mxu0 0.0
    %2615 = vmatprep.subr.mxu0 0.0
    %2616 = vmatpush1.msra.mxu0 0.0
    %2617 = vmatprep.subr.mxu0 0.0
    %2618 = vmatpush1.msra.mxu0 0.0
    %2619 = vmatprep.subr.mxu0 0.0
    %2620 = vmatpush1.msra.mxu0 0.0
    %2621 = vmatprep.subr.mxu0 0.0
    %2622 = vmatpush1.msra.mxu0 0.0
    %2623 = vmatprep.subr.mxu0 0.0
    %2624 = vmatpush1.msra.mxu0 0.0
    %2625 = vmatprep.subr.mxu0 0.0
    %2626 = vmatpush1.msra.mxu0 0.0
    %2627 = vmatprep.subr.mxu0 0.0
    %2628 = vmatpush1.msra.mxu0 0.0
    %2629 = vmatprep.subr.mxu0 0.0
    %2630 = vmatpush1.msra.mxu0 0.0
    %2631 = vmatprep.subr.mxu0 0.0
    %2632 = vmatpush1.msra.mxu0 0.0
    %2633 = vmatprep.subr.mxu0 0.0
    %2634 = vmatpush1.msra.mxu0 0.0
    %2635 = vmatprep.subr.mxu0 0.0
    %2636 = vmatpush1.msra.mxu0 0.0
    %2637 = vmatprep.subr.mxu0 0.0
    %2638 = vmatpush1.msra.mxu0 0.0
    %2639 = vmatprep.subr.mxu0 0.0
    %2640 = vmatpush1.msra.mxu0 0.0
    %2641 = vmatprep.mubr.f32.mxu0 0.0
    %2642 = vmatmul.mubr.f32.gmra.mrb[0].mxu0 %v2566
    %v2643 = vpop.f32.mrb[0].mxu0
    %v2644 = vadd.f32 %v2563, %v2643
    %v2645 = vpop.f32.mrb[0].mxu0
    %2646 = vmatprep.mubr.f32.mxu0 0.0
    %2647 = vmatmul.mubr.f32.gmra.mrb[0].mxu0 %v2569
    %v2648 = vpop.f32.mrb[0].mxu0
    %v2649 = vadd.f32 %v2563, %v2648
    %v2650 = vpop.f32.mrb[0].mxu0
    %2651 = vmatprep.mubr.f32.mxu0 0.0
    %2652 = vmatmul.mubr.f32.gmra.mrb[0].mxu0 %v2572
    %v2653 = vpop.f32.mrb[0].mxu0
    %v2654 = vadd.f32 %v2563, %v2653
    %v2655 = vpop.f32.mrb[0].mxu0
    %2656 = vmatprep.mubr.f32.mxu0 0.0
    %2657 = vmatmul.mubr.f32.gmra.mrb[0].mxu0 %v2575
    %v2658 = vpop.f32.mrb[0].mxu0
    %v2659 = vadd.f32 %v2563, %v2658
    %v2660 = vpop.f32.mrb[0].mxu0
    %2661 = vdwg.mxu0
    %v2662 = vadd.f32 %v2339, %v2644
    %v2663 = vadd.f32 %v2340, %v2649
    %v2664 = vadd.f32 %v2341, %v2654
    %v2665 = vadd.f32 %v2342, %v2659
    %s2666 = scalar_lea.vmem %s8, 8
    %v2667 = vld [vmem:[%s2666] sm:$0xff]
    %v2668 = vsel %vm116, %v2662, 0.0
    %2669 = vadd.xlane.f32.xlu0 %v2668
    %v2670 = vpop.xlane.xlu0 %2669
    %v2671 = vsel %vm116, %v2663, 0.0
    %2672 = vadd.xlane.f32.xlu0 %v2671
    %v2673 = vpop.xlane.xlu0 %2672
    %v2674 = vsel %vm116, %v2664, 0.0
    %2675 = vadd.xlane.f32.xlu0 %v2674
    %v2676 = vpop.xlane.xlu0 %2675
    %v2677 = vsel %vm116, %v2665, 0.0
    %2678 = vadd.xlane.f32.xlu0 %v2677
    %v2679 = vpop.xlane.xlu0 %2678
    %v2680 = vmul.f32 %v2670, %v129
    %v2681 = vmul.f32 %v2673, %v129
    %v2682 = vmul.f32 %v2676, %v129
    %v2683 = vmul.f32 %v2679, %v129
    %v2684 = vsub.f32 %v2662, %v2680
    %v2685 = vsub.f32 %v2663, %v2681
    %v2686 = vsub.f32 %v2664, %v2682
    %v2687 = vsub.f32 %v2665, %v2683
    %v2688 = vmul.f32 %v2684, %v2684
    %v2689 = vmul.f32 %v2685, %v2685
    %v2690 = vmul.f32 %v2686, %v2686
    %v2691 = vmul.f32 %v2687, %v2687
    %v2692 = vsel %vm116, %v2688, 0.0
    %2693 = vadd.xlane.f32.xlu0 %v2692
    %v2694 = vpop.xlane.xlu0 %2693
    %v2695 = vsel %vm116, %v2689, 0.0
    %2696 = vadd.xlane.f32.xlu0 %v2695
    %v2697 = vpop.xlane.xlu0 %2696
    %v2698 = vsel %vm116, %v2690, 0.0
    %2699 = vadd.xlane.f32.xlu0 %v2698
    %v2700 = vpop.xlane.xlu0 %2699
    %v2701 = vsel %vm116, %v2691, 0.0
    %2702 = vadd.xlane.f32.xlu0 %v2701
    %v2703 = vpop.xlane.xlu0 %2702
    %v2704 = vmul.f32 %v2694, %v129
    %v2705 = vmul.f32 %v2697, %v129
    %v2706 = vmul.f32 %v2700, %v129
    %v2707 = vmul.f32 %v2703, %v129
    %v2708 = vadd.f32 %v2704, 1e-05
    %v2709 = vadd.f32 %v2705, 1e-05
    %v2710 = vadd.f32 %v2706, 1e-05
    %v2711 = vadd.f32 %v2707, 1e-05
    %v2712 = vrsqrt.pop %v2708
    %v2713 = vrsqrt.pop %v2709
    %v2714 = vrsqrt.pop %v2710
    %v2715 = vrsqrt.pop %v2711
    %v2716 = vmul.f32 %v2684, %v2712
    %v2717 = vmul.f32 %v2685, %v2713
    %v2718 = vmul.f32 %v2686, %v2714
    %v2719 = vmul.f32 %v2687, %v2715
    %v2720 = vlaneseq
    %v2721 = vshrl.u32 %v2720, 7
    %v2722 = vsub.s32 0, %v2721
    %v2723 = vrot.slane %v2667, %v2722
    %v2724 = vmul.f32 %v2716, %v2723
    %v2725 = vmul.f32 %v2717, %v2723
    %v2726 = vmul.f32 %v2718, %v2723
    %v2727 = vmul.f32 %v2719, %v2723
    %v2728 = vlaneseq
    %v2729 = vshrl.u32 %v2728, 7
    %v2730 = vsub.s32 1, %v2729
    %v2731 = vrot.slane %v2667, %v2730
    %v2732 = vadd.f32 %v2724, %v2731
    %v2733 = vadd.f32 %v2725, %v2731
    %v2734 = vadd.f32 %v2726, %v2731
    %v2735 = vadd.f32 %v2727, %v2731
    %s2736 = scalar_lea.vmem %s4, 32
    %v2737 = vld [vmem:[%s2736] sm:$0xff]
    %v2738 = vld [vmem:[%s2736 + $0x8] sm:$0xff]
    %v2739 = vld [vmem:[%s2736 + $0x10] sm:$0xff]
    %v2740 = vld [vmem:[%s2736 + $0x18] sm:$0xff]
    %v2741 = vlaneseq
    %v2742 = vshrl.u32 %v2741, 7
    %v2743 = vsub.s32 4, %v2742
    %v2744 = vrot.slane %v2667, %v2743
    %v2746 = vsel %vm116, %v2732, 0
    %v2749 = vsel %vm116, %v2733, 0
    %v2752 = vsel %vm116, %v2734, 0
    %v2755 = vsel %vm116, %v2735, 0
    %2757 = vmatprep.subr.mxu0 0.0
    %2758 = vmatpush1.msra.mxu0 %v2737
    %2759 = vmatprep.subr.mxu0 0.0
    %2760 = vmatpush1.msra.mxu0 %v2738
    %2761 = vmatprep.subr.mxu0 0.0
    %2762 = vmatpush1.msra.mxu0 %v2739
    %2763 = vmatprep.subr.mxu0 0.0
    %2764 = vmatpush1.msra.mxu0 %v2740
    %2765 = vmatprep.subr.mxu0 0.0
    %2766 = vmatpush1.msra.mxu0 0.0
    %2767 = vmatprep.subr.mxu0 0.0
    %2768 = vmatpush1.msra.mxu0 0.0
    %2769 = vmatprep.subr.mxu0 0.0
    %2770 = vmatpush1.msra.mxu0 0.0
    %2771 = vmatprep.subr.mxu0 0.0
    %2772 = vmatpush1.msra.mxu0 0.0
    %2773 = vmatprep.subr.mxu0 0.0
    %2774 = vmatpush1.msra.mxu0 0.0
    %2775 = vmatprep.subr.mxu0 0.0
    %2776 = vmatpush1.msra.mxu0 0.0
    %2777 = vmatprep.subr.mxu0 0.0
    %2778 = vmatpush1.msra.mxu0 0.0
    %2779 = vmatprep.subr.mxu0 0.0
    %2780 = vmatpush1.msra.mxu0 0.0
    %2781 = vmatprep.subr.mxu0 0.0
    %2782 = vmatpush1.msra.mxu0 0.0
    %2783 = vmatprep.subr.mxu0 0.0
    %2784 = vmatpush1.msra.mxu0 0.0
    %2785 = vmatprep.subr.mxu0 0.0
    %2786 = vmatpush1.msra.mxu0 0.0
    %2787 = vmatprep.subr.mxu0 0.0
    %2788 = vmatpush1.msra.mxu0 0.0
    %2789 = vmatprep.subr.mxu0 0.0
    %2790 = vmatpush1.msra.mxu0 0.0
    %2791 = vmatprep.subr.mxu0 0.0
    %2792 = vmatpush1.msra.mxu0 0.0
    %2793 = vmatprep.subr.mxu0 0.0
    %2794 = vmatpush1.msra.mxu0 0.0
    %2795 = vmatprep.subr.mxu0 0.0
    %2796 = vmatpush1.msra.mxu0 0.0
    %2797 = vmatprep.subr.mxu0 0.0
    %2798 = vmatpush1.msra.mxu0 0.0
    %2799 = vmatprep.subr.mxu0 0.0
    %2800 = vmatpush1.msra.mxu0 0.0
    %2801 = vmatprep.subr.mxu0 0.0
    %2802 = vmatpush1.msra.mxu0 0.0
    %2803 = vmatprep.subr.mxu0 0.0
    %2804 = vmatpush1.msra.mxu0 0.0
    %2805 = vmatprep.subr.mxu0 0.0
    %2806 = vmatpush1.msra.mxu0 0.0
    %2807 = vmatprep.subr.mxu0 0.0
    %2808 = vmatpush1.msra.mxu0 0.0
    %2809 = vmatprep.subr.mxu0 0.0
    %2810 = vmatpush1.msra.mxu0 0.0
    %2811 = vmatprep.subr.mxu0 0.0
    %2812 = vmatpush1.msra.mxu0 0.0
    %2813 = vmatprep.subr.mxu0 0.0
    %2814 = vmatpush1.msra.mxu0 0.0
    %2815 = vmatprep.subr.mxu0 0.0
    %2816 = vmatpush1.msra.mxu0 0.0
    %2817 = vmatprep.subr.mxu0 0.0
    %2818 = vmatpush1.msra.mxu0 0.0
    %2819 = vmatprep.subr.mxu0 0.0
    %2820 = vmatpush1.msra.mxu0 0.0
    %2821 = vmatprep.mubr.f32.mxu0 0.0
    %2822 = vmatmul.mubr.f32.gmra.mrb[0].mxu0 %v2746
    %v2823 = vpop.f32.mrb[0].mxu0
    %v2824 = vadd.f32 %v2744, %v2823
    %v2825 = vpop.f32.mrb[0].mxu0
    %2826 = vmatprep.mubr.f32.mxu0 0.0
    %2827 = vmatmul.mubr.f32.gmra.mrb[0].mxu0 %v2749
    %v2828 = vpop.f32.mrb[0].mxu0
    %v2829 = vadd.f32 %v2744, %v2828
    %v2830 = vpop.f32.mrb[0].mxu0
    %2831 = vmatprep.mubr.f32.mxu0 0.0
    %2832 = vmatmul.mubr.f32.gmra.mrb[0].mxu0 %v2752
    %v2833 = vpop.f32.mrb[0].mxu0
    %v2834 = vadd.f32 %v2744, %v2833
    %v2835 = vpop.f32.mrb[0].mxu0
    %2836 = vmatprep.mubr.f32.mxu0 0.0
    %2837 = vmatmul.mubr.f32.gmra.mrb[0].mxu0 %v2755
    %v2838 = vpop.f32.mrb[0].mxu0
    %v2839 = vadd.f32 %v2744, %v2838
    %v2840 = vpop.f32.mrb[0].mxu0
    %2841 = vdwg.mxu0
    %2844 = vrot.lane.b32.xlu0 %v2824, 96
    %v2845 = vpop.permute.xlu0 %2844
    %2846 = vrot.lane.b32.xlu0 %v2829, 96
    %v2847 = vpop.permute.xlu0 %2846
    %v2848 = vsel %vm297, %v2824, 0
    %v2850 = vsel %vm297, %v2829, 0
    %v2852 = vsel %vm297, %v2845, 0
    %v2854 = vsel %vm297, %v2847, 0
    %2856 = vmatprep.subr.mxu0 0.0
    %2857 = vmatpush1.xpose.msra.mxu0 %v2852
    %2858 = vmatprep.subr.mxu0 0.0
    %2859 = vmatpush1.xpose.msra.mxu0 %v2854
    %2860 = vmatprep.subr.mxu0 0.0
    %2861 = vmatpush1.xpose.msra.mxu0 0.0
    %2862 = vmatprep.subr.mxu0 0.0
    %2863 = vmatpush1.xpose.msra.mxu0 0.0
    %2864 = vmatprep.subr.mxu0 0.0
    %2865 = vmatpush1.xpose.msra.mxu0 0.0
    %2866 = vmatprep.subr.mxu0 0.0
    %2867 = vmatpush1.xpose.msra.mxu0 0.0
    %2868 = vmatprep.subr.mxu0 0.0
    %2869 = vmatpush1.xpose.msra.mxu0 0.0
    %2870 = vmatprep.subr.mxu0 0.0
    %2871 = vmatpush1.xpose.msra.mxu0 0.0
    %2872 = vmatprep.subr.mxu0 0.0
    %2873 = vmatpush1.xpose.msra.mxu0 0.0
    %2874 = vmatprep.subr.mxu0 0.0
    %2875 = vmatpush1.xpose.msra.mxu0 0.0
    %2876 = vmatprep.subr.mxu0 0.0
    %2877 = vmatpush1.xpose.msra.mxu0 0.0
    %2878 = vmatprep.subr.mxu0 0.0
    %2879 = vmatpush1.xpose.msra.mxu0 0.0
    %2880 = vmatprep.subr.mxu0 0.0
    %2881 = vmatpush1.xpose.msra.mxu0 0.0
    %2882 = vmatprep.subr.mxu0 0.0
    %2883 = vmatpush1.xpose.msra.mxu0 0.0
    %2884 = vmatprep.subr.mxu0 0.0
    %2885 = vmatpush1.xpose.msra.mxu0 0.0
    %2886 = vmatprep.subr.mxu0 0.0
    %2887 = vmatpush1.xpose.msra.mxu0 0.0
    %2888 = vmatprep.subr.mxu0 0.0
    %2889 = vmatpush1.xpose.msra.mxu0 0.0
    %2890 = vmatprep.subr.mxu0 0.0
    %2891 = vmatpush1.xpose.msra.mxu0 0.0
    %2892 = vmatprep.subr.mxu0 0.0
    %2893 = vmatpush1.xpose.msra.mxu0 0.0
    %2894 = vmatprep.subr.mxu0 0.0
    %2895 = vmatpush1.xpose.msra.mxu0 0.0
    %2896 = vmatprep.subr.mxu0 0.0
    %2897 = vmatpush1.xpose.msra.mxu0 0.0
    %2898 = vmatprep.subr.mxu0 0.0
    %2899 = vmatpush1.xpose.msra.mxu0 0.0
    %2900 = vmatprep.subr.mxu0 0.0
    %2901 = vmatpush1.xpose.msra.mxu0 0.0
    %2902 = vmatprep.subr.mxu0 0.0
    %2903 = vmatpush1.xpose.msra.mxu0 0.0
    %2904 = vmatprep.subr.mxu0 0.0
    %2905 = vmatpush1.xpose.msra.mxu0 0.0
    %2906 = vmatprep.subr.mxu0 0.0
    %2907 = vmatpush1.xpose.msra.mxu0 0.0
    %2908 = vmatprep.subr.mxu0 0.0
    %2909 = vmatpush1.xpose.msra.mxu0 0.0
    %2910 = vmatprep.subr.mxu0 0.0
    %2911 = vmatpush1.xpose.msra.mxu0 0.0
    %2912 = vmatprep.subr.mxu0 0.0
    %2913 = vmatpush1.xpose.msra.mxu0 0.0
    %2914 = vmatprep.subr.mxu0 0.0
    %2915 = vmatpush1.xpose.msra.mxu0 0.0
    %2916 = vmatprep.subr.mxu0 0.0
    %2917 = vmatpush1.xpose.msra.mxu0 0.0
    %2918 = vmatprep.subr.mxu0 0.0
    %2919 = vmatpush1.xpose.msra.mxu0 0.0
    %2920 = vmatprep.mubr.f32.mxu0 0.0
    %2921 = vmatmul.mubr.f32.gmra.mrb[0].mxu0 %v2848
    %v2922 = vpop.f32.mrb[0].mxu0
    %v2923 = vadd.f32 0.0, %v2922
    %v2924 = vpop.f32.mrb[0].mxu0
    %2925 = vmatprep.mubr.f32.mxu0 0.0
    %2926 = vmatmul.mubr.f32.gmra.mrb[0].mxu0 %v2850
    %v2927 = vpop.f32.mrb[0].mxu0
    %v2928 = vadd.f32 0.0, %v2927
    %v2929 = vpop.f32.mrb[0].mxu0
    %2930 = vdwg.mxu0
    %2933 = vrot.lane.b32.xlu0 %v2834, 96
    %v2934 = vpop.permute.xlu0 %2933
    %2935 = vrot.lane.b32.xlu0 %v2839, 96
    %v2936 = vpop.permute.xlu0 %2935
    %v2937 = vsel %vm297, %v2834, 0
    %v2939 = vsel %vm297, %v2839, 0
    %v2941 = vsel %vm297, %v2934, 0
    %v2943 = vsel %vm297, %v2936, 0
    %2945 = vmatprep.subr.mxu0 0.0
    %2946 = vmatpush1.xpose.msra.mxu0 %v2941
    %2947 = vmatprep.subr.mxu0 0.0
    %2948 = vmatpush1.xpose.msra.mxu0 %v2943
    %2949 = vmatprep.subr.mxu0 0.0
    %2950 = vmatpush1.xpose.msra.mxu0 0.0
    %2951 = vmatprep.subr.mxu0 0.0
    %2952 = vmatpush1.xpose.msra.mxu0 0.0
    %2953 = vmatprep.subr.mxu0 0.0
    %2954 = vmatpush1.xpose.msra.mxu0 0.0
    %2955 = vmatprep.subr.mxu0 0.0
    %2956 = vmatpush1.xpose.msra.mxu0 0.0
    %2957 = vmatprep.subr.mxu0 0.0
    %2958 = vmatpush1.xpose.msra.mxu0 0.0
    %2959 = vmatprep.subr.mxu0 0.0
    %2960 = vmatpush1.xpose.msra.mxu0 0.0
    %2961 = vmatprep.subr.mxu0 0.0
    %2962 = vmatpush1.xpose.msra.mxu0 0.0
    %2963 = vmatprep.subr.mxu0 0.0
    %2964 = vmatpush1.xpose.msra.mxu0 0.0
    %2965 = vmatprep.subr.mxu0 0.0
    %2966 = vmatpush1.xpose.msra.mxu0 0.0
    %2967 = vmatprep.subr.mxu0 0.0
    %2968 = vmatpush1.xpose.msra.mxu0 0.0
    %2969 = vmatprep.subr.mxu0 0.0
    %2970 = vmatpush1.xpose.msra.mxu0 0.0
    %2971 = vmatprep.subr.mxu0 0.0
    %2972 = vmatpush1.xpose.msra.mxu0 0.0
    %2973 = vmatprep.subr.mxu0 0.0
    %2974 = vmatpush1.xpose.msra.mxu0 0.0
    %2975 = vmatprep.subr.mxu0 0.0
    %2976 = vmatpush1.xpose.msra.mxu0 0.0
    %2977 = vmatprep.subr.mxu0 0.0
    %2978 = vmatpush1.xpose.msra.mxu0 0.0
    %2979 = vmatprep.subr.mxu0 0.0
    %2980 = vmatpush1.xpose.msra.mxu0 0.0
    %2981 = vmatprep.subr.mxu0 0.0
    %2982 = vmatpush1.xpose.msra.mxu0 0.0
    %2983 = vmatprep.subr.mxu0 0.0
    %2984 = vmatpush1.xpose.msra.mxu0 0.0
    %2985 = vmatprep.subr.mxu0 0.0
    %2986 = vmatpush1.xpose.msra.mxu0 0.0
    %2987 = vmatprep.subr.mxu0 0.0
    %2988 = vmatpush1.xpose.msra.mxu0 0.0
    %2989 = vmatprep.subr.mxu0 0.0
    %2990 = vmatpush1.xpose.msra.mxu0 0.0
    %2991 = vmatprep.subr.mxu0 0.0
    %2992 = vmatpush1.xpose.msra.mxu0 0.0
    %2993 = vmatprep.subr.mxu0 0.0
    %2994 = vmatpush1.xpose.msra.mxu0 0.0
    %2995 = vmatprep.subr.mxu0 0.0
    %2996 = vmatpush1.xpose.msra.mxu0 0.0
    %2997 = vmatprep.subr.mxu0 0.0
    %2998 = vmatpush1.xpose.msra.mxu0 0.0
    %2999 = vmatprep.subr.mxu0 0.0
    %3000 = vmatpush1.xpose.msra.mxu0 0.0
    %3001 = vmatprep.subr.mxu0 0.0
    %3002 = vmatpush1.xpose.msra.mxu0 0.0
    %3003 = vmatprep.subr.mxu0 0.0
    %3004 = vmatpush1.xpose.msra.mxu0 0.0
    %3005 = vmatprep.subr.mxu0 0.0
    %3006 = vmatpush1.xpose.msra.mxu0 0.0
    %3007 = vmatprep.subr.mxu0 0.0
    %3008 = vmatpush1.xpose.msra.mxu0 0.0
    %3009 = vmatprep.mubr.f32.mxu0 0.0
    %3010 = vmatmul.mubr.f32.gmra.mrb[0].mxu0 %v2937
    %v3011 = vpop.f32.mrb[0].mxu0
    %v3012 = vadd.f32 0.0, %v3011
    %v3013 = vpop.f32.mrb[0].mxu0
    %3014 = vmatprep.mubr.f32.mxu0 0.0
    %3015 = vmatmul.mubr.f32.gmra.mrb[0].mxu0 %v2939
    %v3016 = vpop.f32.mrb[0].mxu0
    %v3017 = vadd.f32 0.0, %v3016
    %v3018 = vpop.f32.mrb[0].mxu0
    %3019 = vdwg.mxu0
    %v3020 = vmul.f32 %v2923, 0.35355338
    %v3021 = vmul.f32 %v2928, 0.35355338
    %v3022 = vmul.f32 %v3012, 0.35355338
    %v3023 = vmul.f32 %v3017, 0.35355338
    %v3024 = vadd.f32 %v3020, %v477
    %v3025 = vadd.f32 %v3021, %v477
    %v3026 = vadd.f32 %v3022, %v481
    %v3027 = vadd.f32 %v3023, %v481
    %v3028 = vsel %vm488, %v3024, -inf
    %3029 = vmax.xlane.f32.xlu0 %v3028
    %v3030 = vpop.xlane.xlu0 %3029
    %v3031 = vsel %vm488, %v3025, -inf
    %3032 = vmax.xlane.f32.xlu0 %v3031
    %v3033 = vpop.xlane.xlu0 %3032
    %v3034 = vsel %vm488, %v3026, -inf
    %3035 = vmax.xlane.f32.xlu0 %v3034
    %v3036 = vpop.xlane.xlu0 %3035
    %v3037 = vsel %vm488, %v3027, -inf
    %3038 = vmax.xlane.f32.xlu0 %v3037
    %v3039 = vpop.xlane.xlu0 %3038
    %v3040 = vsub.f32 %v3024, %v3030
    %v3041 = vsub.f32 %v3025, %v3033
    %v3042 = vsub.f32 %v3026, %v3036
    %v3043 = vsub.f32 %v3027, %v3039
    %v3044 = vmul.f32 %v3040, 1.442695
    %v3045 = vpow.pop %v3044
    %v3046 = vmul.f32 %v3041, 1.442695
    %v3047 = vpow.pop %v3046
    %v3048 = vmul.f32 %v3042, 1.442695
    %v3049 = vpow.pop %v3048
    %v3050 = vmul.f32 %v3043, 1.442695
    %v3051 = vpow.pop %v3050
    %v3052 = vsel %vm488, %v3045, 0.0
    %3053 = vadd.xlane.f32.xlu0 %v3052
    %v3054 = vpop.xlane.xlu0 %3053
    %v3055 = vsel %vm488, %v3047, 0.0
    %3056 = vadd.xlane.f32.xlu0 %v3055
    %v3057 = vpop.xlane.xlu0 %3056
    %v3058 = vsel %vm488, %v3049, 0.0
    %3059 = vadd.xlane.f32.xlu0 %v3058
    %v3060 = vpop.xlane.xlu0 %3059
    %v3061 = vsel %vm488, %v3051, 0.0
    %3062 = vadd.xlane.f32.xlu0 %v3061
    %v3063 = vpop.xlane.xlu0 %3062
    %v3064 = vrcp.pop %v3054
    %v3065 = vrcp.pop %v3057
    %v3066 = vrcp.pop %v3060
    %v3067 = vrcp.pop %v3063
    %v3068 = vmul.f32 %v3045, %v3064
    %v3069 = vmul.f32 %v3047, %v3065
    %v3070 = vmul.f32 %v3049, %v3066
    %v3071 = vmul.f32 %v3051, %v3067
    %3072 = vrot.lane.b32.xlu0 %v2824, 64
    %v3073 = vpop.permute.xlu0 %3072
    %3074 = vrot.lane.b32.xlu0 %v2829, 64
    %v3075 = vpop.permute.xlu0 %3074
    %v3079 = vsel %vm488, %v3068, 0
    %v3082 = vsel %vm488, %v3069, 0
    %3084 = vmatprep.subr.mxu0 0.0
    %3085 = vmatpush1.msra.mxu0 %v3073
    %3086 = vmatprep.subr.mxu0 0.0
    %3087 = vmatpush1.msra.mxu0 %v3075
    %3088 = vmatprep.subr.mxu0 0.0
    %3089 = vmatpush1.msra.mxu0 0.0
    %3090 = vmatprep.subr.mxu0 0.0
    %3091 = vmatpush1.msra.mxu0 0.0
    %3092 = vmatprep.subr.mxu0 0.0
    %3093 = vmatpush1.msra.mxu0 0.0
    %3094 = vmatprep.subr.mxu0 0.0
    %3095 = vmatpush1.msra.mxu0 0.0
    %3096 = vmatprep.subr.mxu0 0.0
    %3097 = vmatpush1.msra.mxu0 0.0
    %3098 = vmatprep.subr.mxu0 0.0
    %3099 = vmatpush1.msra.mxu0 0.0
    %3100 = vmatprep.subr.mxu0 0.0
    %3101 = vmatpush1.msra.mxu0 0.0
    %3102 = vmatprep.subr.mxu0 0.0
    %3103 = vmatpush1.msra.mxu0 0.0
    %3104 = vmatprep.subr.mxu0 0.0
    %3105 = vmatpush1.msra.mxu0 0.0
    %3106 = vmatprep.subr.mxu0 0.0
    %3107 = vmatpush1.msra.mxu0 0.0
    %3108 = vmatprep.subr.mxu0 0.0
    %3109 = vmatpush1.msra.mxu0 0.0
    %3110 = vmatprep.subr.mxu0 0.0
    %3111 = vmatpush1.msra.mxu0 0.0
    %3112 = vmatprep.subr.mxu0 0.0
    %3113 = vmatpush1.msra.mxu0 0.0
    %3114 = vmatprep.subr.mxu0 0.0
    %3115 = vmatpush1.msra.mxu0 0.0
    %3116 = vmatprep.subr.mxu0 0.0
    %3117 = vmatpush1.msra.mxu0 0.0
    %3118 = vmatprep.subr.mxu0 0.0
    %3119 = vmatpush1.msra.mxu0 0.0
    %3120 = vmatprep.subr.mxu0 0.0
    %3121 = vmatpush1.msra.mxu0 0.0
    %3122 = vmatprep.subr.mxu0 0.0
    %3123 = vmatpush1.msra.mxu0 0.0
    %3124 = vmatprep.subr.mxu0 0.0
    %3125 = vmatpush1.msra.mxu0 0.0
    %3126 = vmatprep.subr.mxu0 0.0
    %3127 = vmatpush1.msra.mxu0 0.0
    %3128 = vmatprep.subr.mxu0 0.0
    %3129 = vmatpush1.msra.mxu0 0.0
    %3130 = vmatprep.subr.mxu0 0.0
    %3131 = vmatpush1.msra.mxu0 0.0
    %3132 = vmatprep.subr.mxu0 0.0
    %3133 = vmatpush1.msra.mxu0 0.0
    %3134 = vmatprep.subr.mxu0 0.0
    %3135 = vmatpush1.msra.mxu0 0.0
    %3136 = vmatprep.subr.mxu0 0.0
    %3137 = vmatpush1.msra.mxu0 0.0
    %3138 = vmatprep.subr.mxu0 0.0
    %3139 = vmatpush1.msra.mxu0 0.0
    %3140 = vmatprep.subr.mxu0 0.0
    %3141 = vmatpush1.msra.mxu0 0.0
    %3142 = vmatprep.subr.mxu0 0.0
    %3143 = vmatpush1.msra.mxu0 0.0
    %3144 = vmatprep.subr.mxu0 0.0
    %3145 = vmatpush1.msra.mxu0 0.0
    %3146 = vmatprep.subr.mxu0 0.0
    %3147 = vmatpush1.msra.mxu0 0.0
    %3148 = vmatprep.mubr.f32.mxu0 0.0
    %3149 = vmatmul.mubr.f32.gmra.mrb[0].mxu0 %v3079
    %v3150 = vpop.f32.mrb[0].mxu0
    %v3151 = vadd.f32 0.0, %v3150
    %v3152 = vpop.f32.mrb[0].mxu0
    %3153 = vmatprep.mubr.f32.mxu0 0.0
    %3154 = vmatmul.mubr.f32.gmra.mrb[0].mxu0 %v3082
    %v3155 = vpop.f32.mrb[0].mxu0
    %v3156 = vadd.f32 0.0, %v3155
    %v3157 = vpop.f32.mrb[0].mxu0
    %3158 = vdwg.mxu0
    %3159 = vrot.lane.b32.xlu0 %v2834, 64
    %v3160 = vpop.permute.xlu0 %3159
    %3161 = vrot.lane.b32.xlu0 %v2839, 64
    %v3162 = vpop.permute.xlu0 %3161
    %v3166 = vsel %vm488, %v3070, 0
    %v3169 = vsel %vm488, %v3071, 0
    %3171 = vmatprep.subr.mxu0 0.0
    %3172 = vmatpush1.msra.mxu0 %v3160
    %3173 = vmatprep.subr.mxu0 0.0
    %3174 = vmatpush1.msra.mxu0 %v3162
    %3175 = vmatprep.subr.mxu0 0.0
    %3176 = vmatpush1.msra.mxu0 0.0
    %3177 = vmatprep.subr.mxu0 0.0
    %3178 = vmatpush1.msra.mxu0 0.0
    %3179 = vmatprep.subr.mxu0 0.0
    %3180 = vmatpush1.msra.mxu0 0.0
    %3181 = vmatprep.subr.mxu0 0.0
    %3182 = vmatpush1.msra.mxu0 0.0
    %3183 = vmatprep.subr.mxu0 0.0
    %3184 = vmatpush1.msra.mxu0 0.0
    %3185 = vmatprep.subr.mxu0 0.0
    %3186 = vmatpush1.msra.mxu0 0.0
    %3187 = vmatprep.subr.mxu0 0.0
    %3188 = vmatpush1.msra.mxu0 0.0
    %3189 = vmatprep.subr.mxu0 0.0
    %3190 = vmatpush1.msra.mxu0 0.0
    %3191 = vmatprep.subr.mxu0 0.0
    %3192 = vmatpush1.msra.mxu0 0.0
    %3193 = vmatprep.subr.mxu0 0.0
    %3194 = vmatpush1.msra.mxu0 0.0
    %3195 = vmatprep.subr.mxu0 0.0
    %3196 = vmatpush1.msra.mxu0 0.0
    %3197 = vmatprep.subr.mxu0 0.0
    %3198 = vmatpush1.msra.mxu0 0.0
    %3199 = vmatprep.subr.mxu0 0.0
    %3200 = vmatpush1.msra.mxu0 0.0
    %3201 = vmatprep.subr.mxu0 0.0
    %3202 = vmatpush1.msra.mxu0 0.0
    %3203 = vmatprep.subr.mxu0 0.0
    %3204 = vmatpush1.msra.mxu0 0.0
    %3205 = vmatprep.subr.mxu0 0.0
    %3206 = vmatpush1.msra.mxu0 0.0
    %3207 = vmatprep.subr.mxu0 0.0
    %3208 = vmatpush1.msra.mxu0 0.0
    %3209 = vmatprep.subr.mxu0 0.0
    %3210 = vmatpush1.msra.mxu0 0.0
    %3211 = vmatprep.subr.mxu0 0.0
    %3212 = vmatpush1.msra.mxu0 0.0
    %3213 = vmatprep.subr.mxu0 0.0
    %3214 = vmatpush1.msra.mxu0 0.0
    %3215 = vmatprep.subr.mxu0 0.0
    %3216 = vmatpush1.msra.mxu0 0.0
    %3217 = vmatprep.subr.mxu0 0.0
    %3218 = vmatpush1.msra.mxu0 0.0
    %3219 = vmatprep.subr.mxu0 0.0
    %3220 = vmatpush1.msra.mxu0 0.0
    %3221 = vmatprep.subr.mxu0 0.0
    %3222 = vmatpush1.msra.mxu0 0.0
    %3223 = vmatprep.subr.mxu0 0.0
    %3224 = vmatpush1.msra.mxu0 0.0
    %3225 = vmatprep.subr.mxu0 0.0
    %3226 = vmatpush1.msra.mxu0 0.0
    %3227 = vmatprep.subr.mxu0 0.0
    %3228 = vmatpush1.msra.mxu0 0.0
    %3229 = vmatprep.subr.mxu0 0.0
    %3230 = vmatpush1.msra.mxu0 0.0
    %3231 = vmatprep.subr.mxu0 0.0
    %3232 = vmatpush1.msra.mxu0 0.0
    %3233 = vmatprep.subr.mxu0 0.0
    %3234 = vmatpush1.msra.mxu0 0.0
    %3235 = vmatprep.mubr.f32.mxu0 0.0
    %3236 = vmatmul.mubr.f32.gmra.mrb[0].mxu0 %v3166
    %v3237 = vpop.f32.mrb[0].mxu0
    %v3238 = vadd.f32 0.0, %v3237
    %v3239 = vpop.f32.mrb[0].mxu0
    %3240 = vmatprep.mubr.f32.mxu0 0.0
    %3241 = vmatmul.mubr.f32.gmra.mrb[0].mxu0 %v3169
    %v3242 = vpop.f32.mrb[0].mxu0
    %v3243 = vadd.f32 0.0, %v3242
    %v3244 = vpop.f32.mrb[0].mxu0
    %3245 = vdwg.mxu0
    %s3246 = scalar_lea.vmem %s5, 32
    %v3247 = vld [vmem:[%s3246] sm:$0xff]
    %3248 = vrot.lane.b32.xlu0 %v2824, 120
    %v3249 = vpop.permute.xlu0 %3248
    %3250 = vrot.lane.b32.xlu0 %v2829, 120
    %v3251 = vpop.permute.xlu0 %3250
    %3252 = vrot.lane.b32.xlu0 %v2824, 88
    %v3253 = vpop.permute.xlu0 %3252
    %3254 = vrot.lane.b32.xlu0 %v2829, 88
    %v3255 = vpop.permute.xlu0 %3254
    %v3256 = vsel %vm297, %v3249, 0
    %v3258 = vsel %vm297, %v3251, 0
    %v3260 = vsel %vm297, %v3253, 0
    %v3262 = vsel %vm297, %v3255, 0
    %3264 = vmatprep.subr.mxu0 0.0
    %3265 = vmatpush1.xpose.msra.mxu0 %v3260
    %3266 = vmatprep.subr.mxu0 0.0
    %3267 = vmatpush1.xpose.msra.mxu0 %v3262
    %3268 = vmatprep.subr.mxu0 0.0
    %3269 = vmatpush1.xpose.msra.mxu0 0.0
    %3270 = vmatprep.subr.mxu0 0.0
    %3271 = vmatpush1.xpose.msra.mxu0 0.0
    %3272 = vmatprep.subr.mxu0 0.0
    %3273 = vmatpush1.xpose.msra.mxu0 0.0
    %3274 = vmatprep.subr.mxu0 0.0
    %3275 = vmatpush1.xpose.msra.mxu0 0.0
    %3276 = vmatprep.subr.mxu0 0.0
    %3277 = vmatpush1.xpose.msra.mxu0 0.0
    %3278 = vmatprep.subr.mxu0 0.0
    %3279 = vmatpush1.xpose.msra.mxu0 0.0
    %3280 = vmatprep.subr.mxu0 0.0
    %3281 = vmatpush1.xpose.msra.mxu0 0.0
    %3282 = vmatprep.subr.mxu0 0.0
    %3283 = vmatpush1.xpose.msra.mxu0 0.0
    %3284 = vmatprep.subr.mxu0 0.0
    %3285 = vmatpush1.xpose.msra.mxu0 0.0
    %3286 = vmatprep.subr.mxu0 0.0
    %3287 = vmatpush1.xpose.msra.mxu0 0.0
    %3288 = vmatprep.subr.mxu0 0.0
    %3289 = vmatpush1.xpose.msra.mxu0 0.0
    %3290 = vmatprep.subr.mxu0 0.0
    %3291 = vmatpush1.xpose.msra.mxu0 0.0
    %3292 = vmatprep.subr.mxu0 0.0
    %3293 = vmatpush1.xpose.msra.mxu0 0.0
    %3294 = vmatprep.subr.mxu0 0.0
    %3295 = vmatpush1.xpose.msra.mxu0 0.0
    %3296 = vmatprep.subr.mxu0 0.0
    %3297 = vmatpush1.xpose.msra.mxu0 0.0
    %3298 = vmatprep.subr.mxu0 0.0
    %3299 = vmatpush1.xpose.msra.mxu0 0.0
    %3300 = vmatprep.subr.mxu0 0.0
    %3301 = vmatpush1.xpose.msra.mxu0 0.0
    %3302 = vmatprep.subr.mxu0 0.0
    %3303 = vmatpush1.xpose.msra.mxu0 0.0
    %3304 = vmatprep.subr.mxu0 0.0
    %3305 = vmatpush1.xpose.msra.mxu0 0.0
    %3306 = vmatprep.subr.mxu0 0.0
    %3307 = vmatpush1.xpose.msra.mxu0 0.0
    %3308 = vmatprep.subr.mxu0 0.0
    %3309 = vmatpush1.xpose.msra.mxu0 0.0
    %3310 = vmatprep.subr.mxu0 0.0
    %3311 = vmatpush1.xpose.msra.mxu0 0.0
    %3312 = vmatprep.subr.mxu0 0.0
    %3313 = vmatpush1.xpose.msra.mxu0 0.0
    %3314 = vmatprep.subr.mxu0 0.0
    %3315 = vmatpush1.xpose.msra.mxu0 0.0
    %3316 = vmatprep.subr.mxu0 0.0
    %3317 = vmatpush1.xpose.msra.mxu0 0.0
    %3318 = vmatprep.subr.mxu0 0.0
    %3319 = vmatpush1.xpose.msra.mxu0 0.0
    %3320 = vmatprep.subr.mxu0 0.0
    %3321 = vmatpush1.xpose.msra.mxu0 0.0
    %3322 = vmatprep.subr.mxu0 0.0
    %3323 = vmatpush1.xpose.msra.mxu0 0.0
    %3324 = vmatprep.subr.mxu0 0.0
    %3325 = vmatpush1.xpose.msra.mxu0 0.0
    %3326 = vmatprep.subr.mxu0 0.0
    %3327 = vmatpush1.xpose.msra.mxu0 0.0
    %3328 = vmatprep.mubr.f32.mxu0 0.0
    %3329 = vmatmul.mubr.f32.gmra.mrb[0].mxu0 %v3256
    %v3330 = vpop.f32.mrb[0].mxu0
    %v3331 = vadd.f32 0.0, %v3330
    %v3332 = vpop.f32.mrb[0].mxu0
    %3333 = vmatprep.mubr.f32.mxu0 0.0
    %3334 = vmatmul.mubr.f32.gmra.mrb[0].mxu0 %v3258
    %v3335 = vpop.f32.mrb[0].mxu0
    %v3336 = vadd.f32 0.0, %v3335
    %v3337 = vpop.f32.mrb[0].mxu0
    %3338 = vdwg.mxu0
    %3339 = vrot.lane.b32.xlu0 %v2834, 120
    %v3340 = vpop.permute.xlu0 %3339
    %3341 = vrot.lane.b32.xlu0 %v2839, 120
    %v3342 = vpop.permute.xlu0 %3341
    %3343 = vrot.lane.b32.xlu0 %v2834, 88
    %v3344 = vpop.permute.xlu0 %3343
    %3345 = vrot.lane.b32.xlu0 %v2839, 88
    %v3346 = vpop.permute.xlu0 %3345
    %v3347 = vsel %vm297, %v3340, 0
    %v3349 = vsel %vm297, %v3342, 0
    %v3351 = vsel %vm297, %v3344, 0
    %v3353 = vsel %vm297, %v3346, 0
    %3355 = vmatprep.subr.mxu0 0.0
    %3356 = vmatpush1.xpose.msra.mxu0 %v3351
    %3357 = vmatprep.subr.mxu0 0.0
    %3358 = vmatpush1.xpose.msra.mxu0 %v3353
    %3359 = vmatprep.subr.mxu0 0.0
    %3360 = vmatpush1.xpose.msra.mxu0 0.0
    %3361 = vmatprep.subr.mxu0 0.0
    %3362 = vmatpush1.xpose.msra.mxu0 0.0
    %3363 = vmatprep.subr.mxu0 0.0
    %3364 = vmatpush1.xpose.msra.mxu0 0.0
    %3365 = vmatprep.subr.mxu0 0.0
    %3366 = vmatpush1.xpose.msra.mxu0 0.0
    %3367 = vmatprep.subr.mxu0 0.0
    %3368 = vmatpush1.xpose.msra.mxu0 0.0
    %3369 = vmatprep.subr.mxu0 0.0
    %3370 = vmatpush1.xpose.msra.mxu0 0.0
    %3371 = vmatprep.subr.mxu0 0.0
    %3372 = vmatpush1.xpose.msra.mxu0 0.0
    %3373 = vmatprep.subr.mxu0 0.0
    %3374 = vmatpush1.xpose.msra.mxu0 0.0
    %3375 = vmatprep.subr.mxu0 0.0
    %3376 = vmatpush1.xpose.msra.mxu0 0.0
    %3377 = vmatprep.subr.mxu0 0.0
    %3378 = vmatpush1.xpose.msra.mxu0 0.0
    %3379 = vmatprep.subr.mxu0 0.0
    %3380 = vmatpush1.xpose.msra.mxu0 0.0
    %3381 = vmatprep.subr.mxu0 0.0
    %3382 = vmatpush1.xpose.msra.mxu0 0.0
    %3383 = vmatprep.subr.mxu0 0.0
    %3384 = vmatpush1.xpose.msra.mxu0 0.0
    %3385 = vmatprep.subr.mxu0 0.0
    %3386 = vmatpush1.xpose.msra.mxu0 0.0
    %3387 = vmatprep.subr.mxu0 0.0
    %3388 = vmatpush1.xpose.msra.mxu0 0.0
    %3389 = vmatprep.subr.mxu0 0.0
    %3390 = vmatpush1.xpose.msra.mxu0 0.0
    %3391 = vmatprep.subr.mxu0 0.0
    %3392 = vmatpush1.xpose.msra.mxu0 0.0
    %3393 = vmatprep.subr.mxu0 0.0
    %3394 = vmatpush1.xpose.msra.mxu0 0.0
    %3395 = vmatprep.subr.mxu0 0.0
    %3396 = vmatpush1.xpose.msra.mxu0 0.0
    %3397 = vmatprep.subr.mxu0 0.0
    %3398 = vmatpush1.xpose.msra.mxu0 0.0
    %3399 = vmatprep.subr.mxu0 0.0
    %3400 = vmatpush1.xpose.msra.mxu0 0.0
    %3401 = vmatprep.subr.mxu0 0.0
    %3402 = vmatpush1.xpose.msra.mxu0 0.0
    %3403 = vmatprep.subr.mxu0 0.0
    %3404 = vmatpush1.xpose.msra.mxu0 0.0
    %3405 = vmatprep.subr.mxu0 0.0
    %3406 = vmatpush1.xpose.msra.mxu0 0.0
    %3407 = vmatprep.subr.mxu0 0.0
    %3408 = vmatpush1.xpose.msra.mxu0 0.0
    %3409 = vmatprep.subr.mxu0 0.0
    %3410 = vmatpush1.xpose.msra.mxu0 0.0
    %3411 = vmatprep.subr.mxu0 0.0
    %3412 = vmatpush1.xpose.msra.mxu0 0.0
    %3413 = vmatprep.subr.mxu0 0.0
    %3414 = vmatpush1.xpose.msra.mxu0 0.0
    %3415 = vmatprep.subr.mxu0 0.0
    %3416 = vmatpush1.xpose.msra.mxu0 0.0
    %3417 = vmatprep.subr.mxu0 0.0
    %3418 = vmatpush1.xpose.msra.mxu0 0.0
    %3419 = vmatprep.mubr.f32.mxu0 0.0
    %3420 = vmatmul.mubr.f32.gmra.mrb[0].mxu0 %v3347
    %v3421 = vpop.f32.mrb[0].mxu0
    %v3422 = vadd.f32 0.0, %v3421
    %v3423 = vpop.f32.mrb[0].mxu0
    %3424 = vmatprep.mubr.f32.mxu0 0.0
    %3425 = vmatmul.mubr.f32.gmra.mrb[0].mxu0 %v3349
    %v3426 = vpop.f32.mrb[0].mxu0
    %v3427 = vadd.f32 0.0, %v3426
    %v3428 = vpop.f32.mrb[0].mxu0
    %3429 = vdwg.mxu0
    %v3430 = vmul.f32 %v3331, 0.35355338
    %v3431 = vmul.f32 %v3336, 0.35355338
    %v3432 = vmul.f32 %v3422, 0.35355338
    %v3433 = vmul.f32 %v3427, 0.35355338
    %v3434 = vadd.f32 %v3430, %v477
    %v3435 = vadd.f32 %v3431, %v477
    %v3436 = vadd.f32 %v3432, %v481
    %v3437 = vadd.f32 %v3433, %v481
    %v3438 = vsel %vm488, %v3434, -inf
    %3439 = vmax.xlane.f32.xlu0 %v3438
    %v3440 = vpop.xlane.xlu0 %3439
    %v3441 = vsel %vm488, %v3435, -inf
    %3442 = vmax.xlane.f32.xlu0 %v3441
    %v3443 = vpop.xlane.xlu0 %3442
    %v3444 = vsel %vm488, %v3436, -inf
    %3445 = vmax.xlane.f32.xlu0 %v3444
    %v3446 = vpop.xlane.xlu0 %3445
    %v3447 = vsel %vm488, %v3437, -inf
    %3448 = vmax.xlane.f32.xlu0 %v3447
    %v3449 = vpop.xlane.xlu0 %3448
    %v3450 = vsub.f32 %v3434, %v3440
    %v3451 = vsub.f32 %v3435, %v3443
    %v3452 = vsub.f32 %v3436, %v3446
    %v3453 = vsub.f32 %v3437, %v3449
    %v3454 = vmul.f32 %v3450, 1.442695
    %v3455 = vpow.pop %v3454
    %v3456 = vmul.f32 %v3451, 1.442695
    %v3457 = vpow.pop %v3456
    %v3458 = vmul.f32 %v3452, 1.442695
    %v3459 = vpow.pop %v3458
    %v3460 = vmul.f32 %v3453, 1.442695
    %v3461 = vpow.pop %v3460
    %v3462 = vsel %vm488, %v3455, 0.0
    %3463 = vadd.xlane.f32.xlu0 %v3462
    %v3464 = vpop.xlane.xlu0 %3463
    %v3465 = vsel %vm488, %v3457, 0.0
    %3466 = vadd.xlane.f32.xlu0 %v3465
    %v3467 = vpop.xlane.xlu0 %3466
    %v3468 = vsel %vm488, %v3459, 0.0
    %3469 = vadd.xlane.f32.xlu0 %v3468
    %v3470 = vpop.xlane.xlu0 %3469
    %v3471 = vsel %vm488, %v3461, 0.0
    %3472 = vadd.xlane.f32.xlu0 %v3471
    %v3473 = vpop.xlane.xlu0 %3472
    %v3474 = vrcp.pop %v3464
    %v3475 = vrcp.pop %v3467
    %v3476 = vrcp.pop %v3470
    %v3477 = vrcp.pop %v3473
    %v3478 = vmul.f32 %v3455, %v3474
    %v3479 = vmul.f32 %v3457, %v3475
    %v3480 = vmul.f32 %v3459, %v3476
    %v3481 = vmul.f32 %v3461, %v3477
    %3482 = vrot.lane.b32.xlu0 %v2824, 56
    %v3483 = vpop.permute.xlu0 %3482
    %3484 = vrot.lane.b32.xlu0 %v2829, 56
    %v3485 = vpop.permute.xlu0 %3484
    %v3489 = vsel %vm488, %v3478, 0
    %v3492 = vsel %vm488, %v3479, 0
    %3494 = vmatprep.subr.mxu0 0.0
    %3495 = vmatpush1.msra.mxu0 %v3483
    %3496 = vmatprep.subr.mxu0 0.0
    %3497 = vmatpush1.msra.mxu0 %v3485
    %3498 = vmatprep.subr.mxu0 0.0
    %3499 = vmatpush1.msra.mxu0 0.0
    %3500 = vmatprep.subr.mxu0 0.0
    %3501 = vmatpush1.msra.mxu0 0.0
    %3502 = vmatprep.subr.mxu0 0.0
    %3503 = vmatpush1.msra.mxu0 0.0
    %3504 = vmatprep.subr.mxu0 0.0
    %3505 = vmatpush1.msra.mxu0 0.0
    %3506 = vmatprep.subr.mxu0 0.0
    %3507 = vmatpush1.msra.mxu0 0.0
    %3508 = vmatprep.subr.mxu0 0.0
    %3509 = vmatpush1.msra.mxu0 0.0
    %3510 = vmatprep.subr.mxu0 0.0
    %3511 = vmatpush1.msra.mxu0 0.0
    %3512 = vmatprep.subr.mxu0 0.0
    %3513 = vmatpush1.msra.mxu0 0.0
    %3514 = vmatprep.subr.mxu0 0.0
    %3515 = vmatpush1.msra.mxu0 0.0
    %3516 = vmatprep.subr.mxu0 0.0
    %3517 = vmatpush1.msra.mxu0 0.0
    %3518 = vmatprep.subr.mxu0 0.0
    %3519 = vmatpush1.msra.mxu0 0.0
    %3520 = vmatprep.subr.mxu0 0.0
    %3521 = vmatpush1.msra.mxu0 0.0
    %3522 = vmatprep.subr.mxu0 0.0
    %3523 = vmatpush1.msra.mxu0 0.0
    %3524 = vmatprep.subr.mxu0 0.0
    %3525 = vmatpush1.msra.mxu0 0.0
    %3526 = vmatprep.subr.mxu0 0.0
    %3527 = vmatpush1.msra.mxu0 0.0
    %3528 = vmatprep.subr.mxu0 0.0
    %3529 = vmatpush1.msra.mxu0 0.0
    %3530 = vmatprep.subr.mxu0 0.0
    %3531 = vmatpush1.msra.mxu0 0.0
    %3532 = vmatprep.subr.mxu0 0.0
    %3533 = vmatpush1.msra.mxu0 0.0
    %3534 = vmatprep.subr.mxu0 0.0
    %3535 = vmatpush1.msra.mxu0 0.0
    %3536 = vmatprep.subr.mxu0 0.0
    %3537 = vmatpush1.msra.mxu0 0.0
    %3538 = vmatprep.subr.mxu0 0.0
    %3539 = vmatpush1.msra.mxu0 0.0
    %3540 = vmatprep.subr.mxu0 0.0
    %3541 = vmatpush1.msra.mxu0 0.0
    %3542 = vmatprep.subr.mxu0 0.0
    %3543 = vmatpush1.msra.mxu0 0.0
    %3544 = vmatprep.subr.mxu0 0.0
    %3545 = vmatpush1.msra.mxu0 0.0
    %3546 = vmatprep.subr.mxu0 0.0
    %3547 = vmatpush1.msra.mxu0 0.0
    %3548 = vmatprep.subr.mxu0 0.0
    %3549 = vmatpush1.msra.mxu0 0.0
    %3550 = vmatprep.subr.mxu0 0.0
    %3551 = vmatpush1.msra.mxu0 0.0
    %3552 = vmatprep.subr.mxu0 0.0
    %3553 = vmatpush1.msra.mxu0 0.0
    %3554 = vmatprep.subr.mxu0 0.0
    %3555 = vmatpush1.msra.mxu0 0.0
    %3556 = vmatprep.subr.mxu0 0.0
    %3557 = vmatpush1.msra.mxu0 0.0
    %3558 = vmatprep.mubr.f32.mxu0 0.0
    %3559 = vmatmul.mubr.f32.gmra.mrb[0].mxu0 %v3489
    %v3560 = vpop.f32.mrb[0].mxu0
    %v3561 = vadd.f32 0.0, %v3560
    %v3562 = vpop.f32.mrb[0].mxu0
    %3563 = vmatprep.mubr.f32.mxu0 0.0
    %3564 = vmatmul.mubr.f32.gmra.mrb[0].mxu0 %v3492
    %v3565 = vpop.f32.mrb[0].mxu0
    %v3566 = vadd.f32 0.0, %v3565
    %v3567 = vpop.f32.mrb[0].mxu0
    %3568 = vdwg.mxu0
    %3569 = vrot.lane.b32.xlu0 %v2834, 56
    %v3570 = vpop.permute.xlu0 %3569
    %3571 = vrot.lane.b32.xlu0 %v2839, 56
    %v3572 = vpop.permute.xlu0 %3571
    %v3576 = vsel %vm488, %v3480, 0
    %v3579 = vsel %vm488, %v3481, 0
    %3581 = vmatprep.subr.mxu0 0.0
    %3582 = vmatpush1.msra.mxu0 %v3570
    %3583 = vmatprep.subr.mxu0 0.0
    %3584 = vmatpush1.msra.mxu0 %v3572
    %3585 = vmatprep.subr.mxu0 0.0
    %3586 = vmatpush1.msra.mxu0 0.0
    %3587 = vmatprep.subr.mxu0 0.0
    %3588 = vmatpush1.msra.mxu0 0.0
    %3589 = vmatprep.subr.mxu0 0.0
    %3590 = vmatpush1.msra.mxu0 0.0
    %3591 = vmatprep.subr.mxu0 0.0
    %3592 = vmatpush1.msra.mxu0 0.0
    %3593 = vmatprep.subr.mxu0 0.0
    %3594 = vmatpush1.msra.mxu0 0.0
    %3595 = vmatprep.subr.mxu0 0.0
    %3596 = vmatpush1.msra.mxu0 0.0
    %3597 = vmatprep.subr.mxu0 0.0
    %3598 = vmatpush1.msra.mxu0 0.0
    %3599 = vmatprep.subr.mxu0 0.0
    %3600 = vmatpush1.msra.mxu0 0.0
    %3601 = vmatprep.subr.mxu0 0.0
    %3602 = vmatpush1.msra.mxu0 0.0
    %3603 = vmatprep.subr.mxu0 0.0
    %3604 = vmatpush1.msra.mxu0 0.0
    %3605 = vmatprep.subr.mxu0 0.0
    %3606 = vmatpush1.msra.mxu0 0.0
    %3607 = vmatprep.subr.mxu0 0.0
    %3608 = vmatpush1.msra.mxu0 0.0
    %3609 = vmatprep.subr.mxu0 0.0
    %3610 = vmatpush1.msra.mxu0 0.0
    %3611 = vmatprep.subr.mxu0 0.0
    %3612 = vmatpush1.msra.mxu0 0.0
    %3613 = vmatprep.subr.mxu0 0.0
    %3614 = vmatpush1.msra.mxu0 0.0
    %3615 = vmatprep.subr.mxu0 0.0
    %3616 = vmatpush1.msra.mxu0 0.0
    %3617 = vmatprep.subr.mxu0 0.0
    %3618 = vmatpush1.msra.mxu0 0.0
    %3619 = vmatprep.subr.mxu0 0.0
    %3620 = vmatpush1.msra.mxu0 0.0
    %3621 = vmatprep.subr.mxu0 0.0
    %3622 = vmatpush1.msra.mxu0 0.0
    %3623 = vmatprep.subr.mxu0 0.0
    %3624 = vmatpush1.msra.mxu0 0.0
    %3625 = vmatprep.subr.mxu0 0.0
    %3626 = vmatpush1.msra.mxu0 0.0
    %3627 = vmatprep.subr.mxu0 0.0
    %3628 = vmatpush1.msra.mxu0 0.0
    %3629 = vmatprep.subr.mxu0 0.0
    %3630 = vmatpush1.msra.mxu0 0.0
    %3631 = vmatprep.subr.mxu0 0.0
    %3632 = vmatpush1.msra.mxu0 0.0
    %3633 = vmatprep.subr.mxu0 0.0
    %3634 = vmatpush1.msra.mxu0 0.0
    %3635 = vmatprep.subr.mxu0 0.0
    %3636 = vmatpush1.msra.mxu0 0.0
    %3637 = vmatprep.subr.mxu0 0.0
    %3638 = vmatpush1.msra.mxu0 0.0
    %3639 = vmatprep.subr.mxu0 0.0
    %3640 = vmatpush1.msra.mxu0 0.0
    %3641 = vmatprep.subr.mxu0 0.0
    %3642 = vmatpush1.msra.mxu0 0.0
    %3643 = vmatprep.subr.mxu0 0.0
    %3644 = vmatpush1.msra.mxu0 0.0
    %3645 = vmatprep.mubr.f32.mxu0 0.0
    %3646 = vmatmul.mubr.f32.gmra.mrb[0].mxu0 %v3576
    %v3647 = vpop.f32.mrb[0].mxu0
    %v3648 = vadd.f32 0.0, %v3647
    %v3649 = vpop.f32.mrb[0].mxu0
    %3650 = vmatprep.mubr.f32.mxu0 0.0
    %3651 = vmatmul.mubr.f32.gmra.mrb[0].mxu0 %v3579
    %v3652 = vpop.f32.mrb[0].mxu0
    %v3653 = vadd.f32 0.0, %v3652
    %v3654 = vpop.f32.mrb[0].mxu0
    %3655 = vdwg.mxu0
    %v3656 = vld [vmem:[%s3246 + $0x8] sm:$0xff]
    %v3658 = vsel %vm297, %v3561, 0
    %v3661 = vsel %vm297, %v3566, 0
    %v3664 = vsel %vm297, %v3648, 0
    %v3667 = vsel %vm297, %v3653, 0
    %3669 = vmatprep.subr.mxu0 0.0
    %3670 = vmatpush1.msra.mxu0 %v3656
    %3671 = vmatprep.subr.mxu0 0.0
    %3672 = vmatpush1.msra.mxu0 0.0
    %3673 = vmatprep.subr.mxu0 0.0
    %3674 = vmatpush1.msra.mxu0 0.0
    %3675 = vmatprep.subr.mxu0 0.0
    %3676 = vmatpush1.msra.mxu0 0.0
    %3677 = vmatprep.subr.mxu0 0.0
    %3678 = vmatpush1.msra.mxu0 0.0
    %3679 = vmatprep.subr.mxu0 0.0
    %3680 = vmatpush1.msra.mxu0 0.0
    %3681 = vmatprep.subr.mxu0 0.0
    %3682 = vmatpush1.msra.mxu0 0.0
    %3683 = vmatprep.subr.mxu0 0.0
    %3684 = vmatpush1.msra.mxu0 0.0
    %3685 = vmatprep.subr.mxu0 0.0
    %3686 = vmatpush1.msra.mxu0 0.0
    %3687 = vmatprep.subr.mxu0 0.0
    %3688 = vmatpush1.msra.mxu0 0.0
    %3689 = vmatprep.subr.mxu0 0.0
    %3690 = vmatpush1.msra.mxu0 0.0
    %3691 = vmatprep.subr.mxu0 0.0
    %3692 = vmatpush1.msra.mxu0 0.0
    %3693 = vmatprep.subr.mxu0 0.0
    %3694 = vmatpush1.msra.mxu0 0.0
    %3695 = vmatprep.subr.mxu0 0.0
    %3696 = vmatpush1.msra.mxu0 0.0
    %3697 = vmatprep.subr.mxu0 0.0
    %3698 = vmatpush1.msra.mxu0 0.0
    %3699 = vmatprep.subr.mxu0 0.0
    %3700 = vmatpush1.msra.mxu0 0.0
    %3701 = vmatprep.subr.mxu0 0.0
    %3702 = vmatpush1.msra.mxu0 0.0
    %3703 = vmatprep.subr.mxu0 0.0
    %3704 = vmatpush1.msra.mxu0 0.0
    %3705 = vmatprep.subr.mxu0 0.0
    %3706 = vmatpush1.msra.mxu0 0.0
    %3707 = vmatprep.subr.mxu0 0.0
    %3708 = vmatpush1.msra.mxu0 0.0
    %3709 = vmatprep.subr.mxu0 0.0
    %3710 = vmatpush1.msra.mxu0 0.0
    %3711 = vmatprep.subr.mxu0 0.0
    %3712 = vmatpush1.msra.mxu0 0.0
    %3713 = vmatprep.subr.mxu0 0.0
    %3714 = vmatpush1.msra.mxu0 0.0
    %3715 = vmatprep.subr.mxu0 0.0
    %3716 = vmatpush1.msra.mxu0 0.0
    %3717 = vmatprep.subr.mxu0 0.0
    %3718 = vmatpush1.msra.mxu0 0.0
    %3719 = vmatprep.subr.mxu0 0.0
    %3720 = vmatpush1.msra.mxu0 0.0
    %3721 = vmatprep.subr.mxu0 0.0
    %3722 = vmatpush1.msra.mxu0 0.0
    %3723 = vmatprep.subr.mxu0 0.0
    %3724 = vmatpush1.msra.mxu0 0.0
    %3725 = vmatprep.subr.mxu0 0.0
    %3726 = vmatpush1.msra.mxu0 0.0
    %3727 = vmatprep.subr.mxu0 0.0
    %3728 = vmatpush1.msra.mxu0 0.0
    %3729 = vmatprep.subr.mxu0 0.0
    %3730 = vmatpush1.msra.mxu0 0.0
    %3731 = vmatprep.subr.mxu0 0.0
    %3732 = vmatpush1.msra.mxu0 0.0
    %3733 = vmatprep.mubr.f32.mxu0 0.0
    %3734 = vmatmul.mubr.f32.gmra.mrb[0].mxu0 %v3658
    %v3735 = vpop.f32.mrb[0].mxu0
    %v3736 = vadd.f32 0.0, %v3735
    %v3737 = vpop.f32.mrb[0].mxu0
    %3738 = vmatprep.mubr.f32.mxu0 0.0
    %3739 = vmatmul.mubr.f32.gmra.mrb[0].mxu0 %v3661
    %v3740 = vpop.f32.mrb[0].mxu0
    %v3741 = vadd.f32 0.0, %v3740
    %v3742 = vpop.f32.mrb[0].mxu0
    %3743 = vmatprep.mubr.f32.mxu0 0.0
    %3744 = vmatmul.mubr.f32.gmra.mrb[0].mxu0 %v3664
    %v3745 = vpop.f32.mrb[0].mxu0
    %v3746 = vadd.f32 0.0, %v3745
    %v3747 = vpop.f32.mrb[0].mxu0
    %3748 = vmatprep.mubr.f32.mxu0 0.0
    %3749 = vmatmul.mubr.f32.gmra.mrb[0].mxu0 %v3667
    %v3750 = vpop.f32.mrb[0].mxu0
    %v3751 = vadd.f32 0.0, %v3750
    %v3752 = vpop.f32.mrb[0].mxu0
    %3753 = vdwg.mxu0
    %v3755 = vsel %vm297, %v3151, 0
    %v3758 = vsel %vm297, %v3156, 0
    %v3761 = vsel %vm297, %v3238, 0
    %v3764 = vsel %vm297, %v3243, 0
    %3766 = vmatprep.subr.mxu0 0.0
    %3767 = vmatpush1.msra.mxu0 %v3247
    %3768 = vmatprep.subr.mxu0 0.0
    %3769 = vmatpush1.msra.mxu0 0.0
    %3770 = vmatprep.subr.mxu0 0.0
    %3771 = vmatpush1.msra.mxu0 0.0
    %3772 = vmatprep.subr.mxu0 0.0
    %3773 = vmatpush1.msra.mxu0 0.0
    %3774 = vmatprep.subr.mxu0 0.0
    %3775 = vmatpush1.msra.mxu0 0.0
    %3776 = vmatprep.subr.mxu0 0.0
    %3777 = vmatpush1.msra.mxu0 0.0
    %3778 = vmatprep.subr.mxu0 0.0
    %3779 = vmatpush1.msra.mxu0 0.0
    %3780 = vmatprep.subr.mxu0 0.0
    %3781 = vmatpush1.msra.mxu0 0.0
    %3782 = vmatprep.subr.mxu0 0.0
    %3783 = vmatpush1.msra.mxu0 0.0
    %3784 = vmatprep.subr.mxu0 0.0
    %3785 = vmatpush1.msra.mxu0 0.0
    %3786 = vmatprep.subr.mxu0 0.0
    %3787 = vmatpush1.msra.mxu0 0.0
    %3788 = vmatprep.subr.mxu0 0.0
    %3789 = vmatpush1.msra.mxu0 0.0
    %3790 = vmatprep.subr.mxu0 0.0
    %3791 = vmatpush1.msra.mxu0 0.0
    %3792 = vmatprep.subr.mxu0 0.0
    %3793 = vmatpush1.msra.mxu0 0.0
    %3794 = vmatprep.subr.mxu0 0.0
    %3795 = vmatpush1.msra.mxu0 0.0
    %3796 = vmatprep.subr.mxu0 0.0
    %3797 = vmatpush1.msra.mxu0 0.0
    %3798 = vmatprep.subr.mxu0 0.0
    %3799 = vmatpush1.msra.mxu0 0.0
    %3800 = vmatprep.subr.mxu0 0.0
    %3801 = vmatpush1.msra.mxu0 0.0
    %3802 = vmatprep.subr.mxu0 0.0
    %3803 = vmatpush1.msra.mxu0 0.0
    %3804 = vmatprep.subr.mxu0 0.0
    %3805 = vmatpush1.msra.mxu0 0.0
    %3806 = vmatprep.subr.mxu0 0.0
    %3807 = vmatpush1.msra.mxu0 0.0
    %3808 = vmatprep.subr.mxu0 0.0
    %3809 = vmatpush1.msra.mxu0 0.0
    %3810 = vmatprep.subr.mxu0 0.0
    %3811 = vmatpush1.msra.mxu0 0.0
    %3812 = vmatprep.subr.mxu0 0.0
    %3813 = vmatpush1.msra.mxu0 0.0
    %3814 = vmatprep.subr.mxu0 0.0
    %3815 = vmatpush1.msra.mxu0 0.0
    %3816 = vmatprep.subr.mxu0 0.0
    %3817 = vmatpush1.msra.mxu0 0.0
    %3818 = vmatprep.subr.mxu0 0.0
    %3819 = vmatpush1.msra.mxu0 0.0
    %3820 = vmatprep.subr.mxu0 0.0
    %3821 = vmatpush1.msra.mxu0 0.0
    %3822 = vmatprep.subr.mxu0 0.0
    %3823 = vmatpush1.msra.mxu0 0.0
    %3824 = vmatprep.subr.mxu0 0.0
    %3825 = vmatpush1.msra.mxu0 0.0
    %3826 = vmatprep.subr.mxu0 0.0
    %3827 = vmatpush1.msra.mxu0 0.0
    %3828 = vmatprep.subr.mxu0 0.0
    %3829 = vmatpush1.msra.mxu0 0.0
    %3830 = vmatprep.mubr.f32.mxu0 0.0
    %3831 = vmatmul.mubr.f32.gmra.mrb[0].mxu0 %v3755
    %v3832 = vpop.f32.mrb[0].mxu0
    %v3833 = vadd.f32 %v3736, %v3832
    %v3834 = vpop.f32.mrb[0].mxu0
    %3835 = vmatprep.mubr.f32.mxu0 0.0
    %3836 = vmatmul.mubr.f32.gmra.mrb[0].mxu0 %v3758
    %v3837 = vpop.f32.mrb[0].mxu0
    %v3838 = vadd.f32 %v3741, %v3837
    %v3839 = vpop.f32.mrb[0].mxu0
    %3840 = vmatprep.mubr.f32.mxu0 0.0
    %3841 = vmatmul.mubr.f32.gmra.mrb[0].mxu0 %v3761
    %v3842 = vpop.f32.mrb[0].mxu0
    %v3843 = vadd.f32 %v3746, %v3842
    %v3844 = vpop.f32.mrb[0].mxu0
    %3845 = vmatprep.mubr.f32.mxu0 0.0
    %3846 = vmatmul.mubr.f32.gmra.mrb[0].mxu0 %v3764
    %v3847 = vpop.f32.mrb[0].mxu0
    %v3848 = vadd.f32 %v3751, %v3847
    %v3849 = vpop.f32.mrb[0].mxu0
    %3850 = vdwg.mxu0
    %3851 = vrot.lane.b32.xlu0 %v2824, 112
    %v3852 = vpop.permute.xlu0 %3851
    %3853 = vrot.lane.b32.xlu0 %v2829, 112
    %v3854 = vpop.permute.xlu0 %3853
    %3855 = vrot.lane.b32.xlu0 %v2824, 80
    %v3856 = vpop.permute.xlu0 %3855
    %3857 = vrot.lane.b32.xlu0 %v2829, 80
    %v3858 = vpop.permute.xlu0 %3857
    %v3859 = vsel %vm297, %v3852, 0
    %v3861 = vsel %vm297, %v3854, 0
    %v3863 = vsel %vm297, %v3856, 0
    %v3865 = vsel %vm297, %v3858, 0
    %3867 = vmatprep.subr.mxu0 0.0
    %3868 = vmatpush1.xpose.msra.mxu0 %v3863
    %3869 = vmatprep.subr.mxu0 0.0
    %3870 = vmatpush1.xpose.msra.mxu0 %v3865
    %3871 = vmatprep.subr.mxu0 0.0
    %3872 = vmatpush1.xpose.msra.mxu0 0.0
    %3873 = vmatprep.subr.mxu0 0.0
    %3874 = vmatpush1.xpose.msra.mxu0 0.0
    %3875 = vmatprep.subr.mxu0 0.0
    %3876 = vmatpush1.xpose.msra.mxu0 0.0
    %3877 = vmatprep.subr.mxu0 0.0
    %3878 = vmatpush1.xpose.msra.mxu0 0.0
    %3879 = vmatprep.subr.mxu0 0.0
    %3880 = vmatpush1.xpose.msra.mxu0 0.0
    %3881 = vmatprep.subr.mxu0 0.0
    %3882 = vmatpush1.xpose.msra.mxu0 0.0
    %3883 = vmatprep.subr.mxu0 0.0
    %3884 = vmatpush1.xpose.msra.mxu0 0.0
    %3885 = vmatprep.subr.mxu0 0.0
    %3886 = vmatpush1.xpose.msra.mxu0 0.0
    %3887 = vmatprep.subr.mxu0 0.0
    %3888 = vmatpush1.xpose.msra.mxu0 0.0
    %3889 = vmatprep.subr.mxu0 0.0
    %3890 = vmatpush1.xpose.msra.mxu0 0.0
    %3891 = vmatprep.subr.mxu0 0.0
    %3892 = vmatpush1.xpose.msra.mxu0 0.0
    %3893 = vmatprep.subr.mxu0 0.0
    %3894 = vmatpush1.xpose.msra.mxu0 0.0
    %3895 = vmatprep.subr.mxu0 0.0
    %3896 = vmatpush1.xpose.msra.mxu0 0.0
    %3897 = vmatprep.subr.mxu0 0.0
    %3898 = vmatpush1.xpose.msra.mxu0 0.0
    %3899 = vmatprep.subr.mxu0 0.0
    %3900 = vmatpush1.xpose.msra.mxu0 0.0
    %3901 = vmatprep.subr.mxu0 0.0
    %3902 = vmatpush1.xpose.msra.mxu0 0.0
    %3903 = vmatprep.subr.mxu0 0.0
    %3904 = vmatpush1.xpose.msra.mxu0 0.0
    %3905 = vmatprep.subr.mxu0 0.0
    %3906 = vmatpush1.xpose.msra.mxu0 0.0
    %3907 = vmatprep.subr.mxu0 0.0
    %3908 = vmatpush1.xpose.msra.mxu0 0.0
    %3909 = vmatprep.subr.mxu0 0.0
    %3910 = vmatpush1.xpose.msra.mxu0 0.0
    %3911 = vmatprep.subr.mxu0 0.0
    %3912 = vmatpush1.xpose.msra.mxu0 0.0
    %3913 = vmatprep.subr.mxu0 0.0
    %3914 = vmatpush1.xpose.msra.mxu0 0.0
    %3915 = vmatprep.subr.mxu0 0.0
    %3916 = vmatpush1.xpose.msra.mxu0 0.0
    %3917 = vmatprep.subr.mxu0 0.0
    %3918 = vmatpush1.xpose.msra.mxu0 0.0
    %3919 = vmatprep.subr.mxu0 0.0
    %3920 = vmatpush1.xpose.msra.mxu0 0.0
    %3921 = vmatprep.subr.mxu0 0.0
    %3922 = vmatpush1.xpose.msra.mxu0 0.0
    %3923 = vmatprep.subr.mxu0 0.0
    %3924 = vmatpush1.xpose.msra.mxu0 0.0
    %3925 = vmatprep.subr.mxu0 0.0
    %3926 = vmatpush1.xpose.msra.mxu0 0.0
    %3927 = vmatprep.subr.mxu0 0.0
    %3928 = vmatpush1.xpose.msra.mxu0 0.0
    %3929 = vmatprep.subr.mxu0 0.0
    %3930 = vmatpush1.xpose.msra.mxu0 0.0
    %3931 = vmatprep.mubr.f32.mxu0 0.0
    %3932 = vmatmul.mubr.f32.gmra.mrb[0].mxu0 %v3859
    %v3933 = vpop.f32.mrb[0].mxu0
    %v3934 = vadd.f32 0.0, %v3933
    %v3935 = vpop.f32.mrb[0].mxu0
    %3936 = vmatprep.mubr.f32.mxu0 0.0
    %3937 = vmatmul.mubr.f32.gmra.mrb[0].mxu0 %v3861
    %v3938 = vpop.f32.mrb[0].mxu0
    %v3939 = vadd.f32 0.0, %v3938
    %v3940 = vpop.f32.mrb[0].mxu0
    %3941 = vdwg.mxu0
    %3942 = vrot.lane.b32.xlu0 %v2834, 112
    %v3943 = vpop.permute.xlu0 %3942
    %3944 = vrot.lane.b32.xlu0 %v2839, 112
    %v3945 = vpop.permute.xlu0 %3944
    %3946 = vrot.lane.b32.xlu0 %v2834, 80
    %v3947 = vpop.permute.xlu0 %3946
    %3948 = vrot.lane.b32.xlu0 %v2839, 80
    %v3949 = vpop.permute.xlu0 %3948
    %v3950 = vsel %vm297, %v3943, 0
    %v3952 = vsel %vm297, %v3945, 0
    %v3954 = vsel %vm297, %v3947, 0
    %v3956 = vsel %vm297, %v3949, 0
    %3958 = vmatprep.subr.mxu0 0.0
    %3959 = vmatpush1.xpose.msra.mxu0 %v3954
    %3960 = vmatprep.subr.mxu0 0.0
    %3961 = vmatpush1.xpose.msra.mxu0 %v3956
    %3962 = vmatprep.subr.mxu0 0.0
    %3963 = vmatpush1.xpose.msra.mxu0 0.0
    %3964 = vmatprep.subr.mxu0 0.0
    %3965 = vmatpush1.xpose.msra.mxu0 0.0
    %3966 = vmatprep.subr.mxu0 0.0
    %3967 = vmatpush1.xpose.msra.mxu0 0.0
    %3968 = vmatprep.subr.mxu0 0.0
    %3969 = vmatpush1.xpose.msra.mxu0 0.0
    %3970 = vmatprep.subr.mxu0 0.0
    %3971 = vmatpush1.xpose.msra.mxu0 0.0
    %3972 = vmatprep.subr.mxu0 0.0
    %3973 = vmatpush1.xpose.msra.mxu0 0.0
    %3974 = vmatprep.subr.mxu0 0.0
    %3975 = vmatpush1.xpose.msra.mxu0 0.0
    %3976 = vmatprep.subr.mxu0 0.0
    %3977 = vmatpush1.xpose.msra.mxu0 0.0
    %3978 = vmatprep.subr.mxu0 0.0
    %3979 = vmatpush1.xpose.msra.mxu0 0.0
    %3980 = vmatprep.subr.mxu0 0.0
    %3981 = vmatpush1.xpose.msra.mxu0 0.0
    %3982 = vmatprep.subr.mxu0 0.0
    %3983 = vmatpush1.xpose.msra.mxu0 0.0
    %3984 = vmatprep.subr.mxu0 0.0
    %3985 = vmatpush1.xpose.msra.mxu0 0.0
    %3986 = vmatprep.subr.mxu0 0.0
    %3987 = vmatpush1.xpose.msra.mxu0 0.0
    %3988 = vmatprep.subr.mxu0 0.0
    %3989 = vmatpush1.xpose.msra.mxu0 0.0
    %3990 = vmatprep.subr.mxu0 0.0
    %3991 = vmatpush1.xpose.msra.mxu0 0.0
    %3992 = vmatprep.subr.mxu0 0.0
    %3993 = vmatpush1.xpose.msra.mxu0 0.0
    %3994 = vmatprep.subr.mxu0 0.0
    %3995 = vmatpush1.xpose.msra.mxu0 0.0
    %3996 = vmatprep.subr.mxu0 0.0
    %3997 = vmatpush1.xpose.msra.mxu0 0.0
    %3998 = vmatprep.subr.mxu0 0.0
    %3999 = vmatpush1.xpose.msra.mxu0 0.0
    %4000 = vmatprep.subr.mxu0 0.0
    %4001 = vmatpush1.xpose.msra.mxu0 0.0
    %4002 = vmatprep.subr.mxu0 0.0
    %4003 = vmatpush1.xpose.msra.mxu0 0.0
    %4004 = vmatprep.subr.mxu0 0.0
    %4005 = vmatpush1.xpose.msra.mxu0 0.0
    %4006 = vmatprep.subr.mxu0 0.0
    %4007 = vmatpush1.xpose.msra.mxu0 0.0
    %4008 = vmatprep.subr.mxu0 0.0
    %4009 = vmatpush1.xpose.msra.mxu0 0.0
    %4010 = vmatprep.subr.mxu0 0.0
    %4011 = vmatpush1.xpose.msra.mxu0 0.0
    %4012 = vmatprep.subr.mxu0 0.0
    %4013 = vmatpush1.xpose.msra.mxu0 0.0
    %4014 = vmatprep.subr.mxu0 0.0
    %4015 = vmatpush1.xpose.msra.mxu0 0.0
    %4016 = vmatprep.subr.mxu0 0.0
    %4017 = vmatpush1.xpose.msra.mxu0 0.0
    %4018 = vmatprep.subr.mxu0 0.0
    %4019 = vmatpush1.xpose.msra.mxu0 0.0
    %4020 = vmatprep.subr.mxu0 0.0
    %4021 = vmatpush1.xpose.msra.mxu0 0.0
    %4022 = vmatprep.mubr.f32.mxu0 0.0
    %4023 = vmatmul.mubr.f32.gmra.mrb[0].mxu0 %v3950
    %v4024 = vpop.f32.mrb[0].mxu0
    %v4025 = vadd.f32 0.0, %v4024
    %v4026 = vpop.f32.mrb[0].mxu0
    %4027 = vmatprep.mubr.f32.mxu0 0.0
    %4028 = vmatmul.mubr.f32.gmra.mrb[0].mxu0 %v3952
    %v4029 = vpop.f32.mrb[0].mxu0
    %v4030 = vadd.f32 0.0, %v4029
    %v4031 = vpop.f32.mrb[0].mxu0
    %4032 = vdwg.mxu0
    %v4033 = vmul.f32 %v3934, 0.35355338
    %v4034 = vmul.f32 %v3939, 0.35355338
    %v4035 = vmul.f32 %v4025, 0.35355338
    %v4036 = vmul.f32 %v4030, 0.35355338
    %v4037 = vadd.f32 %v4033, %v477
    %v4038 = vadd.f32 %v4034, %v477
    %v4039 = vadd.f32 %v4035, %v481
    %v4040 = vadd.f32 %v4036, %v481
    %v4041 = vsel %vm488, %v4037, -inf
    %4042 = vmax.xlane.f32.xlu0 %v4041
    %v4043 = vpop.xlane.xlu0 %4042
    %v4044 = vsel %vm488, %v4038, -inf
    %4045 = vmax.xlane.f32.xlu0 %v4044
    %v4046 = vpop.xlane.xlu0 %4045
    %v4047 = vsel %vm488, %v4039, -inf
    %4048 = vmax.xlane.f32.xlu0 %v4047
    %v4049 = vpop.xlane.xlu0 %4048
    %v4050 = vsel %vm488, %v4040, -inf
    %4051 = vmax.xlane.f32.xlu0 %v4050
    %v4052 = vpop.xlane.xlu0 %4051
    %v4053 = vsub.f32 %v4037, %v4043
    %v4054 = vsub.f32 %v4038, %v4046
    %v4055 = vsub.f32 %v4039, %v4049
    %v4056 = vsub.f32 %v4040, %v4052
    %v4057 = vmul.f32 %v4053, 1.442695
    %v4058 = vpow.pop %v4057
    %v4059 = vmul.f32 %v4054, 1.442695
    %v4060 = vpow.pop %v4059
    %v4061 = vmul.f32 %v4055, 1.442695
    %v4062 = vpow.pop %v4061
    %v4063 = vmul.f32 %v4056, 1.442695
    %v4064 = vpow.pop %v4063
    %v4065 = vsel %vm488, %v4058, 0.0
    %4066 = vadd.xlane.f32.xlu0 %v4065
    %v4067 = vpop.xlane.xlu0 %4066
    %v4068 = vsel %vm488, %v4060, 0.0
    %4069 = vadd.xlane.f32.xlu0 %v4068
    %v4070 = vpop.xlane.xlu0 %4069
    %v4071 = vsel %vm488, %v4062, 0.0
    %4072 = vadd.xlane.f32.xlu0 %v4071
    %v4073 = vpop.xlane.xlu0 %4072
    %v4074 = vsel %vm488, %v4064, 0.0
    %4075 = vadd.xlane.f32.xlu0 %v4074
    %v4076 = vpop.xlane.xlu0 %4075
    %v4077 = vrcp.pop %v4067
    %v4078 = vrcp.pop %v4070
    %v4079 = vrcp.pop %v4073
    %v4080 = vrcp.pop %v4076
    %v4081 = vmul.f32 %v4058, %v4077
    %v4082 = vmul.f32 %v4060, %v4078
    %v4083 = vmul.f32 %v4062, %v4079
    %v4084 = vmul.f32 %v4064, %v4080
    %4085 = vrot.lane.b32.xlu0 %v2824, 48
    %v4086 = vpop.permute.xlu0 %4085
    %4087 = vrot.lane.b32.xlu0 %v2829, 48
    %v4088 = vpop.permute.xlu0 %4087
    %v4092 = vsel %vm488, %v4081, 0
    %v4095 = vsel %vm488, %v4082, 0
    %4097 = vmatprep.subr.mxu0 0.0
    %4098 = vmatpush1.msra.mxu0 %v4086
    %4099 = vmatprep.subr.mxu0 0.0
    %4100 = vmatpush1.msra.mxu0 %v4088
    %4101 = vmatprep.subr.mxu0 0.0
    %4102 = vmatpush1.msra.mxu0 0.0
    %4103 = vmatprep.subr.mxu0 0.0
    %4104 = vmatpush1.msra.mxu0 0.0
    %4105 = vmatprep.subr.mxu0 0.0
    %4106 = vmatpush1.msra.mxu0 0.0
    %4107 = vmatprep.subr.mxu0 0.0
    %4108 = vmatpush1.msra.mxu0 0.0
    %4109 = vmatprep.subr.mxu0 0.0
    %4110 = vmatpush1.msra.mxu0 0.0
    %4111 = vmatprep.subr.mxu0 0.0
    %4112 = vmatpush1.msra.mxu0 0.0
    %4113 = vmatprep.subr.mxu0 0.0
    %4114 = vmatpush1.msra.mxu0 0.0
    %4115 = vmatprep.subr.mxu0 0.0
    %4116 = vmatpush1.msra.mxu0 0.0
    %4117 = vmatprep.subr.mxu0 0.0
    %4118 = vmatpush1.msra.mxu0 0.0
    %4119 = vmatprep.subr.mxu0 0.0
    %4120 = vmatpush1.msra.mxu0 0.0
    %4121 = vmatprep.subr.mxu0 0.0
    %4122 = vmatpush1.msra.mxu0 0.0
    %4123 = vmatprep.subr.mxu0 0.0
    %4124 = vmatpush1.msra.mxu0 0.0
    %4125 = vmatprep.subr.mxu0 0.0
    %4126 = vmatpush1.msra.mxu0 0.0
    %4127 = vmatprep.subr.mxu0 0.0
    %4128 = vmatpush1.msra.mxu0 0.0
    %4129 = vmatprep.subr.mxu0 0.0
    %4130 = vmatpush1.msra.mxu0 0.0
    %4131 = vmatprep.subr.mxu0 0.0
    %4132 = vmatpush1.msra.mxu0 0.0
    %4133 = vmatprep.subr.mxu0 0.0
    %4134 = vmatpush1.msra.mxu0 0.0
    %4135 = vmatprep.subr.mxu0 0.0
    %4136 = vmatpush1.msra.mxu0 0.0
    %4137 = vmatprep.subr.mxu0 0.0
    %4138 = vmatpush1.msra.mxu0 0.0
    %4139 = vmatprep.subr.mxu0 0.0
    %4140 = vmatpush1.msra.mxu0 0.0
    %4141 = vmatprep.subr.mxu0 0.0
    %4142 = vmatpush1.msra.mxu0 0.0
    %4143 = vmatprep.subr.mxu0 0.0
    %4144 = vmatpush1.msra.mxu0 0.0
    %4145 = vmatprep.subr.mxu0 0.0
    %4146 = vmatpush1.msra.mxu0 0.0
    %4147 = vmatprep.subr.mxu0 0.0
    %4148 = vmatpush1.msra.mxu0 0.0
    %4149 = vmatprep.subr.mxu0 0.0
    %4150 = vmatpush1.msra.mxu0 0.0
    %4151 = vmatprep.subr.mxu0 0.0
    %4152 = vmatpush1.msra.mxu0 0.0
    %4153 = vmatprep.subr.mxu0 0.0
    %4154 = vmatpush1.msra.mxu0 0.0
    %4155 = vmatprep.subr.mxu0 0.0
    %4156 = vmatpush1.msra.mxu0 0.0
    %4157 = vmatprep.subr.mxu0 0.0
    %4158 = vmatpush1.msra.mxu0 0.0
    %4159 = vmatprep.subr.mxu0 0.0
    %4160 = vmatpush1.msra.mxu0 0.0
    %4161 = vmatprep.mubr.f32.mxu0 0.0
    %4162 = vmatmul.mubr.f32.gmra.mrb[0].mxu0 %v4092
    %v4163 = vpop.f32.mrb[0].mxu0
    %v4164 = vadd.f32 0.0, %v4163
    %v4165 = vpop.f32.mrb[0].mxu0
    %4166 = vmatprep.mubr.f32.mxu0 0.0
    %4167 = vmatmul.mubr.f32.gmra.mrb[0].mxu0 %v4095
    %v4168 = vpop.f32.mrb[0].mxu0
    %v4169 = vadd.f32 0.0, %v4168
    %v4170 = vpop.f32.mrb[0].mxu0
    %4171 = vdwg.mxu0
    %4172 = vrot.lane.b32.xlu0 %v2834, 48
    %v4173 = vpop.permute.xlu0 %4172
    %4174 = vrot.lane.b32.xlu0 %v2839, 48
    %v4175 = vpop.permute.xlu0 %4174
    %v4179 = vsel %vm488, %v4083, 0
    %v4182 = vsel %vm488, %v4084, 0
    %4184 = vmatprep.subr.mxu0 0.0
    %4185 = vmatpush1.msra.mxu0 %v4173
    %4186 = vmatprep.subr.mxu0 0.0
    %4187 = vmatpush1.msra.mxu0 %v4175
    %4188 = vmatprep.subr.mxu0 0.0
    %4189 = vmatpush1.msra.mxu0 0.0
    %4190 = vmatprep.subr.mxu0 0.0
    %4191 = vmatpush1.msra.mxu0 0.0
    %4192 = vmatprep.subr.mxu0 0.0
    %4193 = vmatpush1.msra.mxu0 0.0
    %4194 = vmatprep.subr.mxu0 0.0
    %4195 = vmatpush1.msra.mxu0 0.0
    %4196 = vmatprep.subr.mxu0 0.0
    %4197 = vmatpush1.msra.mxu0 0.0
    %4198 = vmatprep.subr.mxu0 0.0
    %4199 = vmatpush1.msra.mxu0 0.0
    %4200 = vmatprep.subr.mxu0 0.0
    %4201 = vmatpush1.msra.mxu0 0.0
    %4202 = vmatprep.subr.mxu0 0.0
    %4203 = vmatpush1.msra.mxu0 0.0
    %4204 = vmatprep.subr.mxu0 0.0
    %4205 = vmatpush1.msra.mxu0 0.0
    %4206 = vmatprep.subr.mxu0 0.0
    %4207 = vmatpush1.msra.mxu0 0.0
    %4208 = vmatprep.subr.mxu0 0.0
    %4209 = vmatpush1.msra.mxu0 0.0
    %4210 = vmatprep.subr.mxu0 0.0
    %4211 = vmatpush1.msra.mxu0 0.0
    %4212 = vmatprep.subr.mxu0 0.0
    %4213 = vmatpush1.msra.mxu0 0.0
    %4214 = vmatprep.subr.mxu0 0.0
    %4215 = vmatpush1.msra.mxu0 0.0
    %4216 = vmatprep.subr.mxu0 0.0
    %4217 = vmatpush1.msra.mxu0 0.0
    %4218 = vmatprep.subr.mxu0 0.0
    %4219 = vmatpush1.msra.mxu0 0.0
    %4220 = vmatprep.subr.mxu0 0.0
    %4221 = vmatpush1.msra.mxu0 0.0
    %4222 = vmatprep.subr.mxu0 0.0
    %4223 = vmatpush1.msra.mxu0 0.0
    %4224 = vmatprep.subr.mxu0 0.0
    %4225 = vmatpush1.msra.mxu0 0.0
    %4226 = vmatprep.subr.mxu0 0.0
    %4227 = vmatpush1.msra.mxu0 0.0
    %4228 = vmatprep.subr.mxu0 0.0
    %4229 = vmatpush1.msra.mxu0 0.0
    %4230 = vmatprep.subr.mxu0 0.0
    %4231 = vmatpush1.msra.mxu0 0.0
    %4232 = vmatprep.subr.mxu0 0.0
    %4233 = vmatpush1.msra.mxu0 0.0
    %4234 = vmatprep.subr.mxu0 0.0
    %4235 = vmatpush1.msra.mxu0 0.0
    %4236 = vmatprep.subr.mxu0 0.0
    %4237 = vmatpush1.msra.mxu0 0.0
    %4238 = vmatprep.subr.mxu0 0.0
    %4239 = vmatpush1.msra.mxu0 0.0
    %4240 = vmatprep.subr.mxu0 0.0
    %4241 = vmatpush1.msra.mxu0 0.0
    %4242 = vmatprep.subr.mxu0 0.0
    %4243 = vmatpush1.msra.mxu0 0.0
    %4244 = vmatprep.subr.mxu0 0.0
    %4245 = vmatpush1.msra.mxu0 0.0
    %4246 = vmatprep.subr.mxu0 0.0
    %4247 = vmatpush1.msra.mxu0 0.0
    %4248 = vmatprep.mubr.f32.mxu0 0.0
    %4249 = vmatmul.mubr.f32.gmra.mrb[0].mxu0 %v4179
    %v4250 = vpop.f32.mrb[0].mxu0
    %v4251 = vadd.f32 0.0, %v4250
    %v4252 = vpop.f32.mrb[0].mxu0
    %4253 = vmatprep.mubr.f32.mxu0 0.0
    %4254 = vmatmul.mubr.f32.gmra.mrb[0].mxu0 %v4182
    %v4255 = vpop.f32.mrb[0].mxu0
    %v4256 = vadd.f32 0.0, %v4255
    %v4257 = vpop.f32.mrb[0].mxu0
    %4258 = vdwg.mxu0
    %v4259 = vld [vmem:[%s3246 + $0x10] sm:$0xff]
    %v4261 = vsel %vm297, %v4164, 0
    %v4264 = vsel %vm297, %v4169, 0
    %v4267 = vsel %vm297, %v4251, 0
    %v4270 = vsel %vm297, %v4256, 0
    %4272 = vmatprep.subr.mxu0 0.0
    %4273 = vmatpush1.msra.mxu0 %v4259
    %4274 = vmatprep.subr.mxu0 0.0
    %4275 = vmatpush1.msra.mxu0 0.0
    %4276 = vmatprep.subr.mxu0 0.0
    %4277 = vmatpush1.msra.mxu0 0.0
    %4278 = vmatprep.subr.mxu0 0.0
    %4279 = vmatpush1.msra.mxu0 0.0
    %4280 = vmatprep.subr.mxu0 0.0
    %4281 = vmatpush1.msra.mxu0 0.0
    %4282 = vmatprep.subr.mxu0 0.0
    %4283 = vmatpush1.msra.mxu0 0.0
    %4284 = vmatprep.subr.mxu0 0.0
    %4285 = vmatpush1.msra.mxu0 0.0
    %4286 = vmatprep.subr.mxu0 0.0
    %4287 = vmatpush1.msra.mxu0 0.0
    %4288 = vmatprep.subr.mxu0 0.0
    %4289 = vmatpush1.msra.mxu0 0.0
    %4290 = vmatprep.subr.mxu0 0.0
    %4291 = vmatpush1.msra.mxu0 0.0
    %4292 = vmatprep.subr.mxu0 0.0
    %4293 = vmatpush1.msra.mxu0 0.0
    %4294 = vmatprep.subr.mxu0 0.0
    %4295 = vmatpush1.msra.mxu0 0.0
    %4296 = vmatprep.subr.mxu0 0.0
    %4297 = vmatpush1.msra.mxu0 0.0
    %4298 = vmatprep.subr.mxu0 0.0
    %4299 = vmatpush1.msra.mxu0 0.0
    %4300 = vmatprep.subr.mxu0 0.0
    %4301 = vmatpush1.msra.mxu0 0.0
    %4302 = vmatprep.subr.mxu0 0.0
    %4303 = vmatpush1.msra.mxu0 0.0
    %4304 = vmatprep.subr.mxu0 0.0
    %4305 = vmatpush1.msra.mxu0 0.0
    %4306 = vmatprep.subr.mxu0 0.0
    %4307 = vmatpush1.msra.mxu0 0.0
    %4308 = vmatprep.subr.mxu0 0.0
    %4309 = vmatpush1.msra.mxu0 0.0
    %4310 = vmatprep.subr.mxu0 0.0
    %4311 = vmatpush1.msra.mxu0 0.0
    %4312 = vmatprep.subr.mxu0 0.0
    %4313 = vmatpush1.msra.mxu0 0.0
    %4314 = vmatprep.subr.mxu0 0.0
    %4315 = vmatpush1.msra.mxu0 0.0
    %4316 = vmatprep.subr.mxu0 0.0
    %4317 = vmatpush1.msra.mxu0 0.0
    %4318 = vmatprep.subr.mxu0 0.0
    %4319 = vmatpush1.msra.mxu0 0.0
    %4320 = vmatprep.subr.mxu0 0.0
    %4321 = vmatpush1.msra.mxu0 0.0
    %4322 = vmatprep.subr.mxu0 0.0
    %4323 = vmatpush1.msra.mxu0 0.0
    %4324 = vmatprep.subr.mxu0 0.0
    %4325 = vmatpush1.msra.mxu0 0.0
    %4326 = vmatprep.subr.mxu0 0.0
    %4327 = vmatpush1.msra.mxu0 0.0
    %4328 = vmatprep.subr.mxu0 0.0
    %4329 = vmatpush1.msra.mxu0 0.0
    %4330 = vmatprep.subr.mxu0 0.0
    %4331 = vmatpush1.msra.mxu0 0.0
    %4332 = vmatprep.subr.mxu0 0.0
    %4333 = vmatpush1.msra.mxu0 0.0
    %4334 = vmatprep.subr.mxu0 0.0
    %4335 = vmatpush1.msra.mxu0 0.0
    %4336 = vmatprep.mubr.f32.mxu0 0.0
    %4337 = vmatmul.mubr.f32.gmra.mrb[0].mxu0 %v4261
    %v4338 = vpop.f32.mrb[0].mxu0
    %v4339 = vadd.f32 0.0, %v4338
    %v4340 = vpop.f32.mrb[0].mxu0
    %4341 = vmatprep.mubr.f32.mxu0 0.0
    %4342 = vmatmul.mubr.f32.gmra.mrb[0].mxu0 %v4264
    %v4343 = vpop.f32.mrb[0].mxu0
    %v4344 = vadd.f32 0.0, %v4343
    %v4345 = vpop.f32.mrb[0].mxu0
    %4346 = vmatprep.mubr.f32.mxu0 0.0
    %4347 = vmatmul.mubr.f32.gmra.mrb[0].mxu0 %v4267
    %v4348 = vpop.f32.mrb[0].mxu0
    %v4349 = vadd.f32 0.0, %v4348
    %v4350 = vpop.f32.mrb[0].mxu0
    %4351 = vmatprep.mubr.f32.mxu0 0.0
    %4352 = vmatmul.mubr.f32.gmra.mrb[0].mxu0 %v4270
    %v4353 = vpop.f32.mrb[0].mxu0
    %v4354 = vadd.f32 0.0, %v4353
    %v4355 = vpop.f32.mrb[0].mxu0
    %4356 = vdwg.mxu0
    %v4357 = vadd.f32 %v3833, %v4339
    %v4358 = vadd.f32 %v3838, %v4344
    %v4359 = vadd.f32 %v3843, %v4349
    %v4360 = vadd.f32 %v3848, %v4354
    %4361 = vrot.lane.b32.xlu0 %v2824, 104
    %v4362 = vpop.permute.xlu0 %4361
    %4363 = vrot.lane.b32.xlu0 %v2829, 104
    %v4364 = vpop.permute.xlu0 %4363
    %4365 = vrot.lane.b32.xlu0 %v2824, 72
    %v4366 = vpop.permute.xlu0 %4365
    %4367 = vrot.lane.b32.xlu0 %v2829, 72
    %v4368 = vpop.permute.xlu0 %4367
    %v4369 = vsel %vm297, %v4362, 0
    %v4371 = vsel %vm297, %v4364, 0
    %v4373 = vsel %vm297, %v4366, 0
    %v4375 = vsel %vm297, %v4368, 0
    %4377 = vmatprep.subr.mxu0 0.0
    %4378 = vmatpush1.xpose.msra.mxu0 %v4373
    %4379 = vmatprep.subr.mxu0 0.0
    %4380 = vmatpush1.xpose.msra.mxu0 %v4375
    %4381 = vmatprep.subr.mxu0 0.0
    %4382 = vmatpush1.xpose.msra.mxu0 0.0
    %4383 = vmatprep.subr.mxu0 0.0
    %4384 = vmatpush1.xpose.msra.mxu0 0.0
    %4385 = vmatprep.subr.mxu0 0.0
    %4386 = vmatpush1.xpose.msra.mxu0 0.0
    %4387 = vmatprep.subr.mxu0 0.0
    %4388 = vmatpush1.xpose.msra.mxu0 0.0
    %4389 = vmatprep.subr.mxu0 0.0
    %4390 = vmatpush1.xpose.msra.mxu0 0.0
    %4391 = vmatprep.subr.mxu0 0.0
    %4392 = vmatpush1.xpose.msra.mxu0 0.0
    %4393 = vmatprep.subr.mxu0 0.0
    %4394 = vmatpush1.xpose.msra.mxu0 0.0
    %4395 = vmatprep.subr.mxu0 0.0
    %4396 = vmatpush1.xpose.msra.mxu0 0.0
    %4397 = vmatprep.subr.mxu0 0.0
    %4398 = vmatpush1.xpose.msra.mxu0 0.0
    %4399 = vmatprep.subr.mxu0 0.0
    %4400 = vmatpush1.xpose.msra.mxu0 0.0
    %4401 = vmatprep.subr.mxu0 0.0
    %4402 = vmatpush1.xpose.msra.mxu0 0.0
    %4403 = vmatprep.subr.mxu0 0.0
    %4404 = vmatpush1.xpose.msra.mxu0 0.0
    %4405 = vmatprep.subr.mxu0 0.0
    %4406 = vmatpush1.xpose.msra.mxu0 0.0
    %4407 = vmatprep.subr.mxu0 0.0
    %4408 = vmatpush1.xpose.msra.mxu0 0.0
    %4409 = vmatprep.subr.mxu0 0.0
    %4410 = vmatpush1.xpose.msra.mxu0 0.0
    %4411 = vmatprep.subr.mxu0 0.0
    %4412 = vmatpush1.xpose.msra.mxu0 0.0
    %4413 = vmatprep.subr.mxu0 0.0
    %4414 = vmatpush1.xpose.msra.mxu0 0.0
    %4415 = vmatprep.subr.mxu0 0.0
    %4416 = vmatpush1.xpose.msra.mxu0 0.0
    %4417 = vmatprep.subr.mxu0 0.0
    %4418 = vmatpush1.xpose.msra.mxu0 0.0
    %4419 = vmatprep.subr.mxu0 0.0
    %4420 = vmatpush1.xpose.msra.mxu0 0.0
    %4421 = vmatprep.subr.mxu0 0.0
    %4422 = vmatpush1.xpose.msra.mxu0 0.0
    %4423 = vmatprep.subr.mxu0 0.0
    %4424 = vmatpush1.xpose.msra.mxu0 0.0
    %4425 = vmatprep.subr.mxu0 0.0
    %4426 = vmatpush1.xpose.msra.mxu0 0.0
    %4427 = vmatprep.subr.mxu0 0.0
    %4428 = vmatpush1.xpose.msra.mxu0 0.0
    %4429 = vmatprep.subr.mxu0 0.0
    %4430 = vmatpush1.xpose.msra.mxu0 0.0
    %4431 = vmatprep.subr.mxu0 0.0
    %4432 = vmatpush1.xpose.msra.mxu0 0.0
    %4433 = vmatprep.subr.mxu0 0.0
    %4434 = vmatpush1.xpose.msra.mxu0 0.0
    %4435 = vmatprep.subr.mxu0 0.0
    %4436 = vmatpush1.xpose.msra.mxu0 0.0
    %4437 = vmatprep.subr.mxu0 0.0
    %4438 = vmatpush1.xpose.msra.mxu0 0.0
    %4439 = vmatprep.subr.mxu0 0.0
    %4440 = vmatpush1.xpose.msra.mxu0 0.0
    %4441 = vmatprep.mubr.f32.mxu0 0.0
    %4442 = vmatmul.mubr.f32.gmra.mrb[0].mxu0 %v4369
    %v4443 = vpop.f32.mrb[0].mxu0
    %v4444 = vadd.f32 0.0, %v4443
    %v4445 = vpop.f32.mrb[0].mxu0
    %4446 = vmatprep.mubr.f32.mxu0 0.0
    %4447 = vmatmul.mubr.f32.gmra.mrb[0].mxu0 %v4371
    %v4448 = vpop.f32.mrb[0].mxu0
    %v4449 = vadd.f32 0.0, %v4448
    %v4450 = vpop.f32.mrb[0].mxu0
    %4451 = vdwg.mxu0
    %4452 = vrot.lane.b32.xlu0 %v2834, 104
    %v4453 = vpop.permute.xlu0 %4452
    %4454 = vrot.lane.b32.xlu0 %v2839, 104
    %v4455 = vpop.permute.xlu0 %4454
    %4456 = vrot.lane.b32.xlu0 %v2834, 72
    %v4457 = vpop.permute.xlu0 %4456
    %4458 = vrot.lane.b32.xlu0 %v2839, 72
    %v4459 = vpop.permute.xlu0 %4458
    %v4460 = vsel %vm297, %v4453, 0
    %v4462 = vsel %vm297, %v4455, 0
    %v4464 = vsel %vm297, %v4457, 0
    %v4466 = vsel %vm297, %v4459, 0
    %4468 = vmatprep.subr.mxu0 0.0
    %4469 = vmatpush1.xpose.msra.mxu0 %v4464
    %4470 = vmatprep.subr.mxu0 0.0
    %4471 = vmatpush1.xpose.msra.mxu0 %v4466
    %4472 = vmatprep.subr.mxu0 0.0
    %4473 = vmatpush1.xpose.msra.mxu0 0.0
    %4474 = vmatprep.subr.mxu0 0.0
    %4475 = vmatpush1.xpose.msra.mxu0 0.0
    %4476 = vmatprep.subr.mxu0 0.0
    %4477 = vmatpush1.xpose.msra.mxu0 0.0
    %4478 = vmatprep.subr.mxu0 0.0
    %4479 = vmatpush1.xpose.msra.mxu0 0.0
    %4480 = vmatprep.subr.mxu0 0.0
    %4481 = vmatpush1.xpose.msra.mxu0 0.0
    %4482 = vmatprep.subr.mxu0 0.0
    %4483 = vmatpush1.xpose.msra.mxu0 0.0
    %4484 = vmatprep.subr.mxu0 0.0
    %4485 = vmatpush1.xpose.msra.mxu0 0.0
    %4486 = vmatprep.subr.mxu0 0.0
    %4487 = vmatpush1.xpose.msra.mxu0 0.0
    %4488 = vmatprep.subr.mxu0 0.0
    %4489 = vmatpush1.xpose.msra.mxu0 0.0
    %4490 = vmatprep.subr.mxu0 0.0
    %4491 = vmatpush1.xpose.msra.mxu0 0.0
    %4492 = vmatprep.subr.mxu0 0.0
    %4493 = vmatpush1.xpose.msra.mxu0 0.0
    %4494 = vmatprep.subr.mxu0 0.0
    %4495 = vmatpush1.xpose.msra.mxu0 0.0
    %4496 = vmatprep.subr.mxu0 0.0
    %4497 = vmatpush1.xpose.msra.mxu0 0.0
    %4498 = vmatprep.subr.mxu0 0.0
    %4499 = vmatpush1.xpose.msra.mxu0 0.0
    %4500 = vmatprep.subr.mxu0 0.0
    %4501 = vmatpush1.xpose.msra.mxu0 0.0
    %4502 = vmatprep.subr.mxu0 0.0
    %4503 = vmatpush1.xpose.msra.mxu0 0.0
    %4504 = vmatprep.subr.mxu0 0.0
    %4505 = vmatpush1.xpose.msra.mxu0 0.0
    %4506 = vmatprep.subr.mxu0 0.0
    %4507 = vmatpush1.xpose.msra.mxu0 0.0
    %4508 = vmatprep.subr.mxu0 0.0
    %4509 = vmatpush1.xpose.msra.mxu0 0.0
    %4510 = vmatprep.subr.mxu0 0.0
    %4511 = vmatpush1.xpose.msra.mxu0 0.0
    %4512 = vmatprep.subr.mxu0 0.0
    %4513 = vmatpush1.xpose.msra.mxu0 0.0
    %4514 = vmatprep.subr.mxu0 0.0
    %4515 = vmatpush1.xpose.msra.mxu0 0.0
    %4516 = vmatprep.subr.mxu0 0.0
    %4517 = vmatpush1.xpose.msra.mxu0 0.0
    %4518 = vmatprep.subr.mxu0 0.0
    %4519 = vmatpush1.xpose.msra.mxu0 0.0
    %4520 = vmatprep.subr.mxu0 0.0
    %4521 = vmatpush1.xpose.msra.mxu0 0.0
    %4522 = vmatprep.subr.mxu0 0.0
    %4523 = vmatpush1.xpose.msra.mxu0 0.0
    %4524 = vmatprep.subr.mxu0 0.0
    %4525 = vmatpush1.xpose.msra.mxu0 0.0
    %4526 = vmatprep.subr.mxu0 0.0
    %4527 = vmatpush1.xpose.msra.mxu0 0.0
    %4528 = vmatprep.subr.mxu0 0.0
    %4529 = vmatpush1.xpose.msra.mxu0 0.0
    %4530 = vmatprep.subr.mxu0 0.0
    %4531 = vmatpush1.xpose.msra.mxu0 0.0
    %4532 = vmatprep.mubr.f32.mxu0 0.0
    %4533 = vmatmul.mubr.f32.gmra.mrb[0].mxu0 %v4460
    %v4534 = vpop.f32.mrb[0].mxu0
    %v4535 = vadd.f32 0.0, %v4534
    %v4536 = vpop.f32.mrb[0].mxu0
    %4537 = vmatprep.mubr.f32.mxu0 0.0
    %4538 = vmatmul.mubr.f32.gmra.mrb[0].mxu0 %v4462
    %v4539 = vpop.f32.mrb[0].mxu0
    %v4540 = vadd.f32 0.0, %v4539
    %v4541 = vpop.f32.mrb[0].mxu0
    %4542 = vdwg.mxu0
    %v4543 = vmul.f32 %v4444, 0.35355338
    %v4544 = vmul.f32 %v4449, 0.35355338
    %v4545 = vmul.f32 %v4535, 0.35355338
    %v4546 = vmul.f32 %v4540, 0.35355338
    %v4547 = vadd.f32 %v4543, %v477
    %v4548 = vadd.f32 %v4544, %v477
    %v4549 = vadd.f32 %v4545, %v481
    %v4550 = vadd.f32 %v4546, %v481
    %v4551 = vsel %vm488, %v4547, -inf
    %4552 = vmax.xlane.f32.xlu0 %v4551
    %v4553 = vpop.xlane.xlu0 %4552
    %v4554 = vsel %vm488, %v4548, -inf
    %4555 = vmax.xlane.f32.xlu0 %v4554
    %v4556 = vpop.xlane.xlu0 %4555
    %v4557 = vsel %vm488, %v4549, -inf
    %4558 = vmax.xlane.f32.xlu0 %v4557
    %v4559 = vpop.xlane.xlu0 %4558
    %v4560 = vsel %vm488, %v4550, -inf
    %4561 = vmax.xlane.f32.xlu0 %v4560
    %v4562 = vpop.xlane.xlu0 %4561
    %v4563 = vsub.f32 %v4547, %v4553
    %v4564 = vsub.f32 %v4548, %v4556
    %v4565 = vsub.f32 %v4549, %v4559
    %v4566 = vsub.f32 %v4550, %v4562
    %v4567 = vmul.f32 %v4563, 1.442695
    %v4568 = vpow.pop %v4567
    %v4569 = vmul.f32 %v4564, 1.442695
    %v4570 = vpow.pop %v4569
    %v4571 = vmul.f32 %v4565, 1.442695
    %v4572 = vpow.pop %v4571
    %v4573 = vmul.f32 %v4566, 1.442695
    %v4574 = vpow.pop %v4573
    %v4575 = vsel %vm488, %v4568, 0.0
    %4576 = vadd.xlane.f32.xlu0 %v4575
    %v4577 = vpop.xlane.xlu0 %4576
    %v4578 = vsel %vm488, %v4570, 0.0
    %4579 = vadd.xlane.f32.xlu0 %v4578
    %v4580 = vpop.xlane.xlu0 %4579
    %v4581 = vsel %vm488, %v4572, 0.0
    %4582 = vadd.xlane.f32.xlu0 %v4581
    %v4583 = vpop.xlane.xlu0 %4582
    %v4584 = vsel %vm488, %v4574, 0.0
    %4585 = vadd.xlane.f32.xlu0 %v4584
    %v4586 = vpop.xlane.xlu0 %4585
    %v4587 = vrcp.pop %v4577
    %v4588 = vrcp.pop %v4580
    %v4589 = vrcp.pop %v4583
    %v4590 = vrcp.pop %v4586
    %v4591 = vmul.f32 %v4568, %v4587
    %v4592 = vmul.f32 %v4570, %v4588
    %v4593 = vmul.f32 %v4572, %v4589
    %v4594 = vmul.f32 %v4574, %v4590
    %4595 = vrot.lane.b32.xlu0 %v2824, 40
    %v4596 = vpop.permute.xlu0 %4595
    %4597 = vrot.lane.b32.xlu0 %v2829, 40
    %v4598 = vpop.permute.xlu0 %4597
    %v4602 = vsel %vm488, %v4591, 0
    %v4605 = vsel %vm488, %v4592, 0
    %4607 = vmatprep.subr.mxu0 0.0
    %4608 = vmatpush1.msra.mxu0 %v4596
    %4609 = vmatprep.subr.mxu0 0.0
    %4610 = vmatpush1.msra.mxu0 %v4598
    %4611 = vmatprep.subr.mxu0 0.0
    %4612 = vmatpush1.msra.mxu0 0.0
    %4613 = vmatprep.subr.mxu0 0.0
    %4614 = vmatpush1.msra.mxu0 0.0
    %4615 = vmatprep.subr.mxu0 0.0
    %4616 = vmatpush1.msra.mxu0 0.0
    %4617 = vmatprep.subr.mxu0 0.0
    %4618 = vmatpush1.msra.mxu0 0.0
    %4619 = vmatprep.subr.mxu0 0.0
    %4620 = vmatpush1.msra.mxu0 0.0
    %4621 = vmatprep.subr.mxu0 0.0
    %4622 = vmatpush1.msra.mxu0 0.0
    %4623 = vmatprep.subr.mxu0 0.0
    %4624 = vmatpush1.msra.mxu0 0.0
    %4625 = vmatprep.subr.mxu0 0.0
    %4626 = vmatpush1.msra.mxu0 0.0
    %4627 = vmatprep.subr.mxu0 0.0
    %4628 = vmatpush1.msra.mxu0 0.0
    %4629 = vmatprep.subr.mxu0 0.0
    %4630 = vmatpush1.msra.mxu0 0.0
    %4631 = vmatprep.subr.mxu0 0.0
    %4632 = vmatpush1.msra.mxu0 0.0
    %4633 = vmatprep.subr.mxu0 0.0
    %4634 = vmatpush1.msra.mxu0 0.0
    %4635 = vmatprep.subr.mxu0 0.0
    %4636 = vmatpush1.msra.mxu0 0.0
    %4637 = vmatprep.subr.mxu0 0.0
    %4638 = vmatpush1.msra.mxu0 0.0
    %4639 = vmatprep.subr.mxu0 0.0
    %4640 = vmatpush1.msra.mxu0 0.0
    %4641 = vmatprep.subr.mxu0 0.0
    %4642 = vmatpush1.msra.mxu0 0.0
    %4643 = vmatprep.subr.mxu0 0.0
    %4644 = vmatpush1.msra.mxu0 0.0
    %4645 = vmatprep.subr.mxu0 0.0
    %4646 = vmatpush1.msra.mxu0 0.0
    %4647 = vmatprep.subr.mxu0 0.0
    %4648 = vmatpush1.msra.mxu0 0.0
    %4649 = vmatprep.subr.mxu0 0.0
    %4650 = vmatpush1.msra.mxu0 0.0
    %4651 = vmatprep.subr.mxu0 0.0
    %4652 = vmatpush1.msra.mxu0 0.0
    %4653 = vmatprep.subr.mxu0 0.0
    %4654 = vmatpush1.msra.mxu0 0.0
    %4655 = vmatprep.subr.mxu0 0.0
    %4656 = vmatpush1.msra.mxu0 0.0
    %4657 = vmatprep.subr.mxu0 0.0
    %4658 = vmatpush1.msra.mxu0 0.0
    %4659 = vmatprep.subr.mxu0 0.0
    %4660 = vmatpush1.msra.mxu0 0.0
    %4661 = vmatprep.subr.mxu0 0.0
    %4662 = vmatpush1.msra.mxu0 0.0
    %4663 = vmatprep.subr.mxu0 0.0
    %4664 = vmatpush1.msra.mxu0 0.0
    %4665 = vmatprep.subr.mxu0 0.0
    %4666 = vmatpush1.msra.mxu0 0.0
    %4667 = vmatprep.subr.mxu0 0.0
    %4668 = vmatpush1.msra.mxu0 0.0
    %4669 = vmatprep.subr.mxu0 0.0
    %4670 = vmatpush1.msra.mxu0 0.0
    %4671 = vmatprep.mubr.f32.mxu0 0.0
    %4672 = vmatmul.mubr.f32.gmra.mrb[0].mxu0 %v4602
    %v4673 = vpop.f32.mrb[0].mxu0
    %v4674 = vadd.f32 0.0, %v4673
    %v4675 = vpop.f32.mrb[0].mxu0
    %4676 = vmatprep.mubr.f32.mxu0 0.0
    %4677 = vmatmul.mubr.f32.gmra.mrb[0].mxu0 %v4605
    %v4678 = vpop.f32.mrb[0].mxu0
    %v4679 = vadd.f32 0.0, %v4678
    %v4680 = vpop.f32.mrb[0].mxu0
    %4681 = vdwg.mxu0
    %4682 = vrot.lane.b32.xlu0 %v2834, 40
    %v4683 = vpop.permute.xlu0 %4682
    %4684 = vrot.lane.b32.xlu0 %v2839, 40
    %v4685 = vpop.permute.xlu0 %4684
    %v4689 = vsel %vm488, %v4593, 0
    %v4692 = vsel %vm488, %v4594, 0
    %4694 = vmatprep.subr.mxu0 0.0
    %4695 = vmatpush1.msra.mxu0 %v4683
    %4696 = vmatprep.subr.mxu0 0.0
    %4697 = vmatpush1.msra.mxu0 %v4685
    %4698 = vmatprep.subr.mxu0 0.0
    %4699 = vmatpush1.msra.mxu0 0.0
    %4700 = vmatprep.subr.mxu0 0.0
    %4701 = vmatpush1.msra.mxu0 0.0
    %4702 = vmatprep.subr.mxu0 0.0
    %4703 = vmatpush1.msra.mxu0 0.0
    %4704 = vmatprep.subr.mxu0 0.0
    %4705 = vmatpush1.msra.mxu0 0.0
    %4706 = vmatprep.subr.mxu0 0.0
    %4707 = vmatpush1.msra.mxu0 0.0
    %4708 = vmatprep.subr.mxu0 0.0
    %4709 = vmatpush1.msra.mxu0 0.0
    %4710 = vmatprep.subr.mxu0 0.0
    %4711 = vmatpush1.msra.mxu0 0.0
    %4712 = vmatprep.subr.mxu0 0.0
    %4713 = vmatpush1.msra.mxu0 0.0
    %4714 = vmatprep.subr.mxu0 0.0
    %4715 = vmatpush1.msra.mxu0 0.0
    %4716 = vmatprep.subr.mxu0 0.0
    %4717 = vmatpush1.msra.mxu0 0.0
    %4718 = vmatprep.subr.mxu0 0.0
    %4719 = vmatpush1.msra.mxu0 0.0
    %4720 = vmatprep.subr.mxu0 0.0
    %4721 = vmatpush1.msra.mxu0 0.0
    %4722 = vmatprep.subr.mxu0 0.0
    %4723 = vmatpush1.msra.mxu0 0.0
    %4724 = vmatprep.subr.mxu0 0.0
    %4725 = vmatpush1.msra.mxu0 0.0
    %4726 = vmatprep.subr.mxu0 0.0
    %4727 = vmatpush1.msra.mxu0 0.0
    %4728 = vmatprep.subr.mxu0 0.0
    %4729 = vmatpush1.msra.mxu0 0.0
    %4730 = vmatprep.subr.mxu0 0.0
    %4731 = vmatpush1.msra.mxu0 0.0
    %4732 = vmatprep.subr.mxu0 0.0
    %4733 = vmatpush1.msra.mxu0 0.0
    %4734 = vmatprep.subr.mxu0 0.0
    %4735 = vmatpush1.msra.mxu0 0.0
    %4736 = vmatprep.subr.mxu0 0.0
    %4737 = vmatpush1.msra.mxu0 0.0
    %4738 = vmatprep.subr.mxu0 0.0
    %4739 = vmatpush1.msra.mxu0 0.0
    %4740 = vmatprep.subr.mxu0 0.0
    %4741 = vmatpush1.msra.mxu0 0.0
    %4742 = vmatprep.subr.mxu0 0.0
    %4743 = vmatpush1.msra.mxu0 0.0
    %4744 = vmatprep.subr.mxu0 0.0
    %4745 = vmatpush1.msra.mxu0 0.0
    %4746 = vmatprep.subr.mxu0 0.0
    %4747 = vmatpush1.msra.mxu0 0.0
    %4748 = vmatprep.subr.mxu0 0.0
    %4749 = vmatpush1.msra.mxu0 0.0
    %4750 = vmatprep.subr.mxu0 0.0
    %4751 = vmatpush1.msra.mxu0 0.0
    %4752 = vmatprep.subr.mxu0 0.0
    %4753 = vmatpush1.msra.mxu0 0.0
    %4754 = vmatprep.subr.mxu0 0.0
    %4755 = vmatpush1.msra.mxu0 0.0
    %4756 = vmatprep.subr.mxu0 0.0
    %4757 = vmatpush1.msra.mxu0 0.0
    %4758 = vmatprep.mubr.f32.mxu0 0.0
    %4759 = vmatmul.mubr.f32.gmra.mrb[0].mxu0 %v4689
    %v4760 = vpop.f32.mrb[0].mxu0
    %v4761 = vadd.f32 0.0, %v4760
    %v4762 = vpop.f32.mrb[0].mxu0
    %4763 = vmatprep.mubr.f32.mxu0 0.0
    %4764 = vmatmul.mubr.f32.gmra.mrb[0].mxu0 %v4692
    %v4765 = vpop.f32.mrb[0].mxu0
    %v4766 = vadd.f32 0.0, %v4765
    %v4767 = vpop.f32.mrb[0].mxu0
    %4768 = vdwg.mxu0
    %v4769 = vld [vmem:[%s3246 + $0x18] sm:$0xff]
    %v4771 = vsel %vm297, %v4674, 0
    %v4774 = vsel %vm297, %v4679, 0
    %v4777 = vsel %vm297, %v4761, 0
    %v4780 = vsel %vm297, %v4766, 0
    %4782 = vmatprep.subr.mxu0 0.0
    %4783 = vmatpush1.msra.mxu0 %v4769
    %4784 = vmatprep.subr.mxu0 0.0
    %4785 = vmatpush1.msra.mxu0 0.0
    %4786 = vmatprep.subr.mxu0 0.0
    %4787 = vmatpush1.msra.mxu0 0.0
    %4788 = vmatprep.subr.mxu0 0.0
    %4789 = vmatpush1.msra.mxu0 0.0
    %4790 = vmatprep.subr.mxu0 0.0
    %4791 = vmatpush1.msra.mxu0 0.0
    %4792 = vmatprep.subr.mxu0 0.0
    %4793 = vmatpush1.msra.mxu0 0.0
    %4794 = vmatprep.subr.mxu0 0.0
    %4795 = vmatpush1.msra.mxu0 0.0
    %4796 = vmatprep.subr.mxu0 0.0
    %4797 = vmatpush1.msra.mxu0 0.0
    %4798 = vmatprep.subr.mxu0 0.0
    %4799 = vmatpush1.msra.mxu0 0.0
    %4800 = vmatprep.subr.mxu0 0.0
    %4801 = vmatpush1.msra.mxu0 0.0
    %4802 = vmatprep.subr.mxu0 0.0
    %4803 = vmatpush1.msra.mxu0 0.0
    %4804 = vmatprep.subr.mxu0 0.0
    %4805 = vmatpush1.msra.mxu0 0.0
    %4806 = vmatprep.subr.mxu0 0.0
    %4807 = vmatpush1.msra.mxu0 0.0
    %4808 = vmatprep.subr.mxu0 0.0
    %4809 = vmatpush1.msra.mxu0 0.0
    %4810 = vmatprep.subr.mxu0 0.0
    %4811 = vmatpush1.msra.mxu0 0.0
    %4812 = vmatprep.subr.mxu0 0.0
    %4813 = vmatpush1.msra.mxu0 0.0
    %4814 = vmatprep.subr.mxu0 0.0
    %4815 = vmatpush1.msra.mxu0 0.0
    %4816 = vmatprep.subr.mxu0 0.0
    %4817 = vmatpush1.msra.mxu0 0.0
    %4818 = vmatprep.subr.mxu0 0.0
    %4819 = vmatpush1.msra.mxu0 0.0
    %4820 = vmatprep.subr.mxu0 0.0
    %4821 = vmatpush1.msra.mxu0 0.0
    %4822 = vmatprep.subr.mxu0 0.0
    %4823 = vmatpush1.msra.mxu0 0.0
    %4824 = vmatprep.subr.mxu0 0.0
    %4825 = vmatpush1.msra.mxu0 0.0
    %4826 = vmatprep.subr.mxu0 0.0
    %4827 = vmatpush1.msra.mxu0 0.0
    %4828 = vmatprep.subr.mxu0 0.0
    %4829 = vmatpush1.msra.mxu0 0.0
    %4830 = vmatprep.subr.mxu0 0.0
    %4831 = vmatpush1.msra.mxu0 0.0
    %4832 = vmatprep.subr.mxu0 0.0
    %4833 = vmatpush1.msra.mxu0 0.0
    %4834 = vmatprep.subr.mxu0 0.0
    %4835 = vmatpush1.msra.mxu0 0.0
    %4836 = vmatprep.subr.mxu0 0.0
    %4837 = vmatpush1.msra.mxu0 0.0
    %4838 = vmatprep.subr.mxu0 0.0
    %4839 = vmatpush1.msra.mxu0 0.0
    %4840 = vmatprep.subr.mxu0 0.0
    %4841 = vmatpush1.msra.mxu0 0.0
    %4842 = vmatprep.subr.mxu0 0.0
    %4843 = vmatpush1.msra.mxu0 0.0
    %4844 = vmatprep.subr.mxu0 0.0
    %4845 = vmatpush1.msra.mxu0 0.0
    %4846 = vmatprep.mubr.f32.mxu0 0.0
    %4847 = vmatmul.mubr.f32.gmra.mrb[0].mxu0 %v4771
    %v4848 = vpop.f32.mrb[0].mxu0
    %v4849 = vadd.f32 0.0, %v4848
    %v4850 = vpop.f32.mrb[0].mxu0
    %4851 = vmatprep.mubr.f32.mxu0 0.0
    %4852 = vmatmul.mubr.f32.gmra.mrb[0].mxu0 %v4774
    %v4853 = vpop.f32.mrb[0].mxu0
    %v4854 = vadd.f32 0.0, %v4853
    %v4855 = vpop.f32.mrb[0].mxu0
    %4856 = vmatprep.mubr.f32.mxu0 0.0
    %4857 = vmatmul.mubr.f32.gmra.mrb[0].mxu0 %v4777
    %v4858 = vpop.f32.mrb[0].mxu0
    %v4859 = vadd.f32 0.0, %v4858
    %v4860 = vpop.f32.mrb[0].mxu0
    %4861 = vmatprep.mubr.f32.mxu0 0.0
    %4862 = vmatmul.mubr.f32.gmra.mrb[0].mxu0 %v4780
    %v4863 = vpop.f32.mrb[0].mxu0
    %v4864 = vadd.f32 0.0, %v4863
    %v4865 = vpop.f32.mrb[0].mxu0
    %4866 = vdwg.mxu0
    %v4867 = vadd.f32 %v4357, %v4849
    %v4868 = vadd.f32 %v4358, %v4854
    %v4869 = vadd.f32 %v4359, %v4859
    %v4870 = vadd.f32 %v4360, %v4864
    %v4871 = vadd.f32 %v2662, %v4867
    %v4872 = vadd.f32 %v2663, %v4868
    %v4873 = vadd.f32 %v2664, %v4869
    %v4874 = vadd.f32 %v2665, %v4870
    %v4875 = vlaneseq
    %v4876 = vshrl.u32 %v4875, 7
    %v4877 = vsub.s32 5, %v4876
    %v4878 = vrot.slane %v2667, %v4877
    %v4879 = vadd.f32 %v4871, %v4878
    %v4880 = vadd.f32 %v4872, %v4878
    %v4881 = vadd.f32 %v4873, %v4878
    %v4882 = vadd.f32 %v4874, %v4878
    %v4883 = vsel %vm116, %v4879, 0.0
    %4884 = vadd.xlane.f32.xlu0 %v4883
    %v4885 = vpop.xlane.xlu0 %4884
    %v4886 = vsel %vm116, %v4880, 0.0
    %4887 = vadd.xlane.f32.xlu0 %v4886
    %v4888 = vpop.xlane.xlu0 %4887
    %v4889 = vsel %vm116, %v4881, 0.0
    %4890 = vadd.xlane.f32.xlu0 %v4889
    %v4891 = vpop.xlane.xlu0 %4890
    %v4892 = vsel %vm116, %v4882, 0.0
    %4893 = vadd.xlane.f32.xlu0 %v4892
    %v4894 = vpop.xlane.xlu0 %4893
    %v4895 = vmul.f32 %v4885, %v129
    %v4896 = vmul.f32 %v4888, %v129
    %v4897 = vmul.f32 %v4891, %v129
    %v4898 = vmul.f32 %v4894, %v129
    %v4899 = vsub.f32 %v4879, %v4895
    %v4900 = vsub.f32 %v4880, %v4896
    %v4901 = vsub.f32 %v4881, %v4897
    %v4902 = vsub.f32 %v4882, %v4898
    %v4903 = vmul.f32 %v4899, %v4899
    %v4904 = vmul.f32 %v4900, %v4900
    %v4905 = vmul.f32 %v4901, %v4901
    %v4906 = vmul.f32 %v4902, %v4902
    %v4907 = vsel %vm116, %v4903, 0.0
    %4908 = vadd.xlane.f32.xlu0 %v4907
    %v4909 = vpop.xlane.xlu0 %4908
    %v4910 = vsel %vm116, %v4904, 0.0
    %4911 = vadd.xlane.f32.xlu0 %v4910
    %v4912 = vpop.xlane.xlu0 %4911
    %v4913 = vsel %vm116, %v4905, 0.0
    %4914 = vadd.xlane.f32.xlu0 %v4913
    %v4915 = vpop.xlane.xlu0 %4914
    %v4916 = vsel %vm116, %v4906, 0.0
    %4917 = vadd.xlane.f32.xlu0 %v4916
    %v4918 = vpop.xlane.xlu0 %4917
    %v4919 = vmul.f32 %v4909, %v129
    %v4920 = vmul.f32 %v4912, %v129
    %v4921 = vmul.f32 %v4915, %v129
    %v4922 = vmul.f32 %v4918, %v129
    %v4923 = vadd.f32 %v4919, 1e-05
    %v4924 = vadd.f32 %v4920, 1e-05
    %v4925 = vadd.f32 %v4921, 1e-05
    %v4926 = vadd.f32 %v4922, 1e-05
    %v4927 = vrsqrt.pop %v4923
    %v4928 = vrsqrt.pop %v4924
    %v4929 = vrsqrt.pop %v4925
    %v4930 = vrsqrt.pop %v4926
    %v4931 = vmul.f32 %v4899, %v4927
    %v4932 = vmul.f32 %v4900, %v4928
    %v4933 = vmul.f32 %v4901, %v4929
    %v4934 = vmul.f32 %v4902, %v4930
    %v4935 = vlaneseq
    %v4936 = vshrl.u32 %v4935, 7
    %v4937 = vsub.s32 2, %v4936
    %v4938 = vrot.slane %v2667, %v4937
    %v4939 = vmul.f32 %v4931, %v4938
    %v4940 = vmul.f32 %v4932, %v4938
    %v4941 = vmul.f32 %v4933, %v4938
    %v4942 = vmul.f32 %v4934, %v4938
    %v4943 = vlaneseq
    %v4944 = vshrl.u32 %v4943, 7
    %v4945 = vsub.s32 3, %v4944
    %v4946 = vrot.slane %v2667, %v4945
    %v4947 = vadd.f32 %v4939, %v4946
    %v4948 = vadd.f32 %v4940, %v4946
    %v4949 = vadd.f32 %v4941, %v4946
    %v4950 = vadd.f32 %v4942, %v4946
    %s4951 = scalar_lea.vmem %s6, 32
    %v4952 = vld [vmem:[%s4951] sm:$0xff]
    %v4953 = vld [vmem:[%s4951 + $0x8] sm:$0xff]
    %v4954 = vld [vmem:[%s4951 + $0x10] sm:$0xff]
    %v4955 = vld [vmem:[%s4951 + $0x18] sm:$0xff]
    %v4956 = vlaneseq
    %v4957 = vshrl.u32 %v4956, 7
    %v4958 = vsub.s32 6, %v4957
    %v4959 = vrot.slane %v2667, %v4958
    %v4961 = vsel %vm116, %v4947, 0
    %v4964 = vsel %vm116, %v4948, 0
    %v4967 = vsel %vm116, %v4949, 0
    %v4970 = vsel %vm116, %v4950, 0
    %4972 = vmatprep.subr.mxu0 0.0
    %4973 = vmatpush1.msra.mxu0 %v4952
    %4974 = vmatprep.subr.mxu0 0.0
    %4975 = vmatpush1.msra.mxu0 %v4953
    %4976 = vmatprep.subr.mxu0 0.0
    %4977 = vmatpush1.msra.mxu0 %v4954
    %4978 = vmatprep.subr.mxu0 0.0
    %4979 = vmatpush1.msra.mxu0 %v4955
    %4980 = vmatprep.subr.mxu0 0.0
    %4981 = vmatpush1.msra.mxu0 0.0
    %4982 = vmatprep.subr.mxu0 0.0
    %4983 = vmatpush1.msra.mxu0 0.0
    %4984 = vmatprep.subr.mxu0 0.0
    %4985 = vmatpush1.msra.mxu0 0.0
    %4986 = vmatprep.subr.mxu0 0.0
    %4987 = vmatpush1.msra.mxu0 0.0
    %4988 = vmatprep.subr.mxu0 0.0
    %4989 = vmatpush1.msra.mxu0 0.0
    %4990 = vmatprep.subr.mxu0 0.0
    %4991 = vmatpush1.msra.mxu0 0.0
    %4992 = vmatprep.subr.mxu0 0.0
    %4993 = vmatpush1.msra.mxu0 0.0
    %4994 = vmatprep.subr.mxu0 0.0
    %4995 = vmatpush1.msra.mxu0 0.0
    %4996 = vmatprep.subr.mxu0 0.0
    %4997 = vmatpush1.msra.mxu0 0.0
    %4998 = vmatprep.subr.mxu0 0.0
    %4999 = vmatpush1.msra.mxu0 0.0
    %5000 = vmatprep.subr.mxu0 0.0
    %5001 = vmatpush1.msra.mxu0 0.0
    %5002 = vmatprep.subr.mxu0 0.0
    %5003 = vmatpush1.msra.mxu0 0.0
    %5004 = vmatprep.subr.mxu0 0.0
    %5005 = vmatpush1.msra.mxu0 0.0
    %5006 = vmatprep.subr.mxu0 0.0
    %5007 = vmatpush1.msra.mxu0 0.0
    %5008 = vmatprep.subr.mxu0 0.0
    %5009 = vmatpush1.msra.mxu0 0.0
    %5010 = vmatprep.subr.mxu0 0.0
    %5011 = vmatpush1.msra.mxu0 0.0
    %5012 = vmatprep.subr.mxu0 0.0
    %5013 = vmatpush1.msra.mxu0 0.0
    %5014 = vmatprep.subr.mxu0 0.0
    %5015 = vmatpush1.msra.mxu0 0.0
    %5016 = vmatprep.subr.mxu0 0.0
    %5017 = vmatpush1.msra.mxu0 0.0
    %5018 = vmatprep.subr.mxu0 0.0
    %5019 = vmatpush1.msra.mxu0 0.0
    %5020 = vmatprep.subr.mxu0 0.0
    %5021 = vmatpush1.msra.mxu0 0.0
    %5022 = vmatprep.subr.mxu0 0.0
    %5023 = vmatpush1.msra.mxu0 0.0
    %5024 = vmatprep.subr.mxu0 0.0
    %5025 = vmatpush1.msra.mxu0 0.0
    %5026 = vmatprep.subr.mxu0 0.0
    %5027 = vmatpush1.msra.mxu0 0.0
    %5028 = vmatprep.subr.mxu0 0.0
    %5029 = vmatpush1.msra.mxu0 0.0
    %5030 = vmatprep.subr.mxu0 0.0
    %5031 = vmatpush1.msra.mxu0 0.0
    %5032 = vmatprep.subr.mxu0 0.0
    %5033 = vmatpush1.msra.mxu0 0.0
    %5034 = vmatprep.subr.mxu0 0.0
    %5035 = vmatpush1.msra.mxu0 0.0
    %5036 = vmatprep.mubr.f32.mxu0 0.0
    %5037 = vmatmul.mubr.f32.gmra.mrb[0].mxu0 %v4961
    %v5038 = vpop.f32.mrb[0].mxu0
    %v5039 = vadd.f32 %v4959, %v5038
    %v5040 = vpop.f32.mrb[0].mxu0
    %5041 = vmatprep.mubr.f32.mxu0 0.0
    %5042 = vmatmul.mubr.f32.gmra.mrb[0].mxu0 %v4964
    %v5043 = vpop.f32.mrb[0].mxu0
    %v5044 = vadd.f32 %v4959, %v5043
    %v5045 = vpop.f32.mrb[0].mxu0
    %5046 = vmatprep.mubr.f32.mxu0 0.0
    %5047 = vmatmul.mubr.f32.gmra.mrb[0].mxu0 %v4967
    %v5048 = vpop.f32.mrb[0].mxu0
    %v5049 = vadd.f32 %v4959, %v5048
    %v5050 = vpop.f32.mrb[0].mxu0
    %5051 = vmatprep.mubr.f32.mxu0 0.0
    %5052 = vmatmul.mubr.f32.gmra.mrb[0].mxu0 %v4970
    %v5053 = vpop.f32.mrb[0].mxu0
    %v5054 = vadd.f32 %v4959, %v5053
    %v5055 = vpop.f32.mrb[0].mxu0
    %5056 = vdwg.mxu0
    %v5057 = vmul.f32 %v5039, %v5039
    %v5058 = vmul.f32 %v5044, %v5044
    %v5059 = vmul.f32 %v5049, %v5049
    %v5060 = vmul.f32 %v5054, %v5054
    %v5061 = vmul.f32 %v5039, %v5057
    %v5062 = vmul.f32 %v5044, %v5058
    %v5063 = vmul.f32 %v5049, %v5059
    %v5064 = vmul.f32 %v5054, %v5060
    %v5065 = vmul.f32 %v5061, 0.044715
    %v5066 = vmul.f32 %v5062, 0.044715
    %v5067 = vmul.f32 %v5063, 0.044715
    %v5068 = vmul.f32 %v5064, 0.044715
    %v5069 = vadd.f32 %v5039, %v5065
    %v5070 = vadd.f32 %v5044, %v5066
    %v5071 = vadd.f32 %v5049, %v5067
    %v5072 = vadd.f32 %v5054, %v5068
    %v5073 = vmul.f32 %v5069, 0.7978846
    %v5074 = vmul.f32 %v5070, 0.7978846
    %v5075 = vmul.f32 %v5071, 0.7978846
    %v5076 = vmul.f32 %v5072, 0.7978846
    %v5077 = vtanh.pop %v5073
    %v5078 = vtanh.pop %v5074
    %v5079 = vtanh.pop %v5075
    %v5080 = vtanh.pop %v5076
    %v5081 = vadd.f32 %v5077, 1.0
    %v5082 = vadd.f32 %v5078, 1.0
    %v5083 = vadd.f32 %v5079, 1.0
    %v5084 = vadd.f32 %v5080, 1.0
    %v5085 = vmul.f32 %v5081, 0.5
    %v5086 = vmul.f32 %v5082, 0.5
    %v5087 = vmul.f32 %v5083, 0.5
    %v5088 = vmul.f32 %v5084, 0.5
    %v5089 = vmul.f32 %v5039, %v5085
    %v5090 = vmul.f32 %v5044, %v5086
    %v5091 = vmul.f32 %v5049, %v5087
    %v5092 = vmul.f32 %v5054, %v5088
    %s5093 = scalar_lea.vmem %s7, 64
    %v5094 = vld [vmem:[%s5093] sm:$0xff]
    %v5095 = vld [vmem:[%s5093 + $0x8] sm:$0xff]
    %v5096 = vld [vmem:[%s5093 + $0x10] sm:$0xff]
    %v5097 = vld [vmem:[%s5093 + $0x18] sm:$0xff]
    %v5098 = vld [vmem:[%s5093 + $0x20] sm:$0xff]
    %v5099 = vld [vmem:[%s5093 + $0x28] sm:$0xff]
    %v5100 = vld [vmem:[%s5093 + $0x30] sm:$0xff]
    %v5101 = vld [vmem:[%s5093 + $0x38] sm:$0xff]
    %v5102 = vlaneseq
    %v5103 = vshrl.u32 %v5102, 7
    %v5104 = vsub.s32 7, %v5103
    %v5105 = vrot.slane %v2667, %v5104
    %v5107 = vsel %vm2564, %v5089, 0
    %v5110 = vsel %vm2564, %v5090, 0
    %v5113 = vsel %vm2564, %v5091, 0
    %v5116 = vsel %vm2564, %v5092, 0
    %5118 = vmatprep.subr.mxu0 0.0
    %5119 = vmatpush1.msra.mxu0 %v5094
    %5120 = vmatprep.subr.mxu0 0.0
    %5121 = vmatpush1.msra.mxu0 %v5095
    %5122 = vmatprep.subr.mxu0 0.0
    %5123 = vmatpush1.msra.mxu0 %v5096
    %5124 = vmatprep.subr.mxu0 0.0
    %5125 = vmatpush1.msra.mxu0 %v5097
    %5126 = vmatprep.subr.mxu0 0.0
    %5127 = vmatpush1.msra.mxu0 %v5098
    %5128 = vmatprep.subr.mxu0 0.0
    %5129 = vmatpush1.msra.mxu0 %v5099
    %5130 = vmatprep.subr.mxu0 0.0
    %5131 = vmatpush1.msra.mxu0 %v5100
    %5132 = vmatprep.subr.mxu0 0.0
    %5133 = vmatpush1.msra.mxu0 %v5101
    %5134 = vmatprep.subr.mxu0 0.0
    %5135 = vmatpush1.msra.mxu0 0.0
    %5136 = vmatprep.subr.mxu0 0.0
    %5137 = vmatpush1.msra.mxu0 0.0
    %5138 = vmatprep.subr.mxu0 0.0
    %5139 = vmatpush1.msra.mxu0 0.0
    %5140 = vmatprep.subr.mxu0 0.0
    %5141 = vmatpush1.msra.mxu0 0.0
    %5142 = vmatprep.subr.mxu0 0.0
    %5143 = vmatpush1.msra.mxu0 0.0
    %5144 = vmatprep.subr.mxu0 0.0
    %5145 = vmatpush1.msra.mxu0 0.0
    %5146 = vmatprep.subr.mxu0 0.0
    %5147 = vmatpush1.msra.mxu0 0.0
    %5148 = vmatprep.subr.mxu0 0.0
    %5149 = vmatpush1.msra.mxu0 0.0
    %5150 = vmatprep.subr.mxu0 0.0
    %5151 = vmatpush1.msra.mxu0 0.0
    %5152 = vmatprep.subr.mxu0 0.0
    %5153 = vmatpush1.msra.mxu0 0.0
    %5154 = vmatprep.subr.mxu0 0.0
    %5155 = vmatpush1.msra.mxu0 0.0
    %5156 = vmatprep.subr.mxu0 0.0
    %5157 = vmatpush1.msra.mxu0 0.0
    %5158 = vmatprep.subr.mxu0 0.0
    %5159 = vmatpush1.msra.mxu0 0.0
    %5160 = vmatprep.subr.mxu0 0.0
    %5161 = vmatpush1.msra.mxu0 0.0
    %5162 = vmatprep.subr.mxu0 0.0
    %5163 = vmatpush1.msra.mxu0 0.0
    %5164 = vmatprep.subr.mxu0 0.0
    %5165 = vmatpush1.msra.mxu0 0.0
    %5166 = vmatprep.subr.mxu0 0.0
    %5167 = vmatpush1.msra.mxu0 0.0
    %5168 = vmatprep.subr.mxu0 0.0
    %5169 = vmatpush1.msra.mxu0 0.0
    %5170 = vmatprep.subr.mxu0 0.0
    %5171 = vmatpush1.msra.mxu0 0.0
    %5172 = vmatprep.subr.mxu0 0.0
    %5173 = vmatpush1.msra.mxu0 0.0
    %5174 = vmatprep.subr.mxu0 0.0
    %5175 = vmatpush1.msra.mxu0 0.0
    %5176 = vmatprep.subr.mxu0 0.0
    %5177 = vmatpush1.msra.mxu0 0.0
    %5178 = vmatprep.subr.mxu0 0.0
    %5179 = vmatpush1.msra.mxu0 0.0
    %5180 = vmatprep.subr.mxu0 0.0
    %5181 = vmatpush1.msra.mxu0 0.0
    %5182 = vmatprep.mubr.f32.mxu0 0.0
    %5183 = vmatmul.mubr.f32.gmra.mrb[0].mxu0 %v5107
    %v5184 = vpop.f32.mrb[0].mxu0
    %v5185 = vadd.f32 %v5105, %v5184
    %v5186 = vpop.f32.mrb[0].mxu0
    %5187 = vmatprep.mubr.f32.mxu0 0.0
    %5188 = vmatmul.mubr.f32.gmra.mrb[0].mxu0 %v5110
    %v5189 = vpop.f32.mrb[0].mxu0
    %v5190 = vadd.f32 %v5105, %v5189
    %v5191 = vpop.f32.mrb[0].mxu0
    %5192 = vmatprep.mubr.f32.mxu0 0.0
    %5193 = vmatmul.mubr.f32.gmra.mrb[0].mxu0 %v5113
    %v5194 = vpop.f32.mrb[0].mxu0
    %v5195 = vadd.f32 %v5105, %v5194
    %v5196 = vpop.f32.mrb[0].mxu0
    %5197 = vmatprep.mubr.f32.mxu0 0.0
    %5198 = vmatmul.mubr.f32.gmra.mrb[0].mxu0 %v5116
    %v5199 = vpop.f32.mrb[0].mxu0
    %v5200 = vadd.f32 %v5105, %v5199
    %v5201 = vpop.f32.mrb[0].mxu0
    %5202 = vdwg.mxu0
    %v5203 = vadd.f32 %v4879, %v5185
    %v5204 = vadd.f32 %v4880, %v5190
    %v5205 = vadd.f32 %v4881, %v5195
    %v5206 = vadd.f32 %v4882, %v5200
    %v5207 = vld [vmem:[#allocation7 + $0x2] sm:$0x1]
    %v5208 = vld [vmem:[#allocation7 + $0x3] sm:$0x1]
    %v5209 = vsel %vm116, %v5203, 0.0
    %5210 = vadd.xlane.f32.xlu0 %v5209
    %v5211 = vpop.xlane.xlu0 %5210
    %v5212 = vsel %vm116, %v5204, 0.0
    %5213 = vadd.xlane.f32.xlu0 %v5212
    %v5214 = vpop.xlane.xlu0 %5213
    %v5215 = vsel %vm116, %v5205, 0.0
    %5216 = vadd.xlane.f32.xlu0 %v5215
    %v5217 = vpop.xlane.xlu0 %5216
    %v5218 = vsel %vm116, %v5206, 0.0
    %5219 = vadd.xlane.f32.xlu0 %v5218
    %v5220 = vpop.xlane.xlu0 %5219
    %v5221 = vmul.f32 %v5211, %v129
    %v5222 = vmul.f32 %v5214, %v129
    %v5223 = vmul.f32 %v5217, %v129
    %v5224 = vmul.f32 %v5220, %v129
    %v5225 = vsub.f32 %v5203, %v5221
    %v5226 = vsub.f32 %v5204, %v5222
    %v5227 = vsub.f32 %v5205, %v5223
    %v5228 = vsub.f32 %v5206, %v5224
    %v5229 = vmul.f32 %v5225, %v5225
    %v5230 = vmul.f32 %v5226, %v5226
    %v5231 = vmul.f32 %v5227, %v5227
    %v5232 = vmul.f32 %v5228, %v5228
    %v5233 = vsel %vm116, %v5229, 0.0
    %5234 = vadd.xlane.f32.xlu0 %v5233
    %v5235 = vpop.xlane.xlu0 %5234
    %v5236 = vsel %vm116, %v5230, 0.0
    %5237 = vadd.xlane.f32.xlu0 %v5236
    %v5238 = vpop.xlane.xlu0 %5237
    %v5239 = vsel %vm116, %v5231, 0.0
    %5240 = vadd.xlane.f32.xlu0 %v5239
    %v5241 = vpop.xlane.xlu0 %5240
    %v5242 = vsel %vm116, %v5232, 0.0
    %5243 = vadd.xlane.f32.xlu0 %v5242
    %v5244 = vpop.xlane.xlu0 %5243
    %v5245 = vmul.f32 %v5235, %v129
    %v5246 = vmul.f32 %v5238, %v129
    %v5247 = vmul.f32 %v5241, %v129
    %v5248 = vmul.f32 %v5244, %v129
    %v5249 = vadd.f32 %v5245, 1e-05
    %v5250 = vadd.f32 %v5246, 1e-05
    %v5251 = vadd.f32 %v5247, 1e-05
    %v5252 = vadd.f32 %v5248, 1e-05
    %v5253 = vrsqrt.pop %v5249
    %v5254 = vrsqrt.pop %v5250
    %v5255 = vrsqrt.pop %v5251
    %v5256 = vrsqrt.pop %v5252
    %v5257 = vmul.f32 %v5225, %v5253
    %v5258 = vmul.f32 %v5226, %v5254
    %v5259 = vmul.f32 %v5227, %v5255
    %v5260 = vmul.f32 %v5228, %v5256
    %v5261 = vlaneseq
    %v5262 = vshrl.u32 %v5261, 7
    %v5263 = vsub.s32 0, %v5262
    %v5264 = vrot.slane %v5207, %v5263
    %v5265 = vmul.f32 %v5257, %v5264
    %v5266 = vmul.f32 %v5258, %v5264
    %v5267 = vmul.f32 %v5259, %v5264
    %v5268 = vmul.f32 %v5260, %v5264
    %v5269 = vlaneseq
    %v5270 = vshrl.u32 %v5269, 7
    %v5271 = vsub.s32 0, %v5270
    %v5272 = vrot.slane %v5208, %v5271
    %v5273 = vadd.f32 %v5265, %v5272
    %v5274 = vadd.f32 %v5266, %v5272
    %v5275 = vadd.f32 %v5267, %v5272
    %v5276 = vadd.f32 %v5268, %v5272
    %5277 = vst.msk [vmem:[#allocation8] sm:$0xff] %vm116, %v5273
    %5278 = vst.msk [vmem:[#allocation8 + $0x8] sm:$0xff] %vm116, %v5274
    %5279 = vst.msk [vmem:[#allocation8 + $0x10] sm:$0xff] %vm116, %v5275
    %5280 = vst.msk [vmem:[#allocation8 + $0x18] sm:$0xff] %vm116, %v5276
    // Predicated region
    $region50: #{tpu_custom_call.1} parent=1 // pred_check
      _
    $region51: #{tpu_custom_call.1} parent=1 // pred_check_branch
      %5282 = sbr.rel (0) target = $region53
    $region52: #{tpu_custom_call.1} parent=1 // pred_region
      %s5284 = ssub.s32 512, 512
      %5285 = vsyncadd [#allocation4], %s5284
      %s5286 = sshll.u32 [#allocation8], 4
      %s5287 = int_to_ptr.vmem [resolvable:$true] %s5286
      %5292 = dma.vmem_to_hbm [thread:$0]  %s5287, 512, %s9, [#allocation4], 128, 128, 8
    $region53: #{tpu_custom_call.1} parent=1 // pred_fallthru
      _
    // Predicated region
    $region54: #{tpu_custom_call.1} parent=1 // pred_check
      _
    $region55: #{tpu_custom_call.1} parent=1 // pred_check_branch
      %5294 = sbr.rel (0) target = $region57
    $region56: #{tpu_custom_call.1} parent=1 // pred_region
      %5295 = dma.done [#allocation4], 512
    $region57: #{tpu_custom_call.1} parent=1 // pred_fallthru
      _
    %5296 = vsyncpa [#allocation3], 1
    %5297 = vsyncpa [#allocation6], 1
    %5298 = vsyncpa [#allocation4], 1

</llo_original>
